<compile_context>
chip_gen: v7x
topology: tpu7x:2x2x1
jax: 0.10.0
libtpu: 0.0.40
codegen_flags: <defaults>
</compile_context>

<pallas_src>
import functools

import jax
import jax.numpy as jnp
from jax.experimental import pallas as pl
from jax.experimental.pallas import tpu as pltpu


# ------------------------------ fused kernel --------------------------------

def _downsample_kernel(x_ref, cols_ref, w_qk_ref, w_v1_ref, ln_w_ref, ln_b_ref,
                       w_v2_ref, m_hp_ref, t_shift_ref, temp_ref, w_proj_ref,
                       o_ref, *, num_head):
    f32 = jnp.float32
    bf16 = jnp.bfloat16

    x = x_ref[0]                    # (C,  H*W)    channels x pixels
    cols = cols_ref[0]              # (9C, Ho*Wo)  im2col columns, stride-2 conv

    # qk 1x1 conv: (4C, C) @ (C, HW) -> (4C, HW)   (lane-dense output)
    qk = jnp.dot(w_qk_ref[...].astype(bf16), x.astype(bf16),
                 preferred_element_type=f32)

    # v[0]: 3x3 stride-2 conv as a single matmul on im2col columns -> (C, Ho*Wo)
    v1 = jnp.dot(w_v1_ref[...].astype(bf16), cols.astype(bf16),
                 preferred_element_type=f32)

    # v[1]: channel LayerNorm (channels live on the sublane axis), f32 math
    u = jnp.mean(v1, axis=0, keepdims=True)
    xc = v1 - u
    var = jnp.mean(xc * xc, axis=0, keepdims=True)
    v1 = xc * jax.lax.rsqrt(var + 1e-6)
    v1 = v1 * ln_w_ref[...] + ln_b_ref[...]

    # v[2]: 1x1 conv (2C, C) @ (C, Ho*Wo) -> (2C, Ho*Wo)
    v = jnp.dot(w_v2_ref[...].astype(bf16), v1.astype(bf16),
                preferred_element_type=f32)
    v_bf = v.astype(bf16)

    # v_hp: grouped 3x3 conv (groups = C, 2 channels/group) done fully
    # in-kernel as 9 taps:  (block-diagonal tap weight) @ v @ (spatial shift).
    two_c, n_out = v.shape
    v_hp = jnp.zeros((two_c, n_out), f32)
    for t in range(9):
        shifted = jnp.dot(v_bf, t_shift_ref[t].astype(bf16),
                          preferred_element_type=f32)            # (2C, Ho*Wo)
        v_hp = v_hp + jnp.dot(m_hp_ref[t].astype(bf16), shifted.astype(bf16),
                              preferred_element_type=f32)

    # channel attention — all heads batched in single einsums
    dh = two_c // num_head
    hw = x.shape[-1]
    q = qk[:two_c].reshape(num_head, dh, hw)
    k = qk[two_c:].reshape(num_head, dh, hw)
    s = jnp.einsum("hdn,hen->hde", q.astype(bf16), k.astype(bf16),
                   preferred_element_type=f32)                   # (nh, dh, dh)
    s = s * temp_ref[...]
    s = s - jnp.max(s, axis=-1, keepdims=True)
    p = jnp.exp(s)
    p = p * pl.reciprocal(jnp.sum(p, axis=-1, keepdims=True), approx=True)

    vh = v.reshape(num_head, dh, n_out)
    attn_out = jnp.einsum("hde,hen->hdn", p.astype(bf16), vh.astype(bf16),
                          preferred_element_type=f32)            # (nh, dh, Ho*Wo)
    y = attn_out.reshape(two_c, n_out) + v_hp

    # proj 1x1 conv: (2C, 2C) @ (2C, Ho*Wo)
    o_ref[0] = jnp.dot(w_proj_ref[...].astype(bf16), y.astype(bf16),
                       preferred_element_type=f32)


# --------------------------- host-side preparation ---------------------------

def _im2col_stride2(x):
    """x: (B,C,H,W) -> columns (B, C*9, Ho*Wo) for a 3x3/stride2/pad1 conv.
    Feature ordering = ci*9 + kh*3 + kw, matching w.reshape(Cout, C*9)."""
    B, C, H, W = x.shape
    Ho, Wo = H // 2, W // 2
    xp = jnp.pad(x, ((0, 0), (0, 0), (1, 1), (1, 1)))
    patches = []
    for kh in range(3):
        for kw in range(3):
            patches.append(xp[:, :, kh:kh + 2 * Ho:2, kw:kw + 2 * Wo:2])
    cols = jnp.stack(patches, axis=2)                  # (B, C, 9, Ho, Wo)
    return cols.reshape(B, C * 9, Ho * Wo)


def _build_shift_mats(Ho, Wo):
    """(9, N, N) 0/1 matrices: v @ T[t] = zero-padded spatial shift by tap t."""
    N = Ho * Wo
    q = jnp.arange(N)
    i, j = q // Wo, q % Wo
    p = jnp.arange(N)
    mats = []
    for kh in range(3):
        for kw in range(3):
            dy, dx = kh - 1, kw - 1
            ii, jj = i + dy, j + dx
            valid = (ii >= 0) & (ii < Ho) & (jj >= 0) & (jj < Wo)
            src = jnp.where(valid, ii * Wo + jj, -1)
            mats.append((p[:, None] == src[None, :]).astype(jnp.float32))
    return jnp.stack(mats)                             # (9, N, N)


def _build_group_taps(w_vhp):
    """(9, 2C, 2C) block-diagonal per-tap weights for the groups=C conv,
    built with one-hot einsums (no python .at[].set loop)."""
    cout = w_vhp.shape[0]                              # 2C, 2 in-ch per group
    co = jnp.arange(cout)
    ci = jnp.arange(cout)
    base = 2 * (co // 2)
    sel0 = (ci[None, :] == base[:, None]).astype(w_vhp.dtype)
    sel1 = (ci[None, :] == (base + 1)[:, None]).astype(w_vhp.dtype)
    w0 = w_vhp[:, 0].reshape(cout, 9)                  # tap index = kh*3+kw
    w1 = w_vhp[:, 1].reshape(cout, 9)
    return (jnp.einsum("ot,oi->toi", w0, sel0) +
            jnp.einsum("ot,oi->toi", w1, sel1))        # (9, 2C, 2C)


# ------------------------------ Downsample fwd ------------------------------

@functools.partial(jax.jit, static_argnames=("num_head",))
def downsample_forward(x, params, *, num_head):
    B, C, H, W = x.shape
    Ho, Wo = H // 2, W // 2
    HW, Nv = H * W, Ho * Wo
    C2 = 2 * C

    x_mat = x.reshape(B, C, HW)
    cols = _im2col_stride2(x)

    w_qk = params["w_qk"].reshape(4 * C, C)
    w_v1 = params["w_v1"].reshape(C, C * 9)
    w_v2 = params["w_v2"].reshape(C2, C)
    w_proj = params["w_proj"].reshape(C2, C2)
    ln_w = params["ln_w"].reshape(C, 1)
    ln_b = params["ln_b"].reshape(C, 1)
    m_hp = _build_group_taps(params["w_vhp"])          # (9, 2C, 2C)
    t_shift = _build_shift_mats(Ho, Wo)                # (9, Nv, Nv)
    temp = params["temperature"].reshape(num_head, 1, 1)

    kernel = functools.partial(_downsample_kernel, num_head=num_head)
    # Per-step VMEM footprint is well under 1 MiB, so the default scoped VMEM
    # limit is ample on v5e/v6e/v7x (no vmem_limit_bytes needed).
    out = pl.pallas_call(
        kernel,
        out_shape=jax.ShapeDtypeStruct((B, C2, Nv), jnp.float32),
        grid=(B,),
        in_specs=[
            pl.BlockSpec((1, C, HW), lambda b: (b, 0, 0)),
            pl.BlockSpec((1, C * 9, Nv), lambda b: (b, 0, 0)),
            pl.BlockSpec((4 * C, C), lambda b: (0, 0)),
            pl.BlockSpec((C, C * 9), lambda b: (0, 0)),
            pl.BlockSpec((C, 1), lambda b: (0, 0)),
            pl.BlockSpec((C, 1), lambda b: (0, 0)),
            pl.BlockSpec((C2, C), lambda b: (0, 0)),
            pl.BlockSpec((9, C2, C2), lambda b: (0, 0, 0)),
            pl.BlockSpec((9, Nv, Nv), lambda b: (0, 0, 0)),
            pl.BlockSpec((num_head, 1, 1), lambda b: (0, 0, 0)),
            pl.BlockSpec((C2, C2), lambda b: (0, 0)),
        ],
        out_specs=pl.BlockSpec((1, C2, Nv), lambda b: (b, 0, 0)),
        compiler_params=pltpu.CompilerParams(
            dimension_semantics=("parallel",)),        # v7x: 2 TCs share the batch
    )(x_mat, cols, w_qk, w_v1, ln_w, ln_b, w_v2, m_hp, t_shift, temp, w_proj)

    return out.reshape(B, C2, Ho, Wo)


# ------------------------------ pure-JAX reference ---------------------------

def reference_forward(x, p, num_head):
    conv = functools.partial(jax.lax.conv_general_dilated,
                             dimension_numbers=("NCHW", "OIHW", "NCHW"),
                             precision=jax.lax.Precision.HIGHEST)
    B, C, H, W = x.shape
    nh = num_head
    dh = 2 * C // nh

    qk = conv(x, p["w_qk"], (1, 1), ((0, 0), (0, 0)))
    qk = qk.reshape(B, 2, nh, dh, H * W)
    q, k = qk[:, 0], qk[:, 1]

    v1 = conv(x, p["w_v1"], (2, 2), ((1, 1), (1, 1)))
    u = v1.mean(1, keepdims=True)
    s = ((v1 - u) ** 2).mean(1, keepdims=True)
    v1 = (v1 - u) / jnp.sqrt(s + 1e-6)
    v1 = p["ln_w"][None, :, None, None] * v1 + p["ln_b"][None, :, None, None]
    v = conv(v1, p["w_v2"], (1, 1), ((0, 0), (0, 0)))

    v_hp = conv(v, p["w_vhp"], (1, 1), ((1, 1), (1, 1)), feature_group_count=C)

    vr = v.reshape(B, nh, dh, -1)
    attn = jnp.einsum("bhdn,bhen->bhde", q, k,
                      precision=jax.lax.Precision.HIGHEST) * p["temperature"][None]
    attn = jax.nn.softmax(attn, axis=-1)
    out = jnp.einsum("bhde,bhen->bhdn", attn, vr,
                     precision=jax.lax.Precision.HIGHEST)
    out = out.reshape(B, 2 * C, H // 2, W // 2) + v_hp
    out = conv(out, p["w_proj"], (1, 1), ((0, 0), (0, 0)))
    return out


# ----------------------------------- main ------------------------------------

if __name__ == "__main__":
    B, C, H, W = 2, 16, 16, 16
    num_head = 8

    key = jax.random.PRNGKey(0)
    kx, k1, k2, k3, k4, k5 = jax.random.split(key, 6)
    sc = 0.05
    params = {
        "w_v1":   sc * jax.random.normal(k1, (C, C, 3, 3), jnp.float32),
        "ln_w":   jnp.ones((C,), jnp.float32),
        "ln_b":   jnp.zeros((C,), jnp.float32),
        "w_v2":   sc * jax.random.normal(k2, (2 * C, C, 1, 1), jnp.float32),
        "w_vhp":  sc * jax.random.normal(k3, (2 * C, 2, 3, 3), jnp.float32),
        "w_qk":   sc * jax.random.normal(k4, (4 * C, C, 1, 1), jnp.float32),
        "w_proj": sc * jax.random.normal(k5, (2 * C, 2 * C, 1, 1), jnp.float32),
        "temperature": jnp.ones((num_head, 1, 1), jnp.float32),
    }
    x = jax.random.normal(kx, (B, C, H, W), jnp.float32)

    out = jax.block_until_ready(downsample_forward(x, params, num_head=num_head))
    assert out.shape == (B, 2 * C, H // 2, W // 2)

    ref = jax.block_until_ready(reference_forward(x, params, num_head))
    rel_err = float(jnp.max(jnp.abs(out - ref)) / (jnp.max(jnp.abs(ref)) + 1e-8))
    if rel_err > 2e-2:
        raise AssertionError(f"mismatch vs reference, rel_err={rel_err}")

    print("KERNEL_OK")
</pallas_src>

<mosaic_0001>
module attributes {stable_mosaic.version = 11 : i64} {
  func.func @_downsample_kernel(%arg0: i32, %arg1: memref<1x16x256xf32, #tpu.memory_space<vmem>>, %arg2: memref<1x144x64xf32, #tpu.memory_space<vmem>>, %arg3: memref<64x16xf32, #tpu.memory_space<vmem>>, %arg4: memref<16x144xf32, #tpu.memory_space<vmem>>, %arg5: memref<16x1xf32, #tpu.memory_space<vmem>>, %arg6: memref<16x1xf32, #tpu.memory_space<vmem>>, %arg7: memref<32x16xf32, #tpu.memory_space<vmem>>, %arg8: memref<9x32x32xf32, #tpu.memory_space<vmem>>, %arg9: memref<9x64x64xf32, #tpu.memory_space<vmem>>, %arg10: memref<8x1x1xf32, #tpu.memory_space<vmem>>, %arg11: memref<32x32xf32, #tpu.memory_space<vmem>>, %arg12: memref<1x32x64xf32, #tpu.memory_space<vmem>>) attributes {dimension_semantics = [#tpu.dimension_semantics<parallel>], iteration_bounds = array<i64: 2>, scalar_prefetch = 0 : i64, scratch_operands = 0 : i64, tpu.core_type = #tpu.core_type<tc>, window_params = [{transform_indices = @transform_0, window_bounds = array<i64: 1, 16, 256>}, {transform_indices = @transform_1, window_bounds = array<i64: 1, 144, 64>}, {pipeline_mode = #tpu.pipeline_mode<synchronous>, transform_indices = @transform_2, window_bounds = array<i64: 64, 16>}, {pipeline_mode = #tpu.pipeline_mode<synchronous>, transform_indices = @transform_3, window_bounds = array<i64: 16, 144>}, {pipeline_mode = #tpu.pipeline_mode<synchronous>, transform_indices = @transform_4, window_bounds = array<i64: 16, 1>}, {pipeline_mode = #tpu.pipeline_mode<synchronous>, transform_indices = @transform_5, window_bounds = array<i64: 16, 1>}, {pipeline_mode = #tpu.pipeline_mode<synchronous>, transform_indices = @transform_6, window_bounds = array<i64: 32, 16>}, {pipeline_mode = #tpu.pipeline_mode<synchronous>, transform_indices = @transform_7, window_bounds = array<i64: 9, 32, 32>}, {pipeline_mode = #tpu.pipeline_mode<synchronous>, transform_indices = @transform_8, window_bounds = array<i64: 9, 64, 64>}, {pipeline_mode = #tpu.pipeline_mode<synchronous>, transform_indices = @transform_9, window_bounds = array<i64: 8, 1, 1>}, {pipeline_mode = #tpu.pipeline_mode<synchronous>, transform_indices = @transform_10, window_bounds = array<i64: 32, 32>}, {transform_indices = @transform_11, window_bounds = array<i64: 1, 32, 64>}]} {
    %c0 = arith.constant 0 : index
    %c0_0 = arith.constant 0 : index
    %c0_1 = arith.constant 0 : index
    %0 = vector.load %arg1[%c0, %c0_0, %c0_1] : memref<1x16x256xf32, #tpu.memory_space<vmem>>, vector<1x16x256xf32>
    %1 = vector.shape_cast %0 : vector<1x16x256xf32> to vector<16x256xf32>
    %c0_2 = arith.constant 0 : index
    %c0_3 = arith.constant 0 : index
    %c0_4 = arith.constant 0 : index
    %2 = vector.load %arg2[%c0_2, %c0_3, %c0_4] : memref<1x144x64xf32, #tpu.memory_space<vmem>>, vector<1x144x64xf32>
    %3 = vector.shape_cast %2 : vector<1x144x64xf32> to vector<144x64xf32>
    %c0_5 = arith.constant 0 : index
    %c0_6 = arith.constant 0 : index
    %4 = vector.load %arg3[%c0_5, %c0_6] : memref<64x16xf32, #tpu.memory_space<vmem>>, vector<64x16xf32>
    %5 = arith.truncf %4 : vector<64x16xf32> to vector<64x16xbf16>
    %6 = arith.truncf %1 : vector<16x256xf32> to vector<16x256xbf16>
    %cst = arith.constant dense<0.000000e+00> : vector<64x256xf32>
    %7 = tpu.matmul %5, %6, %cst {dimension_numbers = #tpu.dot_dimension_numbers<[1], [0], [0], [1], [0, 0, 1, 1], [], []>} : vector<64x16xbf16>, vector<16x256xbf16>, vector<64x256xf32> -> vector<64x256xf32>
    %c0_7 = arith.constant 0 : index
    %c0_8 = arith.constant 0 : index
    %8 = vector.load %arg4[%c0_7, %c0_8] : memref<16x144xf32, #tpu.memory_space<vmem>>, vector<16x144xf32>
    %9 = arith.truncf %8 : vector<16x144xf32> to vector<16x144xbf16>
    %10 = arith.truncf %3 : vector<144x64xf32> to vector<144x64xbf16>
    %cst_9 = arith.constant dense<0.000000e+00> : vector<16x64xf32>
    %11 = tpu.matmul %9, %10, %cst_9 {dimension_numbers = #tpu.dot_dimension_numbers<[1], [0], [0], [1], [0, 0, 1, 1], [], []>} : vector<16x144xbf16>, vector<144x64xbf16>, vector<16x64xf32> -> vector<16x64xf32>
    %cst_10 = arith.constant dense<0.000000e+00> : vector<64xf32>
    %12 = vector.multi_reduction <add>, %11, %cst_10 [0] : vector<16x64xf32> to vector<64xf32>
    %13 = vector.shape_cast %12 : vector<64xf32> to vector<1x64xf32>
    %cst_11 = arith.constant 1.600000e+01 : f32
    %14 = vector.broadcast %cst_11 : f32 to vector<1x64xf32>
    %15 = arith.divf %13, %14 : vector<1x64xf32>
    %16 = vector.broadcast %15 : vector<1x64xf32> to vector<16x64xf32>
    %17 = arith.subf %11, %16 : vector<16x64xf32>
    %18 = arith.mulf %17, %17 : vector<16x64xf32>
    %cst_12 = arith.constant dense<0.000000e+00> : vector<64xf32>
    %19 = vector.multi_reduction <add>, %18, %cst_12 [0] : vector<16x64xf32> to vector<64xf32>
    %20 = vector.shape_cast %19 : vector<64xf32> to vector<1x64xf32>
    %cst_13 = arith.constant 1.600000e+01 : f32
    %21 = vector.broadcast %cst_13 : f32 to vector<1x64xf32>
    %22 = arith.divf %20, %21 : vector<1x64xf32>
    %cst_14 = arith.constant 9.99999997E-7 : f32
    %23 = vector.broadcast %cst_14 : f32 to vector<1x64xf32>
    %24 = arith.addf %22, %23 : vector<1x64xf32>
    %25 = math.rsqrt %24 : vector<1x64xf32>
    %26 = vector.broadcast %25 : vector<1x64xf32> to vector<16x64xf32>
    %27 = arith.mulf %17, %26 : vector<16x64xf32>
    %c0_15 = arith.constant 0 : index
    %c0_16 = arith.constant 0 : index
    %28 = vector.load %arg5[%c0_15, %c0_16] : memref<16x1xf32, #tpu.memory_space<vmem>>, vector<16x1xf32>
    %29 = vector.broadcast %28 : vector<16x1xf32> to vector<16x64xf32>
    %30 = arith.mulf %27, %29 : vector<16x64xf32>
    %c0_17 = arith.constant 0 : index
    %c0_18 = arith.constant 0 : index
    %31 = vector.load %arg6[%c0_17, %c0_18] : memref<16x1xf32, #tpu.memory_space<vmem>>, vector<16x1xf32>
    %32 = vector.broadcast %31 : vector<16x1xf32> to vector<16x64xf32>
    %33 = arith.addf %30, %32 : vector<16x64xf32>
    %c0_19 = arith.constant 0 : index
    %c0_20 = arith.constant 0 : index
    %34 = vector.load %arg7[%c0_19, %c0_20] : memref<32x16xf32, #tpu.memory_space<vmem>>, vector<32x16xf32>
    %35 = arith.truncf %34 : vector<32x16xf32> to vector<32x16xbf16>
    %36 = arith.truncf %33 : vector<16x64xf32> to vector<16x64xbf16>
    %cst_21 = arith.constant dense<0.000000e+00> : vector<32x64xf32>
    %37 = tpu.matmul %35, %36, %cst_21 {dimension_numbers = #tpu.dot_dimension_numbers<[1], [0], [0], [1], [0, 0, 1, 1], [], []>} : vector<32x16xbf16>, vector<16x64xbf16>, vector<32x64xf32> -> vector<32x64xf32>
    %38 = arith.truncf %37 : vector<32x64xf32> to vector<32x64xbf16>
    %cst_22 = arith.constant 0.000000e+00 : f32
    %39 = vector.broadcast %cst_22 : f32 to vector<32x64xf32>
    %c0_23 = arith.constant 0 : index
    %c0_24 = arith.constant 0 : index
    %c0_25 = arith.constant 0 : index
    %40 = vector.load %arg9[%c0_23, %c0_24, %c0_25] : memref<9x64x64xf32, #tpu.memory_space<vmem>>, vector<1x64x64xf32>
    %41 = vector.shape_cast %40 : vector<1x64x64xf32> to vector<64x64xf32>
    %42 = arith.truncf %41 : vector<64x64xf32> to vector<64x64xbf16>
    %cst_26 = arith.constant dense<0.000000e+00> : vector<32x64xf32>
    %43 = tpu.matmul %38, %42, %cst_26 {dimension_numbers = #tpu.dot_dimension_numbers<[1], [0], [0], [1], [0, 0, 1, 1], [], []>} : vector<32x64xbf16>, vector<64x64xbf16>, vector<32x64xf32> -> vector<32x64xf32>
    %c0_27 = arith.constant 0 : index
    %c0_28 = arith.constant 0 : index
    %c0_29 = arith.constant 0 : index
    %44 = vector.load %arg8[%c0_27, %c0_28, %c0_29] : memref<9x32x32xf32, #tpu.memory_space<vmem>>, vector<1x32x32xf32>
    %45 = vector.shape_cast %44 : vector<1x32x32xf32> to vector<32x32xf32>
    %46 = arith.truncf %45 : vector<32x32xf32> to vector<32x32xbf16>
    %47 = arith.truncf %43 : vector<32x64xf32> to vector<32x64xbf16>
    %cst_30 = arith.constant dense<0.000000e+00> : vector<32x64xf32>
    %48 = tpu.matmul %46, %47, %cst_30 {dimension_numbers = #tpu.dot_dimension_numbers<[1], [0], [0], [1], [0, 0, 1, 1], [], []>} : vector<32x32xbf16>, vector<32x64xbf16>, vector<32x64xf32> -> vector<32x64xf32>
    %49 = arith.addf %39, %48 : vector<32x64xf32>
    %c1 = arith.constant 1 : index
    %c0_31 = arith.constant 0 : index
    %c0_32 = arith.constant 0 : index
    %50 = vector.load %arg9[%c1, %c0_31, %c0_32] : memref<9x64x64xf32, #tpu.memory_space<vmem>>, vector<1x64x64xf32>
    %51 = vector.shape_cast %50 : vector<1x64x64xf32> to vector<64x64xf32>
    %52 = arith.truncf %51 : vector<64x64xf32> to vector<64x64xbf16>
    %cst_33 = arith.constant dense<0.000000e+00> : vector<32x64xf32>
    %53 = tpu.matmul %38, %52, %cst_33 {dimension_numbers = #tpu.dot_dimension_numbers<[1], [0], [0], [1], [0, 0, 1, 1], [], []>} : vector<32x64xbf16>, vector<64x64xbf16>, vector<32x64xf32> -> vector<32x64xf32>
    %c1_34 = arith.constant 1 : index
    %c0_35 = arith.constant 0 : index
    %c0_36 = arith.constant 0 : index
    %54 = vector.load %arg8[%c1_34, %c0_35, %c0_36] : memref<9x32x32xf32, #tpu.memory_space<vmem>>, vector<1x32x32xf32>
    %55 = vector.shape_cast %54 : vector<1x32x32xf32> to vector<32x32xf32>
    %56 = arith.truncf %55 : vector<32x32xf32> to vector<32x32xbf16>
    %57 = arith.truncf %53 : vector<32x64xf32> to vector<32x64xbf16>
    %cst_37 = arith.constant dense<0.000000e+00> : vector<32x64xf32>
    %58 = tpu.matmul %56, %57, %cst_37 {dimension_numbers = #tpu.dot_dimension_numbers<[1], [0], [0], [1], [0, 0, 1, 1], [], []>} : vector<32x32xbf16>, vector<32x64xbf16>, vector<32x64xf32> -> vector<32x64xf32>
    %59 = arith.addf %49, %58 : vector<32x64xf32>
    %c2 = arith.constant 2 : index
    %c0_38 = arith.constant 0 : index
    %c0_39 = arith.constant 0 : index
    %60 = vector.load %arg9[%c2, %c0_38, %c0_39] : memref<9x64x64xf32, #tpu.memory_space<vmem>>, vector<1x64x64xf32>
    %61 = vector.shape_cast %60 : vector<1x64x64xf32> to vector<64x64xf32>
    %62 = arith.truncf %61 : vector<64x64xf32> to vector<64x64xbf16>
    %cst_40 = arith.constant dense<0.000000e+00> : vector<32x64xf32>
    %63 = tpu.matmul %38, %62, %cst_40 {dimension_numbers = #tpu.dot_dimension_numbers<[1], [0], [0], [1], [0, 0, 1, 1], [], []>} : vector<32x64xbf16>, vector<64x64xbf16>, vector<32x64xf32> -> vector<32x64xf32>
    %c2_41 = arith.constant 2 : index
    %c0_42 = arith.constant 0 : index
    %c0_43 = arith.constant 0 : index
    %64 = vector.load %arg8[%c2_41, %c0_42, %c0_43] : memref<9x32x32xf32, #tpu.memory_space<vmem>>, vector<1x32x32xf32>
    %65 = vector.shape_cast %64 : vector<1x32x32xf32> to vector<32x32xf32>
    %66 = arith.truncf %65 : vector<32x32xf32> to vector<32x32xbf16>
    %67 = arith.truncf %63 : vector<32x64xf32> to vector<32x64xbf16>
    %cst_44 = arith.constant dense<0.000000e+00> : vector<32x64xf32>
    %68 = tpu.matmul %66, %67, %cst_44 {dimension_numbers = #tpu.dot_dimension_numbers<[1], [0], [0], [1], [0, 0, 1, 1], [], []>} : vector<32x32xbf16>, vector<32x64xbf16>, vector<32x64xf32> -> vector<32x64xf32>
    %69 = arith.addf %59, %68 : vector<32x64xf32>
    %c3 = arith.constant 3 : index
    %c0_45 = arith.constant 0 : index
    %c0_46 = arith.constant 0 : index
    %70 = vector.load %arg9[%c3, %c0_45, %c0_46] : memref<9x64x64xf32, #tpu.memory_space<vmem>>, vector<1x64x64xf32>
    %71 = vector.shape_cast %70 : vector<1x64x64xf32> to vector<64x64xf32>
    %72 = arith.truncf %71 : vector<64x64xf32> to vector<64x64xbf16>
    %cst_47 = arith.constant dense<0.000000e+00> : vector<32x64xf32>
    %73 = tpu.matmul %38, %72, %cst_47 {dimension_numbers = #tpu.dot_dimension_numbers<[1], [0], [0], [1], [0, 0, 1, 1], [], []>} : vector<32x64xbf16>, vector<64x64xbf16>, vector<32x64xf32> -> vector<32x64xf32>
    %c3_48 = arith.constant 3 : index
    %c0_49 = arith.constant 0 : index
    %c0_50 = arith.constant 0 : index
    %74 = vector.load %arg8[%c3_48, %c0_49, %c0_50] : memref<9x32x32xf32, #tpu.memory_space<vmem>>, vector<1x32x32xf32>
    %75 = vector.shape_cast %74 : vector<1x32x32xf32> to vector<32x32xf32>
    %76 = arith.truncf %75 : vector<32x32xf32> to vector<32x32xbf16>
    %77 = arith.truncf %73 : vector<32x64xf32> to vector<32x64xbf16>
    %cst_51 = arith.constant dense<0.000000e+00> : vector<32x64xf32>
    %78 = tpu.matmul %76, %77, %cst_51 {dimension_numbers = #tpu.dot_dimension_numbers<[1], [0], [0], [1], [0, 0, 1, 1], [], []>} : vector<32x32xbf16>, vector<32x64xbf16>, vector<32x64xf32> -> vector<32x64xf32>
    %79 = arith.addf %69, %78 : vector<32x64xf32>
    %c4 = arith.constant 4 : index
    %c0_52 = arith.constant 0 : index
    %c0_53 = arith.constant 0 : index
    %80 = vector.load %arg9[%c4, %c0_52, %c0_53] : memref<9x64x64xf32, #tpu.memory_space<vmem>>, vector<1x64x64xf32>
    %81 = vector.shape_cast %80 : vector<1x64x64xf32> to vector<64x64xf32>
    %82 = arith.truncf %81 : vector<64x64xf32> to vector<64x64xbf16>
    %cst_54 = arith.constant dense<0.000000e+00> : vector<32x64xf32>
    %83 = tpu.matmul %38, %82, %cst_54 {dimension_numbers = #tpu.dot_dimension_numbers<[1], [0], [0], [1], [0, 0, 1, 1], [], []>} : vector<32x64xbf16>, vector<64x64xbf16>, vector<32x64xf32> -> vector<32x64xf32>
    %c4_55 = arith.constant 4 : index
    %c0_56 = arith.constant 0 : index
    %c0_57 = arith.constant 0 : index
    %84 = vector.load %arg8[%c4_55, %c0_56, %c0_57] : memref<9x32x32xf32, #tpu.memory_space<vmem>>, vector<1x32x32xf32>
    %85 = vector.shape_cast %84 : vector<1x32x32xf32> to vector<32x32xf32>
    %86 = arith.truncf %85 : vector<32x32xf32> to vector<32x32xbf16>
    %87 = arith.truncf %83 : vector<32x64xf32> to vector<32x64xbf16>
    %cst_58 = arith.constant dense<0.000000e+00> : vector<32x64xf32>
    %88 = tpu.matmul %86, %87, %cst_58 {dimension_numbers = #tpu.dot_dimension_numbers<[1], [0], [0], [1], [0, 0, 1, 1], [], []>} : vector<32x32xbf16>, vector<32x64xbf16>, vector<32x64xf32> -> vector<32x64xf32>
    %89 = arith.addf %79, %88 : vector<32x64xf32>
    %c5 = arith.constant 5 : index
    %c0_59 = arith.constant 0 : index
    %c0_60 = arith.constant 0 : index
    %90 = vector.load %arg9[%c5, %c0_59, %c0_60] : memref<9x64x64xf32, #tpu.memory_space<vmem>>, vector<1x64x64xf32>
    %91 = vector.shape_cast %90 : vector<1x64x64xf32> to vector<64x64xf32>
    %92 = arith.truncf %91 : vector<64x64xf32> to vector<64x64xbf16>
    %cst_61 = arith.constant dense<0.000000e+00> : vector<32x64xf32>
    %93 = tpu.matmul %38, %92, %cst_61 {dimension_numbers = #tpu.dot_dimension_numbers<[1], [0], [0], [1], [0, 0, 1, 1], [], []>} : vector<32x64xbf16>, vector<64x64xbf16>, vector<32x64xf32> -> vector<32x64xf32>
    %c5_62 = arith.constant 5 : index
    %c0_63 = arith.constant 0 : index
    %c0_64 = arith.constant 0 : index
    %94 = vector.load %arg8[%c5_62, %c0_63, %c0_64] : memref<9x32x32xf32, #tpu.memory_space<vmem>>, vector<1x32x32xf32>
    %95 = vector.shape_cast %94 : vector<1x32x32xf32> to vector<32x32xf32>
    %96 = arith.truncf %95 : vector<32x32xf32> to vector<32x32xbf16>
    %97 = arith.truncf %93 : vector<32x64xf32> to vector<32x64xbf16>
    %cst_65 = arith.constant dense<0.000000e+00> : vector<32x64xf32>
    %98 = tpu.matmul %96, %97, %cst_65 {dimension_numbers = #tpu.dot_dimension_numbers<[1], [0], [0], [1], [0, 0, 1, 1], [], []>} : vector<32x32xbf16>, vector<32x64xbf16>, vector<32x64xf32> -> vector<32x64xf32>
    %99 = arith.addf %89, %98 : vector<32x64xf32>
    %c6 = arith.constant 6 : index
    %c0_66 = arith.constant 0 : index
    %c0_67 = arith.constant 0 : index
    %100 = vector.load %arg9[%c6, %c0_66, %c0_67] : memref<9x64x64xf32, #tpu.memory_space<vmem>>, vector<1x64x64xf32>
    %101 = vector.shape_cast %100 : vector<1x64x64xf32> to vector<64x64xf32>
    %102 = arith.truncf %101 : vector<64x64xf32> to vector<64x64xbf16>
    %cst_68 = arith.constant dense<0.000000e+00> : vector<32x64xf32>
    %103 = tpu.matmul %38, %102, %cst_68 {dimension_numbers = #tpu.dot_dimension_numbers<[1], [0], [0], [1], [0, 0, 1, 1], [], []>} : vector<32x64xbf16>, vector<64x64xbf16>, vector<32x64xf32> -> vector<32x64xf32>
    %c6_69 = arith.constant 6 : index
    %c0_70 = arith.constant 0 : index
    %c0_71 = arith.constant 0 : index
    %104 = vector.load %arg8[%c6_69, %c0_70, %c0_71] : memref<9x32x32xf32, #tpu.memory_space<vmem>>, vector<1x32x32xf32>
    %105 = vector.shape_cast %104 : vector<1x32x32xf32> to vector<32x32xf32>
    %106 = arith.truncf %105 : vector<32x32xf32> to vector<32x32xbf16>
    %107 = arith.truncf %103 : vector<32x64xf32> to vector<32x64xbf16>
    %cst_72 = arith.constant dense<0.000000e+00> : vector<32x64xf32>
    %108 = tpu.matmul %106, %107, %cst_72 {dimension_numbers = #tpu.dot_dimension_numbers<[1], [0], [0], [1], [0, 0, 1, 1], [], []>} : vector<32x32xbf16>, vector<32x64xbf16>, vector<32x64xf32> -> vector<32x64xf32>
    %109 = arith.addf %99, %108 : vector<32x64xf32>
    %c7 = arith.constant 7 : index
    %c0_73 = arith.constant 0 : index
    %c0_74 = arith.constant 0 : index
    %110 = vector.load %arg9[%c7, %c0_73, %c0_74] : memref<9x64x64xf32, #tpu.memory_space<vmem>>, vector<1x64x64xf32>
    %111 = vector.shape_cast %110 : vector<1x64x64xf32> to vector<64x64xf32>
    %112 = arith.truncf %111 : vector<64x64xf32> to vector<64x64xbf16>
    %cst_75 = arith.constant dense<0.000000e+00> : vector<32x64xf32>
    %113 = tpu.matmul %38, %112, %cst_75 {dimension_numbers = #tpu.dot_dimension_numbers<[1], [0], [0], [1], [0, 0, 1, 1], [], []>} : vector<32x64xbf16>, vector<64x64xbf16>, vector<32x64xf32> -> vector<32x64xf32>
    %c7_76 = arith.constant 7 : index
    %c0_77 = arith.constant 0 : index
    %c0_78 = arith.constant 0 : index
    %114 = vector.load %arg8[%c7_76, %c0_77, %c0_78] : memref<9x32x32xf32, #tpu.memory_space<vmem>>, vector<1x32x32xf32>
    %115 = vector.shape_cast %114 : vector<1x32x32xf32> to vector<32x32xf32>
    %116 = arith.truncf %115 : vector<32x32xf32> to vector<32x32xbf16>
    %117 = arith.truncf %113 : vector<32x64xf32> to vector<32x64xbf16>
    %cst_79 = arith.constant dense<0.000000e+00> : vector<32x64xf32>
    %118 = tpu.matmul %116, %117, %cst_79 {dimension_numbers = #tpu.dot_dimension_numbers<[1], [0], [0], [1], [0, 0, 1, 1], [], []>} : vector<32x32xbf16>, vector<32x64xbf16>, vector<32x64xf32> -> vector<32x64xf32>
    %119 = arith.addf %109, %118 : vector<32x64xf32>
    %c8 = arith.constant 8 : index
    %c0_80 = arith.constant 0 : index
    %c0_81 = arith.constant 0 : index
    %120 = vector.load %arg9[%c8, %c0_80, %c0_81] : memref<9x64x64xf32, #tpu.memory_space<vmem>>, vector<1x64x64xf32>
    %121 = vector.shape_cast %120 : vector<1x64x64xf32> to vector<64x64xf32>
    %122 = arith.truncf %121 : vector<64x64xf32> to vector<64x64xbf16>
    %cst_82 = arith.constant dense<0.000000e+00> : vector<32x64xf32>
    %123 = tpu.matmul %38, %122, %cst_82 {dimension_numbers = #tpu.dot_dimension_numbers<[1], [0], [0], [1], [0, 0, 1, 1], [], []>} : vector<32x64xbf16>, vector<64x64xbf16>, vector<32x64xf32> -> vector<32x64xf32>
    %c8_83 = arith.constant 8 : index
    %c0_84 = arith.constant 0 : index
    %c0_85 = arith.constant 0 : index
    %124 = vector.load %arg8[%c8_83, %c0_84, %c0_85] : memref<9x32x32xf32, #tpu.memory_space<vmem>>, vector<1x32x32xf32>
    %125 = vector.shape_cast %124 : vector<1x32x32xf32> to vector<32x32xf32>
    %126 = arith.truncf %125 : vector<32x32xf32> to vector<32x32xbf16>
    %127 = arith.truncf %123 : vector<32x64xf32> to vector<32x64xbf16>
    %cst_86 = arith.constant dense<0.000000e+00> : vector<32x64xf32>
    %128 = tpu.matmul %126, %127, %cst_86 {dimension_numbers = #tpu.dot_dimension_numbers<[1], [0], [0], [1], [0, 0, 1, 1], [], []>} : vector<32x32xbf16>, vector<32x64xbf16>, vector<32x64xf32> -> vector<32x64xf32>
    %129 = arith.addf %119, %128 : vector<32x64xf32>
    %130 = vector.extract_strided_slice %7 {offsets = [0, 0], sizes = [32, 256], strides = [1, 1]} : vector<64x256xf32> to vector<32x256xf32>
    %131 = vector.shape_cast %130 : vector<32x256xf32> to vector<8x4x256xf32>
    %132 = vector.extract_strided_slice %7 {offsets = [32, 0], sizes = [32, 256], strides = [1, 1]} : vector<64x256xf32> to vector<32x256xf32>
    %133 = vector.shape_cast %132 : vector<32x256xf32> to vector<8x4x256xf32>
    %134 = arith.truncf %131 : vector<8x4x256xf32> to vector<8x4x256xbf16>
    %135 = arith.truncf %133 : vector<8x4x256xf32> to vector<8x4x256xbf16>
    "tpu.trace_start"() <{level = 10 : i32, message = "hdn,hen->hde"}> : () -> ()
    %cst_87 = arith.constant dense<0.000000e+00> : vector<8x4x4xf32>
    %136 = tpu.matmul %134, %135, %cst_87 {dimension_numbers = #tpu.dot_dimension_numbers<[2], [2], [1], [1], [0, 0, 0, 1, 1, 1], [0], [0]>} : vector<8x4x256xbf16>, vector<8x4x256xbf16>, vector<8x4x4xf32> -> vector<8x4x4xf32>
    "tpu.trace_stop"() : () -> ()
    %c0_88 = arith.constant 0 : index
    %c0_89 = arith.constant 0 : index
    %c0_90 = arith.constant 0 : index
    %137 = vector.load %arg10[%c0_88, %c0_89, %c0_90] : memref<8x1x1xf32, #tpu.memory_space<vmem>>, vector<8x1x1xf32>
    %138 = vector.broadcast %137 : vector<8x1x1xf32> to vector<8x4x4xf32>
    %139 = arith.mulf %136, %138 : vector<8x4x4xf32>
    %cst_91 = arith.constant dense<0xFF800000> : vector<8x4xf32>
    %140 = vector.multi_reduction <maximumf>, %139, %cst_91 [2] : vector<8x4x4xf32> to vector<8x4xf32>
    %141 = vector.shape_cast %140 : vector<8x4xf32> to vector<8x4x1xf32>
    %142 = vector.broadcast %141 : vector<8x4x1xf32> to vector<8x4x4xf32>
    %143 = arith.subf %139, %142 : vector<8x4x4xf32>
    %144 = math.exp %143 : vector<8x4x4xf32>
    %cst_92 = arith.constant dense<0.000000e+00> : vector<8x4xf32>
    %145 = vector.multi_reduction <add>, %144, %cst_92 [2] : vector<8x4x4xf32> to vector<8x4xf32>
    %146 = vector.shape_cast %145 : vector<8x4xf32> to vector<8x4x1xf32>
    %147 = tpu.reciprocal %146 {approx = true} : vector<8x4x1xf32> -> vector<8x4x1xf32>
    %148 = vector.broadcast %147 : vector<8x4x1xf32> to vector<8x4x4xf32>
    %149 = arith.mulf %144, %148 : vector<8x4x4xf32>
    %150 = vector.shape_cast %37 : vector<32x64xf32> to vector<8x4x64xf32>
    %151 = arith.truncf %149 : vector<8x4x4xf32> to vector<8x4x4xbf16>
    %152 = arith.truncf %150 : vector<8x4x64xf32> to vector<8x4x64xbf16>
    "tpu.trace_start"() <{level = 10 : i32, message = "hde,hen->hdn"}> : () -> ()
    %cst_93 = arith.constant dense<0.000000e+00> : vector<8x4x64xf32>
    %153 = tpu.matmul %151, %152, %cst_93 {dimension_numbers = #tpu.dot_dimension_numbers<[2], [1], [1], [2], [0, 0, 0, 1, 1, 2], [0], [0]>} : vector<8x4x4xbf16>, vector<8x4x64xbf16>, vector<8x4x64xf32> -> vector<8x4x64xf32>
    "tpu.trace_stop"() : () -> ()
    %154 = vector.shape_cast %153 : vector<8x4x64xf32> to vector<32x64xf32>
    %155 = arith.addf %154, %129 : vector<32x64xf32>
    %c0_94 = arith.constant 0 : index
    %c0_95 = arith.constant 0 : index
    %156 = vector.load %arg11[%c0_94, %c0_95] : memref<32x32xf32, #tpu.memory_space<vmem>>, vector<32x32xf32>
    %157 = arith.truncf %156 : vector<32x32xf32> to vector<32x32xbf16>
    %158 = arith.truncf %155 : vector<32x64xf32> to vector<32x64xbf16>
    %cst_96 = arith.constant dense<0.000000e+00> : vector<32x64xf32>
    %159 = tpu.matmul %157, %158, %cst_96 {dimension_numbers = #tpu.dot_dimension_numbers<[1], [0], [0], [1], [0, 0, 1, 1], [], []>} : vector<32x32xbf16>, vector<32x64xbf16>, vector<32x64xf32> -> vector<32x64xf32>
    %c0_97 = arith.constant 0 : index
    %c0_98 = arith.constant 0 : index
    %c0_99 = arith.constant 0 : index
    %160 = vector.load %arg12[%c0_97, %c0_98, %c0_99] : memref<1x32x64xf32, #tpu.memory_space<vmem>>, vector<1x32x64xf32>
    %161 = vector.shape_cast %160 : vector<1x32x64xf32> to vector<32x64xf32>
    %162 = vector.shape_cast %159 : vector<32x64xf32> to vector<1x32x64xf32>
    tpu.vector_store %arg12[%c0_97, %c0_98, %c0_99], %162 {strides = array<i32>} : memref<1x32x64xf32, #tpu.memory_space<vmem>>, vector<1x32x64xf32>,
    return
  }
  func.func @transform_0(%arg0: i32) -> (i32, i32, i32) {
    %c0_i32 = arith.constant 0 : i32
    %c0_i32_0 = arith.constant 0 : i32
    %c0_i32_1 = arith.constant 0 : i32
    return %arg0, %c0_i32, %c0_i32_0 : i32, i32, i32
  }
  func.func @transform_1(%arg0: i32) -> (i32, i32, i32) {
    %c0_i32 = arith.constant 0 : i32
    %c0_i32_0 = arith.constant 0 : i32
    %c0_i32_1 = arith.constant 0 : i32
    return %arg0, %c0_i32, %c0_i32_0 : i32, i32, i32
  }
  func.func @transform_2(%arg0: i32) -> (i32, i32) {
    %c0_i32 = arith.constant 0 : i32
    %c0_i32_0 = arith.constant 0 : i32
    %c0_i32_1 = arith.constant 0 : i32
    return %c0_i32, %c0_i32_0 : i32, i32
  }
  func.func @transform_3(%arg0: i32) -> (i32, i32) {
    %c0_i32 = arith.constant 0 : i32
    %c0_i32_0 = arith.constant 0 : i32
    %c0_i32_1 = arith.constant 0 : i32
    return %c0_i32, %c0_i32_0 : i32, i32
  }
  func.func @transform_4(%arg0: i32) -> (i32, i32) {
    %c0_i32 = arith.constant 0 : i32
    %c0_i32_0 = arith.constant 0 : i32
    %c0_i32_1 = arith.constant 0 : i32
    return %c0_i32, %c0_i32_0 : i32, i32
  }
  func.func @transform_5(%arg0: i32) -> (i32, i32) {
    %c0_i32 = arith.constant 0 : i32
    %c0_i32_0 = arith.constant 0 : i32
    %c0_i32_1 = arith.constant 0 : i32
    return %c0_i32, %c0_i32_0 : i32, i32
  }
  func.func @transform_6(%arg0: i32) -> (i32, i32) {
    %c0_i32 = arith.constant 0 : i32
    %c0_i32_0 = arith.constant 0 : i32
    %c0_i32_1 = arith.constant 0 : i32
    return %c0_i32, %c0_i32_0 : i32, i32
  }
  func.func @transform_7(%arg0: i32) -> (i32, i32, i32) {
    %c0_i32 = arith.constant 0 : i32
    %c0_i32_0 = arith.constant 0 : i32
    %c0_i32_1 = arith.constant 0 : i32
    %c0_i32_2 = arith.constant 0 : i32
    return %c0_i32, %c0_i32_0, %c0_i32_1 : i32, i32, i32
  }
  func.func @transform_8(%arg0: i32) -> (i32, i32, i32) {
    %c0_i32 = arith.constant 0 : i32
    %c0_i32_0 = arith.constant 0 : i32
    %c0_i32_1 = arith.constant 0 : i32
    %c0_i32_2 = arith.constant 0 : i32
    return %c0_i32, %c0_i32_0, %c0_i32_1 : i32, i32, i32
  }
  func.func @transform_9(%arg0: i32) -> (i32, i32, i32) {
    %c0_i32 = arith.constant 0 : i32
    %c0_i32_0 = arith.constant 0 : i32
    %c0_i32_1 = arith.constant 0 : i32
    %c0_i32_2 = arith.constant 0 : i32
    return %c0_i32, %c0_i32_0, %c0_i32_1 : i32, i32, i32
  }
  func.func @transform_10(%arg0: i32) -> (i32, i32) {
    %c0_i32 = arith.constant 0 : i32
    %c0_i32_0 = arith.constant 0 : i32
    %c0_i32_1 = arith.constant 0 : i32
    return %c0_i32, %c0_i32_0 : i32, i32
  }
  func.func @transform_11(%arg0: i32) -> (i32, i32, i32) {
    %c0_i32 = arith.constant 0 : i32
    %c0_i32_0 = arith.constant 0 : i32
    %c0_i32_1 = arith.constant 0 : i32
    return %arg0, %c0_i32, %c0_i32_0 : i32, i32, i32
  }
}

</mosaic_0001>

<llo_original>
// kernel: squeeze.2
$region0: #{squeeze.2}
  %s0 = inlined_call_operand.vmem [shape: f32[32,3,3], index: 0, kind: input, shape index: {}]
  %s1 = inlined_call_operand.vmem [shape: f32[32,9], index: 1, kind: output, shape index: {}]
  $region1: #{squeeze.2} parent=0
    #allocation0 [shape = 'u8[12288]{0}', space=vmem, size = 0x3000, scoped, tag = 'scoped mem for input reshape']
    %s3 = sshllo.u32 0, 4
    %s4 = smul.addr 4, 2
    %s5 = scalar_lea.vmem %s0, %s4
    %v6 = vld [vmem:[%s5] sm:%s3]
    %s7 = scalar_lea.vmem [#allocation0], 16
    %8 = vst [vmem:[%s7] sm:%s3] %v6
    %s9 = scalar_lea.vmem %s0, 4
    %v10 = vld [vmem:[%s9] sm:%s3]
    %s11 = scalar_lea.vmem [#allocation0], 8
    %12 = vst [vmem:[%s11] sm:%s3] %v10
    %v13 = vld [vmem:[%s0] sm:%s3]
    %14 = vst [vmem:[#allocation0] sm:%s3] %v13
    %v15 = vld [vmem:[#allocation0] sm:$0x7]
    %vm16 = vcmask 261120
    %17 = vst.msk [vmem:[%s1] sm:$0x7] %vm16, %v15
    %s18 = scalar_lea.vmem [#allocation0], 8
    %v19 = vld [vmem:[%s18] sm:$0x7]
    %vm20 = vcmask 261120
    %s21 = scalar_lea.vmem %s1, 3
    %22 = vst.msk [vmem:[%s21] sm:$0x7] %vm20, %v19
    %s23 = scalar_lea.vmem [#allocation0], 16
    %v24 = vld [vmem:[%s23] sm:$0x7]
    %vm25 = vcmask 261120
    %s26 = scalar_lea.vmem %s1, 6
    %27 = vst.msk [vmem:[%s26] sm:$0x7] %vm25, %v24

// kernel: downsample_forward.1
$region0: #{downsample_forward.1}
  #allocation0 [shape = 'u32[]', space=smem, size = 0x4, offset = 0x4, fixed_abs, tag = 'smem constant byte address 0x4 - core index']
  #allocation1 [shape = 'u32[144,128]{1,0:T(1,128)}', space=vmem, size = 0x12000, scoped, tag = 'internal scratch']
  %s0 = inlined_call_operand.vmem [shape: f32[2,16,256], index: 0, kind: input, shape index: {}]
  %s1 = inlined_call_operand.vmem [shape: f32[2,144,64], index: 1, kind: input, shape index: {}]
  %s2 = inlined_call_operand.vmem [shape: f32[64,16], index: 2, kind: input, shape index: {}]
  %s3 = inlined_call_operand.vmem [shape: f32[16,144], index: 3, kind: input, shape index: {}]
  %s4 = inlined_call_operand.vmem [shape: f32[16,1], index: 4, kind: input, shape index: {}]
  %s5 = inlined_call_operand.vmem [shape: f32[16,1], index: 5, kind: input, shape index: {}]
  %s6 = inlined_call_operand.vmem [shape: f32[32,16], index: 6, kind: input, shape index: {}]
  %s7 = inlined_call_operand.vmem [shape: f32[9,32,32], index: 7, kind: input, shape index: {}]
  %s8 = inlined_call_operand.vmem [shape: f32[9,64,64], index: 8, kind: input, shape index: {}]
  %s9 = inlined_call_operand.vmem [shape: f32[8,1,1], index: 9, kind: input, shape index: {}]
  %s10 = inlined_call_operand.vmem [shape: f32[32,32], index: 10, kind: input, shape index: {}]
  %s11 = inlined_call_operand.vmem [shape: f32[2,32,64], index: 11, kind: output, shape index: {}]
  %s12 = sld [smem:[#allocation0]]
  $region77: #{downsample_forward.1} parent=0
    _
  %s14 = ssub.s32 1, %s12
  %s15 = scalar_select 0, %s14, %s12
  loop: start=0, step=1, limit=4
  $region2: #{downsample_forward.1} parent=0 // loop_pre_header
    _
  $region3: #{downsample_forward.1} parent=0 // loop_header
    %s17 = sphi 0, %s21
    %p18 = scmp.ge.s32.totalorder %s17, 4
    %s27 = sphi 0, %s29
    %s30 = sphi 0, %s27
    %s31 = sphi 0, %s30
    %s47 = sphi 0, %s31
    %s53 = sphi 0, %s55
    %s56 = sphi 0, %s53
    %s57 = sphi 0, %s56
    %s73 = sphi 0, %s57
    %s77 = sphi 0, %s77
    %s79 = sphi 0, %s77
    %s80 = sphi 0, %s79
    %s94 = sphi 0, %s80
    %s98 = sphi 0, %s98
    %s100 = sphi 0, %s98
    %s101 = sphi 0, %s100
    %s115 = sphi 0, %s101
    %s119 = sphi 0, %s119
    %s121 = sphi 0, %s119
    %s122 = sphi 0, %s121
    %s136 = sphi 0, %s122
    %s140 = sphi 0, %s140
    %s142 = sphi 0, %s140
    %s143 = sphi 0, %s142
    %s157 = sphi 0, %s143
    %s161 = sphi 0, %s161
    %s163 = sphi 0, %s161
    %s164 = sphi 0, %s163
    %s178 = sphi 0, %s164
    %s182 = sphi 0, %s182
    %s184 = sphi 0, %s182
    %s185 = sphi 0, %s184
    %s199 = sphi 0, %s185
    %s203 = sphi 0, %s203
    %s205 = sphi 0, %s203
    %s206 = sphi 0, %s205
    %s220 = sphi 0, %s206
    %s224 = sphi 0, %s224
    %s226 = sphi 0, %s224
    %s227 = sphi 0, %s226
    %s241 = sphi 0, %s227
    %s245 = sphi 0, %s245
    %s247 = sphi 0, %s245
    %s248 = sphi 0, %s247
    %s262 = sphi 0, %s248
    %s268 = sphi 0, %s270
    %s271 = sphi 0, %s268
    %s272 = sphi 0, %s271
    %s288 = sphi 0, %s272
  $region4: #{downsample_forward.1} parent=0 // loop_header_branch
    %20 = sbr.rel (%p18) target = $region8
  $region5: #{downsample_forward.1} parent=0 // loop_body
    %s22 = ssub.s32 %s17, 1
    %s23 = ssub.s32 %s17, 2
    %s24 = sadd.s32 %s17, 1
    %s25 = ssub.s32 %s17, %s24
    %p26 = scmp.eq.s32.totalorder %s25, 0
    %s28 = sadd.s32 %s27, 1
    %s29 = scalar_select %p26, %s27, %s28
    %p32 = pneg %p26
    %p33 = scmp.eq.s32.totalorder %s17, 1
    %p34 = por %p32, %p33
    %p35 = scmp.ne.s32.totalorder %s27, %s30
    %p36 = scmp.eq.s32.totalorder %s17, 0
    %p37 = por %p35, %p36
    %p38 = scmp.ne.s32.totalorder %s27, %s30
    %p39 = scmp.eq.s32.totalorder %s22, 1
    %p40 = por %p38, %p39
    %p41 = scmp.ne.s32.totalorder %s30, %s31
    %p42 = scmp.eq.s32.totalorder %s22, 0
    %p43 = por %p41, %p42
    %p44 = scmp.ne.s32.totalorder %s30, %s31
    %p45 = scmp.eq.s32.totalorder %s23, 1
    %p46 = por %p44, %p45
    %p48 = scmp.ne.s32.totalorder %s31, %s47
    %p49 = scmp.eq.s32.totalorder %s23, 0
    %p50 = por %p48, %p49
    %s51 = ssub.s32 %s17, %s24
    %p52 = scmp.eq.s32.totalorder %s51, 0
    %s54 = sadd.s32 %s53, 1
    %s55 = scalar_select %p52, %s53, %s54
    %p58 = pneg %p52
    %p59 = scmp.eq.s32.totalorder %s17, 1
    %p60 = por %p58, %p59
    %p61 = scmp.ne.s32.totalorder %s53, %s56
    %p62 = scmp.eq.s32.totalorder %s17, 0
    %p63 = por %p61, %p62
    %p64 = scmp.ne.s32.totalorder %s53, %s56
    %p65 = scmp.eq.s32.totalorder %s22, 1
    %p66 = por %p64, %p65
    %p67 = scmp.ne.s32.totalorder %s56, %s57
    %p68 = scmp.eq.s32.totalorder %s22, 0
    %p69 = por %p67, %p68
    %p70 = scmp.ne.s32.totalorder %s56, %s57
    %p71 = scmp.eq.s32.totalorder %s23, 1
    %p72 = por %p70, %p71
    %p74 = scmp.ne.s32.totalorder %s57, %s73
    %p75 = scmp.eq.s32.totalorder %s23, 0
    %p76 = por %p74, %p75
    %s78 = sadd.s32 %s77, 1
    %p81 = scmp.eq.s32.totalorder %s17, 1
    %p82 = scmp.ne.s32.totalorder %s77, %s79
    %p83 = scmp.eq.s32.totalorder %s17, 0
    %p84 = por %p82, %p83
    %p85 = scmp.ne.s32.totalorder %s77, %s79
    %p86 = scmp.eq.s32.totalorder %s22, 1
    %p87 = por %p85, %p86
    %p88 = scmp.ne.s32.totalorder %s79, %s80
    %p89 = scmp.eq.s32.totalorder %s22, 0
    %p90 = por %p88, %p89
    %p91 = scmp.ne.s32.totalorder %s79, %s80
    %p92 = scmp.eq.s32.totalorder %s23, 1
    %p93 = por %p91, %p92
    %p95 = scmp.ne.s32.totalorder %s80, %s94
    %p96 = scmp.eq.s32.totalorder %s23, 0
    %p97 = por %p95, %p96
    %s99 = sadd.s32 %s98, 1
    %p102 = scmp.eq.s32.totalorder %s17, 1
    %p103 = scmp.ne.s32.totalorder %s98, %s100
    %p104 = scmp.eq.s32.totalorder %s17, 0
    %p105 = por %p103, %p104
    %p106 = scmp.ne.s32.totalorder %s98, %s100
    %p107 = scmp.eq.s32.totalorder %s22, 1
    %p108 = por %p106, %p107
    %p109 = scmp.ne.s32.totalorder %s100, %s101
    %p110 = scmp.eq.s32.totalorder %s22, 0
    %p111 = por %p109, %p110
    %p112 = scmp.ne.s32.totalorder %s100, %s101
    %p113 = scmp.eq.s32.totalorder %s23, 1
    %p114 = por %p112, %p113
    %p116 = scmp.ne.s32.totalorder %s101, %s115
    %p117 = scmp.eq.s32.totalorder %s23, 0
    %p118 = por %p116, %p117
    %s120 = sadd.s32 %s119, 1
    %p123 = scmp.eq.s32.totalorder %s17, 1
    %p124 = scmp.ne.s32.totalorder %s119, %s121
    %p125 = scmp.eq.s32.totalorder %s17, 0
    %p126 = por %p124, %p125
    %p127 = scmp.ne.s32.totalorder %s119, %s121
    %p128 = scmp.eq.s32.totalorder %s22, 1
    %p129 = por %p127, %p128
    %p130 = scmp.ne.s32.totalorder %s121, %s122
    %p131 = scmp.eq.s32.totalorder %s22, 0
    %p132 = por %p130, %p131
    %p133 = scmp.ne.s32.totalorder %s121, %s122
    %p134 = scmp.eq.s32.totalorder %s23, 1
    %p135 = por %p133, %p134
    %p137 = scmp.ne.s32.totalorder %s122, %s136
    %p138 = scmp.eq.s32.totalorder %s23, 0
    %p139 = por %p137, %p138
    %s141 = sadd.s32 %s140, 1
    %p144 = scmp.eq.s32.totalorder %s17, 1
    %p145 = scmp.ne.s32.totalorder %s140, %s142
    %p146 = scmp.eq.s32.totalorder %s17, 0
    %p147 = por %p145, %p146
    %p148 = scmp.ne.s32.totalorder %s140, %s142
    %p149 = scmp.eq.s32.totalorder %s22, 1
    %p150 = por %p148, %p149
    %p151 = scmp.ne.s32.totalorder %s142, %s143
    %p152 = scmp.eq.s32.totalorder %s22, 0
    %p153 = por %p151, %p152
    %p154 = scmp.ne.s32.totalorder %s142, %s143
    %p155 = scmp.eq.s32.totalorder %s23, 1
    %p156 = por %p154, %p155
    %p158 = scmp.ne.s32.totalorder %s143, %s157
    %p159 = scmp.eq.s32.totalorder %s23, 0
    %p160 = por %p158, %p159
    %s162 = sadd.s32 %s161, 1
    %p165 = scmp.eq.s32.totalorder %s17, 1
    %p166 = scmp.ne.s32.totalorder %s161, %s163
    %p167 = scmp.eq.s32.totalorder %s17, 0
    %p168 = por %p166, %p167
    %p169 = scmp.ne.s32.totalorder %s161, %s163
    %p170 = scmp.eq.s32.totalorder %s22, 1
    %p171 = por %p169, %p170
    %p172 = scmp.ne.s32.totalorder %s163, %s164
    %p173 = scmp.eq.s32.totalorder %s22, 0
    %p174 = por %p172, %p173
    %p175 = scmp.ne.s32.totalorder %s163, %s164
    %p176 = scmp.eq.s32.totalorder %s23, 1
    %p177 = por %p175, %p176
    %p179 = scmp.ne.s32.totalorder %s164, %s178
    %p180 = scmp.eq.s32.totalorder %s23, 0
    %p181 = por %p179, %p180
    %s183 = sadd.s32 %s182, 1
    %p186 = scmp.eq.s32.totalorder %s17, 1
    %p187 = scmp.ne.s32.totalorder %s182, %s184
    %p188 = scmp.eq.s32.totalorder %s17, 0
    %p189 = por %p187, %p188
    %p190 = scmp.ne.s32.totalorder %s182, %s184
    %p191 = scmp.eq.s32.totalorder %s22, 1
    %p192 = por %p190, %p191
    %p193 = scmp.ne.s32.totalorder %s184, %s185
    %p194 = scmp.eq.s32.totalorder %s22, 0
    %p195 = por %p193, %p194
    %p196 = scmp.ne.s32.totalorder %s184, %s185
    %p197 = scmp.eq.s32.totalorder %s23, 1
    %p198 = por %p196, %p197
    %p200 = scmp.ne.s32.totalorder %s185, %s199
    %p201 = scmp.eq.s32.totalorder %s23, 0
    %p202 = por %p200, %p201
    %s204 = sadd.s32 %s203, 1
    %p207 = scmp.eq.s32.totalorder %s17, 1
    %p208 = scmp.ne.s32.totalorder %s203, %s205
    %p209 = scmp.eq.s32.totalorder %s17, 0
    %p210 = por %p208, %p209
    %p211 = scmp.ne.s32.totalorder %s203, %s205
    %p212 = scmp.eq.s32.totalorder %s22, 1
    %p213 = por %p211, %p212
    %p214 = scmp.ne.s32.totalorder %s205, %s206
    %p215 = scmp.eq.s32.totalorder %s22, 0
    %p216 = por %p214, %p215
    %p217 = scmp.ne.s32.totalorder %s205, %s206
    %p218 = scmp.eq.s32.totalorder %s23, 1
    %p219 = por %p217, %p218
    %p221 = scmp.ne.s32.totalorder %s206, %s220
    %p222 = scmp.eq.s32.totalorder %s23, 0
    %p223 = por %p221, %p222
    %s225 = sadd.s32 %s224, 1
    %p228 = scmp.eq.s32.totalorder %s17, 1
    %p229 = scmp.ne.s32.totalorder %s224, %s226
    %p230 = scmp.eq.s32.totalorder %s17, 0
    %p231 = por %p229, %p230
    %p232 = scmp.ne.s32.totalorder %s224, %s226
    %p233 = scmp.eq.s32.totalorder %s22, 1
    %p234 = por %p232, %p233
    %p235 = scmp.ne.s32.totalorder %s226, %s227
    %p236 = scmp.eq.s32.totalorder %s22, 0
    %p237 = por %p235, %p236
    %p238 = scmp.ne.s32.totalorder %s226, %s227
    %p239 = scmp.eq.s32.totalorder %s23, 1
    %p240 = por %p238, %p239
    %p242 = scmp.ne.s32.totalorder %s227, %s241
    %p243 = scmp.eq.s32.totalorder %s23, 0
    %p244 = por %p242, %p243
    %s246 = sadd.s32 %s245, 1
    %p249 = scmp.eq.s32.totalorder %s17, 1
    %p250 = scmp.ne.s32.totalorder %s245, %s247
    %p251 = scmp.eq.s32.totalorder %s17, 0
    %p252 = por %p250, %p251
    %p253 = scmp.ne.s32.totalorder %s245, %s247
    %p254 = scmp.eq.s32.totalorder %s22, 1
    %p255 = por %p253, %p254
    %p256 = scmp.ne.s32.totalorder %s247, %s248
    %p257 = scmp.eq.s32.totalorder %s22, 0
    %p258 = por %p256, %p257
    %p259 = scmp.ne.s32.totalorder %s247, %s248
    %p260 = scmp.eq.s32.totalorder %s23, 1
    %p261 = por %p259, %p260
    %p263 = scmp.ne.s32.totalorder %s248, %s262
    %p264 = scmp.eq.s32.totalorder %s23, 0
    %p265 = por %p263, %p264
    %s266 = ssub.s32 %s17, %s24
    %p267 = scmp.eq.s32.totalorder %s266, 0
    %s269 = sadd.s32 %s268, 1
    %s270 = scalar_select %p267, %s268, %s269
    %p273 = pneg %p267
    %p274 = scmp.eq.s32.totalorder %s17, 1
    %p275 = por %p273, %p274
    %p276 = scmp.ne.s32.totalorder %s268, %s271
    %p277 = scmp.eq.s32.totalorder %s17, 0
    %p278 = por %p276, %p277
    %p279 = scmp.ne.s32.totalorder %s268, %s271
    %p280 = scmp.eq.s32.totalorder %s22, 1
    %p281 = por %p279, %p280
    %p282 = scmp.ne.s32.totalorder %s271, %s272
    %p283 = scmp.eq.s32.totalorder %s22, 0
    %p284 = por %p282, %p283
    %p285 = scmp.ne.s32.totalorder %s271, %s272
    %p286 = scmp.eq.s32.totalorder %s23, 1
    %p287 = por %p285, %p286
    %p289 = scmp.ne.s32.totalorder %s272, %s288
    %p290 = scmp.eq.s32.totalorder %s23, 0
    %p291 = por %p289, %p290
    %p292 = scmp.le.s32.totalorder 1, %s17
    %p293 = scmp.lt.s32.totalorder %s17, 3
    %p294 = pnand %p292, %p293
    %p295 = pneg %p294
    // Predicated region
    $region9: #{downsample_forward.1} parent=5 // pred_check
      _
    $region10: #{downsample_forward.1} parent=5 // pred_check_branch
      %297 = sbr.rel (%p294) target = $region12
    $region11: #{downsample_forward.1} parent=5 // pred_region
      %s298 = ssub.s32 %s17, 1
      // Predicated region
      $region13: #{downsample_forward.1} parent=11 // pred_check
        %p299 = pneg %p90
      $region14: #{downsample_forward.1} parent=11 // pred_check_branch
        %301 = sbr.rel (%p299) target = $region16
      $region15: #{downsample_forward.1} parent=11 // pred_region
        _
      $region16: #{downsample_forward.1} parent=11 // pred_fallthru
        _
      // Predicated region
      $region17: #{downsample_forward.1} parent=11 // pred_check
        %p302 = pneg %p111
      $region18: #{downsample_forward.1} parent=11 // pred_check_branch
        %304 = sbr.rel (%p302) target = $region20
      $region19: #{downsample_forward.1} parent=11 // pred_region
        _
      $region20: #{downsample_forward.1} parent=11 // pred_fallthru
        _
      // Predicated region
      $region21: #{downsample_forward.1} parent=11 // pred_check
        %p305 = pneg %p132
      $region22: #{downsample_forward.1} parent=11 // pred_check_branch
        %307 = sbr.rel (%p305) target = $region24
      $region23: #{downsample_forward.1} parent=11 // pred_region
        _
      $region24: #{downsample_forward.1} parent=11 // pred_fallthru
        _
      // Predicated region
      $region25: #{downsample_forward.1} parent=11 // pred_check
        %p308 = pneg %p153
      $region26: #{downsample_forward.1} parent=11 // pred_check_branch
        %310 = sbr.rel (%p308) target = $region28
      $region27: #{downsample_forward.1} parent=11 // pred_region
        _
      $region28: #{downsample_forward.1} parent=11 // pred_fallthru
        _
      // Predicated region
      $region29: #{downsample_forward.1} parent=11 // pred_check
        %p311 = pneg %p174
      $region30: #{downsample_forward.1} parent=11 // pred_check_branch
        %313 = sbr.rel (%p311) target = $region32
      $region31: #{downsample_forward.1} parent=11 // pred_region
        _
      $region32: #{downsample_forward.1} parent=11 // pred_fallthru
        _
      // Predicated region
      $region33: #{downsample_forward.1} parent=11 // pred_check
        %p314 = pneg %p195
      $region34: #{downsample_forward.1} parent=11 // pred_check_branch
        %316 = sbr.rel (%p314) target = $region36
      $region35: #{downsample_forward.1} parent=11 // pred_region
        _
      $region36: #{downsample_forward.1} parent=11 // pred_fallthru
        _
      // Predicated region
      $region37: #{downsample_forward.1} parent=11 // pred_check
        %p317 = pneg %p216
      $region38: #{downsample_forward.1} parent=11 // pred_check_branch
        %319 = sbr.rel (%p317) target = $region40
      $region39: #{downsample_forward.1} parent=11 // pred_region
        _
      $region40: #{downsample_forward.1} parent=11 // pred_fallthru
        _
      // Predicated region
      $region41: #{downsample_forward.1} parent=11 // pred_check
        %p320 = pneg %p237
      $region42: #{downsample_forward.1} parent=11 // pred_check_branch
        %322 = sbr.rel (%p320) target = $region44
      $region43: #{downsample_forward.1} parent=11 // pred_region
        _
      $region44: #{downsample_forward.1} parent=11 // pred_fallthru
        _
      // Predicated region
      $region45: #{downsample_forward.1} parent=11 // pred_check
        %p323 = pneg %p258
      $region46: #{downsample_forward.1} parent=11 // pred_check_branch
        %325 = sbr.rel (%p323) target = $region48
      $region47: #{downsample_forward.1} parent=11 // pred_region
        _
      $region48: #{downsample_forward.1} parent=11 // pred_fallthru
        _
    $region12: #{downsample_forward.1} parent=5 // pred_fallthru
      _
    %p326 = scmp.lt.s32.totalorder %s17, 2
    // Predicated region
    $region49: #{downsample_forward.1} parent=5 // pred_check
      %p327 = pneg %p326
    $region50: #{downsample_forward.1} parent=5 // pred_check_branch
      %329 = sbr.rel (%p327) target = $region52
    $region51: #{downsample_forward.1} parent=5 // pred_region
      // Predicated region
      $region53: #{downsample_forward.1} parent=51 // pred_check
        %p330 = pneg %p37
      $region54: #{downsample_forward.1} parent=51 // pred_check_branch
        %332 = sbr.rel (%p330) target = $region56
      $region55: #{downsample_forward.1} parent=51 // pred_region
        %p333 = scmp.lt.s32.totalorder %s17, 1
        %s334 = scalar_select %p333, %s17, 1
        %s335 = smul.addr %s334, 4
        %s336 = smul.addr %s335, 8
        %s337 = scalar_lea.vmem %s0, %s336
      $region56: #{downsample_forward.1} parent=51 // pred_fallthru
        _
      // Predicated region
      $region57: #{downsample_forward.1} parent=51 // pred_check
        %p338 = pneg %p63
      $region58: #{downsample_forward.1} parent=51 // pred_check_branch
        %340 = sbr.rel (%p338) target = $region60
      $region59: #{downsample_forward.1} parent=51 // pred_region
        %p341 = scmp.lt.s32.totalorder %s17, 1
        %s342 = scalar_select %p341, %s17, 1
        %s343 = smul.addr %s342, 18
        %s344 = smul.addr %s343, 8
        %s345 = scalar_lea.vmem %s1, %s344
      $region60: #{downsample_forward.1} parent=51 // pred_fallthru
        _
    $region52: #{downsample_forward.1} parent=5 // pred_fallthru
      _
    %p346 = scmp.le.s32.totalorder 1, %s17
    %p347 = scmp.lt.s32.totalorder %s17, 3
    %p348 = pnand %p346, %p347
    %p349 = pneg %p348
    // Predicated region
    $region61: #{downsample_forward.1} parent=5 // pred_check
      _
    $region62: #{downsample_forward.1} parent=5 // pred_check_branch
      %351 = sbr.rel (%p348) target = $region64
    $region63: #{downsample_forward.1} parent=5 // pred_region
      %s352 = ssub.s32 %s17, 1
      %p353 = scmp.lt.s32.totalorder %s22, 1
      %s354 = scalar_select %p353, %s22, 1
      %s355 = smul.addr %s354, 4
      %s356 = smul.addr %s355, 8
      %s357 = scalar_lea.vmem %s0, %s356
      %p358 = pneg %p43
      %p359 = pneg %p40
      %p360 = scmp.lt.s32.totalorder %s22, 1
      %s361 = scalar_select %p360, %s22, 1
      %s362 = smul.addr %s361, 18
      %s363 = smul.addr %s362, 8
      %s364 = scalar_lea.vmem %s1, %s363
      %p365 = pneg %p69
      %p366 = pneg %p66
      %p367 = pneg %p90
      %p368 = pneg %p87
      %p369 = pneg %p111
      %p370 = pneg %p108
      %p371 = pneg %p132
      %p372 = pneg %p129
      %p373 = pneg %p153
      %p374 = pneg %p150
      %p375 = pneg %p174
      %p376 = pneg %p171
      %p377 = pneg %p195
      %p378 = pneg %p192
      %p379 = pneg %p216
      %p380 = pneg %p213
      %p381 = pneg %p237
      %p382 = pneg %p234
      %p383 = pneg %p258
      %p384 = pneg %p255
      %p385 = pneg %p284
      %p386 = pneg %p281
      %p387 = scmp.lt.s32.totalorder %s22, 1
      %s388 = scalar_select %p387, %s22, 1
      %s389 = smul.addr %s388, 4
      %s390 = smul.addr %s389, 8
      %s391 = scalar_lea.vmem %s11, %s390
      %p392 = scmp.lt.s32.totalorder %s22, 1
      %s393 = scalar_select %p392, %s22, 1
      %s394 = smul.addr %s393, 4
      %s395 = smul.addr %s394, 8
      %s396 = scalar_lea.vmem %s0, %s395
      %p397 = scmp.lt.s32.totalorder %s22, 1
      %s398 = scalar_select %p397, %s22, 1
      %s399 = smul.addr %s398, 18
      %s400 = smul.addr %s399, 8
      %s401 = scalar_lea.vmem %s1, %s400
      %p402 = scmp.lt.s32.totalorder %s22, 1
      %s403 = scalar_select %p402, %s22, 1
      %s404 = smul.addr %s403, 4
      %s405 = smul.addr %s404, 8
      %s406 = scalar_lea.vmem %s11, %s405
      %v408 = vld [vmem:[%s396] sm:$0xff]
      %v409 = vld [vmem:[%s396 + $0x8] sm:$0xff]
      %v410 = vld [vmem:[%s396 + $0x10] sm:$0xff]
      %v411 = vld [vmem:[%s396 + $0x18] sm:$0xff]
      %v412 = vld [vmem:[%s401] sm:$0xff]
      %v413 = vld [vmem:[%s401 + $0x8] sm:$0xff]
      %v414 = vld [vmem:[%s401 + $0x10] sm:$0xff]
      %v415 = vld [vmem:[%s401 + $0x18] sm:$0xff]
      %v416 = vld [vmem:[%s401 + $0x20] sm:$0xff]
      %v417 = vld [vmem:[%s401 + $0x28] sm:$0xff]
      %v418 = vld [vmem:[%s401 + $0x30] sm:$0xff]
      %v419 = vld [vmem:[%s401 + $0x38] sm:$0xff]
      %v420 = vld [vmem:[%s401 + $0x40] sm:$0xff]
      %v421 = vld [vmem:[%s401 + $0x48] sm:$0xff]
      %v422 = vld [vmem:[%s401 + $0x50] sm:$0xff]
      %v423 = vld [vmem:[%s401 + $0x58] sm:$0xff]
      %v424 = vld [vmem:[%s401 + $0x60] sm:$0xff]
      %v425 = vld [vmem:[%s401 + $0x68] sm:$0xff]
      %v426 = vld [vmem:[%s401 + $0x70] sm:$0xff]
      %v427 = vld [vmem:[%s401 + $0x78] sm:$0xff]
      %v428 = vld [vmem:[%s401 + $0x80] sm:$0xff]
      %v429 = vld [vmem:[%s401 + $0x88] sm:$0xff]
      %v430 = vld [vmem:[%s2] sm:$0xff]
      %v431 = vld [vmem:[%s2 + $0x8] sm:$0xff]
      %v432 = vld [vmem:[%s2 + $0x10] sm:$0xff]
      %v433 = vld [vmem:[%s2 + $0x18] sm:$0xff]
      %v434 = vld [vmem:[%s2 + $0x20] sm:$0xff]
      %v435 = vld [vmem:[%s2 + $0x28] sm:$0xff]
      %v436 = vld [vmem:[%s2 + $0x30] sm:$0xff]
      %v437 = vld [vmem:[%s2 + $0x38] sm:$0xff]
      %v438 = vpack.c.bf16 %v431, %v430
      %v439 = vpack.c.bf16 %v433, %v432
      %v440 = vpack.c.bf16 %v435, %v434
      %v441 = vpack.c.bf16 %v437, %v436
      %v442 = vpack.c.bf16 %v410, %v408
      %v443 = vpack.c.bf16 %v411, %v409
      %vm444 = vcmask 130048
      %v446 = vsel %vm444, %v438, 0
      %v449 = vsel %vm444, %v439, 0
      %v452 = vsel %vm444, %v440, 0
      %v455 = vsel %vm444, %v441, 0
      %457 = vmatprep.subr.bf16.mxu0 %v443
      %458 = vmatpush1.bf16.msra.mxu0 %v442
      %459 = vmatprep.subr.bf16.mxu0 0
      %460 = vmatpush1.bf16.msra.mxu0 0
      %461 = vmatprep.subr.bf16.mxu0 0
      %462 = vmatpush1.bf16.msra.mxu0 0
      %463 = vmatprep.subr.bf16.mxu0 0
      %464 = vmatpush1.bf16.msra.mxu0 0
      %465 = vmatprep.subr.bf16.mxu0 0
      %466 = vmatpush1.bf16.msra.mxu0 0
      %467 = vmatprep.subr.bf16.mxu0 0
      %468 = vmatpush1.bf16.msra.mxu0 0
      %469 = vmatprep.subr.bf16.mxu0 0
      %470 = vmatpush1.bf16.msra.mxu0 0
      %471 = vmatprep.subr.bf16.mxu0 0
      %472 = vmatpush1.bf16.msra.mxu0 0
      %473 = vmatprep.subr.bf16.mxu0 0
      %474 = vmatpush1.bf16.msra.mxu0 0
      %475 = vmatprep.subr.bf16.mxu0 0
      %476 = vmatpush1.bf16.msra.mxu0 0
      %477 = vmatprep.subr.bf16.mxu0 0
      %478 = vmatpush1.bf16.msra.mxu0 0
      %479 = vmatprep.subr.bf16.mxu0 0
      %480 = vmatpush1.bf16.msra.mxu0 0
      %481 = vmatprep.subr.bf16.mxu0 0
      %482 = vmatpush1.bf16.msra.mxu0 0
      %483 = vmatprep.subr.bf16.mxu0 0
      %484 = vmatpush1.bf16.msra.mxu0 0
      %485 = vmatprep.subr.bf16.mxu0 0
      %486 = vmatpush1.bf16.msra.mxu0 0
      %487 = vmatprep.subr.bf16.mxu0 0
      %488 = vmatpush1.bf16.msra.mxu0 0
      %489 = vmatprep.mubr.bf16.mxu0 0
      %490 = vmatmul.mubr.bf16.gmra.mrb[0].mxu0 %v446
      %v491 = vpop.f32.mrb[0].mxu0
      %v492 = vadd.f32 0.0, %v491
      %v493 = vpop.f32.mrb[0].mxu0
      %v494 = vadd.f32 0.0, %v493
      %v495 = vpop.f32.mrb[0].mxu0
      %v496 = vadd.f32 0.0, %v495
      %v497 = vpop.f32.mrb[0].mxu0
      %v498 = vadd.f32 0.0, %v497
      %499 = vmatprep.mubr.bf16.mxu0 0
      %500 = vmatmul.mubr.bf16.gmra.mrb[0].mxu0 %v449
      %v501 = vpop.f32.mrb[0].mxu0
      %v502 = vadd.f32 0.0, %v501
      %v503 = vpop.f32.mrb[0].mxu0
      %v504 = vadd.f32 0.0, %v503
      %v505 = vpop.f32.mrb[0].mxu0
      %v506 = vadd.f32 0.0, %v505
      %v507 = vpop.f32.mrb[0].mxu0
      %v508 = vadd.f32 0.0, %v507
      %509 = vmatprep.mubr.bf16.mxu0 0
      %510 = vmatmul.mubr.bf16.gmra.mrb[0].mxu0 %v452
      %v511 = vpop.f32.mrb[0].mxu0
      %v512 = vadd.f32 0.0, %v511
      %v513 = vpop.f32.mrb[0].mxu0
      %v514 = vadd.f32 0.0, %v513
      %v515 = vpop.f32.mrb[0].mxu0
      %v516 = vadd.f32 0.0, %v515
      %v517 = vpop.f32.mrb[0].mxu0
      %v518 = vadd.f32 0.0, %v517
      %519 = vmatprep.mubr.bf16.mxu0 0
      %520 = vmatmul.mubr.bf16.gmra.mrb[0].mxu0 %v455
      %v521 = vpop.f32.mrb[0].mxu0
      %v522 = vadd.f32 0.0, %v521
      %v523 = vpop.f32.mrb[0].mxu0
      %v524 = vadd.f32 0.0, %v523
      %v525 = vpop.f32.mrb[0].mxu0
      %v526 = vadd.f32 0.0, %v525
      %v527 = vpop.f32.mrb[0].mxu0
      %v528 = vadd.f32 0.0, %v527
      %529 = vdwg.mxu0
      %v530 = vld [vmem:[%s3] sm:$0xff]
      %v531 = vld [vmem:[%s3 + $0x8] sm:$0xff]
      %v532 = vld [vmem:[%s3 + $0x10] sm:$0xff]
      %v533 = vld [vmem:[%s3 + $0x18] sm:$0xff]
      %v534 = vpack.c.bf16 %v532, %v530
      %v535 = vpack.c.bf16 %v533, %v531
      %v536 = vpack.c.bf16 %v413, %v412
      %v537 = vpack.c.bf16 %v415, %v414
      %v538 = vpack.c.bf16 %v417, %v416
      %v539 = vpack.c.bf16 %v419, %v418
      %v540 = vpack.c.bf16 %v421, %v420
      %v541 = vpack.c.bf16 %v423, %v422
      %v542 = vpack.c.bf16 %v425, %v424
      %v543 = vpack.c.bf16 %v427, %v426
      %v544 = vpack.c.bf16 %v429, %v428
      %v546 = vsel %vm444, %v535, 0
      %548 = vmatprep.subr.bf16.mxu0 0
      %549 = vmatpush1.bf16.msra.mxu0 %v536
      %550 = vmatprep.subr.bf16.mxu0 0
      %551 = vmatpush1.bf16.msra.mxu0 %v537
      %552 = vmatprep.subr.bf16.mxu0 0
      %553 = vmatpush1.bf16.msra.mxu0 %v538
      %554 = vmatprep.subr.bf16.mxu0 0
      %555 = vmatpush1.bf16.msra.mxu0 %v539
      %556 = vmatprep.subr.bf16.mxu0 0
      %557 = vmatpush1.bf16.msra.mxu0 %v540
      %558 = vmatprep.subr.bf16.mxu0 0
      %559 = vmatpush1.bf16.msra.mxu0 %v541
      %560 = vmatprep.subr.bf16.mxu0 0
      %561 = vmatpush1.bf16.msra.mxu0 %v542
      %562 = vmatprep.subr.bf16.mxu0 0
      %563 = vmatpush1.bf16.msra.mxu0 %v543
      %564 = vmatprep.subr.bf16.mxu0 0
      %565 = vmatpush1.bf16.msra.mxu0 %v544
      %566 = vmatprep.subr.bf16.mxu0 0
      %567 = vmatpush1.bf16.msra.mxu0 0
      %568 = vmatprep.subr.bf16.mxu0 0
      %569 = vmatpush1.bf16.msra.mxu0 0
      %570 = vmatprep.subr.bf16.mxu0 0
      %571 = vmatpush1.bf16.msra.mxu0 0
      %572 = vmatprep.subr.bf16.mxu0 0
      %573 = vmatpush1.bf16.msra.mxu0 0
      %574 = vmatprep.subr.bf16.mxu0 0
      %575 = vmatpush1.bf16.msra.mxu0 0
      %576 = vmatprep.subr.bf16.mxu0 0
      %577 = vmatpush1.bf16.msra.mxu0 0
      %578 = vmatprep.subr.bf16.mxu0 0
      %579 = vmatpush1.bf16.msra.mxu0 0
      %580 = vmatprep.mubr.bf16.mxu0 %v546
      %581 = vmatmul.mubr.bf16.gmra.mrb[0].mxu0 %v534
      %v582 = vpop.f32.mrb[0].mxu0
      %v583 = vadd.f32 0.0, %v582
      %v584 = vpop.f32.mrb[0].mxu0
      %v585 = vpop.f32.mrb[0].mxu0
      %v586 = vadd.f32 0.0, %v585
      %v587 = vpop.f32.mrb[0].mxu0
      %588 = vdwg.mxu0
      %vm589 = vcmask 523264
      %v590 = vsel %vm589, %v583, 0.0
      %v591 = vsel %vm589, %v586, 0.0
      %v592 = vadd.f32 %v590, %v591
      %v593 = vrot.slane %v592, 4
      %v594 = vadd.f32 %v592, %v593
      %v595 = vrot.slane %v594, 2
      %v596 = vadd.f32 %v594, %v595
      %v597 = vrot.slane %v596, 1
      %v598 = vadd.f32 %v596, %v597
      %v599 = vrcp.pop 16.0
      %v600 = vmul.f32 %v598, %v599
      %v601 = vsub.f32 %v583, %v600
      %v602 = vsub.f32 %v586, %v600
      %v603 = vmul.f32 %v601, %v601
      %v604 = vmul.f32 %v602, %v602
      %v605 = vsel %vm589, %v603, 0.0
      %v606 = vsel %vm589, %v604, 0.0
      %v607 = vadd.f32 %v605, %v606
      %v608 = vrot.slane %v607, 4
      %v609 = vadd.f32 %v607, %v608
      %v610 = vrot.slane %v609, 2
      %v611 = vadd.f32 %v609, %v610
      %v612 = vrot.slane %v611, 1
      %v613 = vadd.f32 %v611, %v612
      %v614 = vmul.f32 %v613, %v599
      %v615 = vadd.f32 %v614, 1e-06
      %v616 = vrsqrt.pop %v615
      %v617 = vmul.f32 %v601, %v616
      %v618 = vmul.f32 %v602, %v616
      %v619 = vld [vmem:[%s4] sm:$0xff]
      %v620 = vld [vmem:[%s4 + $0x8] sm:$0xff]
      %622 = vset.pattern.permute.xlu0 0
      %623 = vperm.xlu0 %622, %v619
      %v624 = vpop.permute.xlu0 %623
      %627 = vset.pattern.permute.xlu0 0
      %628 = vperm.xlu0 %627, %v620
      %v629 = vpop.permute.xlu0 %628
      %v631 = vmul.f32 %v617, %v624
      %v632 = vmul.f32 %v618, %v629
      %v633 = vld [vmem:[%s5] sm:$0xff]
      %v634 = vld [vmem:[%s5 + $0x8] sm:$0xff]
      %636 = vset.pattern.permute.xlu0 0
      %637 = vperm.xlu0 %636, %v633
      %v638 = vpop.permute.xlu0 %637
      %641 = vset.pattern.permute.xlu0 0
      %642 = vperm.xlu0 %641, %v634
      %v643 = vpop.permute.xlu0 %642
      %v645 = vadd.f32 %v631, %v638
      %v646 = vadd.f32 %v632, %v643
      %v647 = vld [vmem:[%s6] sm:$0xff]
      %v648 = vld [vmem:[%s6 + $0x8] sm:$0xff]
      %v649 = vld [vmem:[%s6 + $0x10] sm:$0xff]
      %v650 = vld [vmem:[%s6 + $0x18] sm:$0xff]
      %v651 = vpack.c.bf16 %v648, %v647
      %v652 = vpack.c.bf16 %v650, %v649
      %v653 = vpack.c.bf16 %v646, %v645
      %v655 = vsel %vm444, %v651, 0
      %v658 = vsel %vm444, %v652, 0
      %660 = vmatprep.subr.bf16.mxu0 0
      %661 = vmatpush1.bf16.msra.mxu0 %v653
      %662 = vmatprep.subr.bf16.mxu0 0
      %663 = vmatpush1.bf16.msra.mxu0 0
      %664 = vmatprep.subr.bf16.mxu0 0
      %665 = vmatpush1.bf16.msra.mxu0 0
      %666 = vmatprep.subr.bf16.mxu0 0
      %667 = vmatpush1.bf16.msra.mxu0 0
      %668 = vmatprep.subr.bf16.mxu0 0
      %669 = vmatpush1.bf16.msra.mxu0 0
      %670 = vmatprep.subr.bf16.mxu0 0
      %671 = vmatpush1.bf16.msra.mxu0 0
      %672 = vmatprep.subr.bf16.mxu0 0
      %673 = vmatpush1.bf16.msra.mxu0 0
      %674 = vmatprep.subr.bf16.mxu0 0
      %675 = vmatpush1.bf16.msra.mxu0 0
      %676 = vmatprep.subr.bf16.mxu0 0
      %677 = vmatpush1.bf16.msra.mxu0 0
      %678 = vmatprep.subr.bf16.mxu0 0
      %679 = vmatpush1.bf16.msra.mxu0 0
      %680 = vmatprep.subr.bf16.mxu0 0
      %681 = vmatpush1.bf16.msra.mxu0 0
      %682 = vmatprep.subr.bf16.mxu0 0
      %683 = vmatpush1.bf16.msra.mxu0 0
      %684 = vmatprep.subr.bf16.mxu0 0
      %685 = vmatpush1.bf16.msra.mxu0 0
      %686 = vmatprep.subr.bf16.mxu0 0
      %687 = vmatpush1.bf16.msra.mxu0 0
      %688 = vmatprep.subr.bf16.mxu0 0
      %689 = vmatpush1.bf16.msra.mxu0 0
      %690 = vmatprep.subr.bf16.mxu0 0
      %691 = vmatpush1.bf16.msra.mxu0 0
      %692 = vmatprep.mubr.bf16.mxu0 0
      %693 = vmatmul.mubr.bf16.gmra.mrb[0].mxu0 %v655
      %v694 = vpop.f32.mrb[0].mxu0
      %v695 = vadd.f32 0.0, %v694
      %v696 = vpop.f32.mrb[0].mxu0
      %v697 = vpop.f32.mrb[0].mxu0
      %v698 = vadd.f32 0.0, %v697
      %v699 = vpop.f32.mrb[0].mxu0
      %700 = vmatprep.mubr.bf16.mxu0 0
      %701 = vmatmul.mubr.bf16.gmra.mrb[0].mxu0 %v658
      %v702 = vpop.f32.mrb[0].mxu0
      %v703 = vadd.f32 0.0, %v702
      %v704 = vpop.f32.mrb[0].mxu0
      %v705 = vpop.f32.mrb[0].mxu0
      %v706 = vadd.f32 0.0, %v705
      %v707 = vpop.f32.mrb[0].mxu0
      %708 = vdwg.mxu0
      %v709 = vpack.c.bf16 %v698, %v695
      %v710 = vpack.c.bf16 %v706, %v703
      %v711 = vld [vmem:[%s8] sm:$0xff]
      %v712 = vld [vmem:[%s8 + $0x8] sm:$0xff]
      %v713 = vld [vmem:[%s8 + $0x10] sm:$0xff]
      %v714 = vld [vmem:[%s8 + $0x18] sm:$0xff]
      %v715 = vld [vmem:[%s8 + $0x20] sm:$0xff]
      %v716 = vld [vmem:[%s8 + $0x28] sm:$0xff]
      %v717 = vld [vmem:[%s8 + $0x30] sm:$0xff]
      %v718 = vld [vmem:[%s8 + $0x38] sm:$0xff]
      %v719 = vpack.c.bf16 %v712, %v711
      %v720 = vpack.c.bf16 %v714, %v713
      %v721 = vpack.c.bf16 %v716, %v715
      %v722 = vpack.c.bf16 %v718, %v717
      %v724 = vsel %vm589, %v709, 0
      %v727 = vsel %vm589, %v710, 0
      %729 = vmatprep.subr.bf16.mxu0 0
      %730 = vmatpush1.bf16.msra.mxu0 %v719
      %731 = vmatprep.subr.bf16.mxu0 0
      %732 = vmatpush1.bf16.msra.mxu0 %v720
      %733 = vmatprep.subr.bf16.mxu0 0
      %734 = vmatpush1.bf16.msra.mxu0 %v721
      %735 = vmatprep.subr.bf16.mxu0 0
      %736 = vmatpush1.bf16.msra.mxu0 %v722
      %737 = vmatprep.subr.bf16.mxu0 0
      %738 = vmatpush1.bf16.msra.mxu0 0
      %739 = vmatprep.subr.bf16.mxu0 0
      %740 = vmatpush1.bf16.msra.mxu0 0
      %741 = vmatprep.subr.bf16.mxu0 0
      %742 = vmatpush1.bf16.msra.mxu0 0
      %743 = vmatprep.subr.bf16.mxu0 0
      %744 = vmatpush1.bf16.msra.mxu0 0
      %745 = vmatprep.subr.bf16.mxu0 0
      %746 = vmatpush1.bf16.msra.mxu0 0
      %747 = vmatprep.subr.bf16.mxu0 0
      %748 = vmatpush1.bf16.msra.mxu0 0
      %749 = vmatprep.subr.bf16.mxu0 0
      %750 = vmatpush1.bf16.msra.mxu0 0
      %751 = vmatprep.subr.bf16.mxu0 0
      %752 = vmatpush1.bf16.msra.mxu0 0
      %753 = vmatprep.subr.bf16.mxu0 0
      %754 = vmatpush1.bf16.msra.mxu0 0
      %755 = vmatprep.subr.bf16.mxu0 0
      %756 = vmatpush1.bf16.msra.mxu0 0
      %757 = vmatprep.subr.bf16.mxu0 0
      %758 = vmatpush1.bf16.msra.mxu0 0
      %759 = vmatprep.subr.bf16.mxu0 0
      %760 = vmatpush1.bf16.msra.mxu0 0
      %761 = vmatprep.mubr.bf16.mxu0 0
      %762 = vmatmul.mubr.bf16.gmra.mrb[0].mxu0 %v724
      %v763 = vpop.f32.mrb[0].mxu0
      %v764 = vadd.f32 0.0, %v763
      %v765 = vpop.f32.mrb[0].mxu0
      %v766 = vpop.f32.mrb[0].mxu0
      %v767 = vadd.f32 0.0, %v766
      %v768 = vpop.f32.mrb[0].mxu0
      %769 = vmatprep.mubr.bf16.mxu0 0
      %770 = vmatmul.mubr.bf16.gmra.mrb[0].mxu0 %v727
      %v771 = vpop.f32.mrb[0].mxu0
      %v772 = vadd.f32 0.0, %v771
      %v773 = vpop.f32.mrb[0].mxu0
      %v774 = vpop.f32.mrb[0].mxu0
      %v775 = vadd.f32 0.0, %v774
      %v776 = vpop.f32.mrb[0].mxu0
      %777 = vdwg.mxu0
      %v778 = vld [vmem:[%s7] sm:$0xff]
      %v779 = vld [vmem:[%s7 + $0x8] sm:$0xff]
      %v780 = vld [vmem:[%s7 + $0x10] sm:$0xff]
      %v781 = vld [vmem:[%s7 + $0x18] sm:$0xff]
      %v782 = vpack.c.bf16 %v779, %v778
      %v783 = vpack.c.bf16 %v781, %v780
      %v784 = vpack.c.bf16 %v767, %v764
      %v785 = vpack.c.bf16 %v775, %v772
      %s786 = scalar_lea.vmem %s8, 64
      %v787 = vld [vmem:[%s786] sm:$0xff]
      %v788 = vld [vmem:[%s786 + $0x8] sm:$0xff]
      %v789 = vld [vmem:[%s786 + $0x10] sm:$0xff]
      %v790 = vld [vmem:[%s786 + $0x18] sm:$0xff]
      %v791 = vld [vmem:[%s786 + $0x20] sm:$0xff]
      %v792 = vld [vmem:[%s786 + $0x28] sm:$0xff]
      %v793 = vld [vmem:[%s786 + $0x30] sm:$0xff]
      %v794 = vld [vmem:[%s786 + $0x38] sm:$0xff]
      %v795 = vpack.c.bf16 %v788, %v787
      %v796 = vpack.c.bf16 %v790, %v789
      %v797 = vpack.c.bf16 %v792, %v791
      %v798 = vpack.c.bf16 %v794, %v793
      %799 = vmatprep.subr.bf16.mxu0 0
      %800 = vmatpush1.bf16.msra.mxu0 %v795
      %801 = vmatprep.subr.bf16.mxu0 0
      %802 = vmatpush1.bf16.msra.mxu0 %v796
      %803 = vmatprep.subr.bf16.mxu0 0
      %804 = vmatpush1.bf16.msra.mxu0 %v797
      %805 = vmatprep.subr.bf16.mxu0 0
      %806 = vmatpush1.bf16.msra.mxu0 %v798
      %807 = vmatprep.subr.bf16.mxu0 0
      %808 = vmatpush1.bf16.msra.mxu0 0
      %809 = vmatprep.subr.bf16.mxu0 0
      %810 = vmatpush1.bf16.msra.mxu0 0
      %811 = vmatprep.subr.bf16.mxu0 0
      %812 = vmatpush1.bf16.msra.mxu0 0
      %813 = vmatprep.subr.bf16.mxu0 0
      %814 = vmatpush1.bf16.msra.mxu0 0
      %815 = vmatprep.subr.bf16.mxu0 0
      %816 = vmatpush1.bf16.msra.mxu0 0
      %817 = vmatprep.subr.bf16.mxu0 0
      %818 = vmatpush1.bf16.msra.mxu0 0
      %819 = vmatprep.subr.bf16.mxu0 0
      %820 = vmatpush1.bf16.msra.mxu0 0
      %821 = vmatprep.subr.bf16.mxu0 0
      %822 = vmatpush1.bf16.msra.mxu0 0
      %823 = vmatprep.subr.bf16.mxu0 0
      %824 = vmatpush1.bf16.msra.mxu0 0
      %825 = vmatprep.subr.bf16.mxu0 0
      %826 = vmatpush1.bf16.msra.mxu0 0
      %827 = vmatprep.subr.bf16.mxu0 0
      %828 = vmatpush1.bf16.msra.mxu0 0
      %829 = vmatprep.subr.bf16.mxu0 0
      %830 = vmatpush1.bf16.msra.mxu0 0
      %831 = vmatprep.mubr.bf16.mxu0 0
      %832 = vmatmul.mubr.bf16.gmra.mrb[0].mxu0 %v724
      %v833 = vpop.f32.mrb[0].mxu0
      %v834 = vadd.f32 0.0, %v833
      %v835 = vpop.f32.mrb[0].mxu0
      %v836 = vpop.f32.mrb[0].mxu0
      %v837 = vadd.f32 0.0, %v836
      %v838 = vpop.f32.mrb[0].mxu0
      %839 = vmatprep.mubr.bf16.mxu0 0
      %840 = vmatmul.mubr.bf16.gmra.mrb[0].mxu0 %v727
      %v841 = vpop.f32.mrb[0].mxu0
      %v842 = vadd.f32 0.0, %v841
      %v843 = vpop.f32.mrb[0].mxu0
      %v844 = vpop.f32.mrb[0].mxu0
      %v845 = vadd.f32 0.0, %v844
      %v846 = vpop.f32.mrb[0].mxu0
      %847 = vdwg.mxu0
      %s848 = scalar_lea.vmem %s7, 32
      %v849 = vld [vmem:[%s848] sm:$0xff]
      %v850 = vld [vmem:[%s848 + $0x8] sm:$0xff]
      %v851 = vld [vmem:[%s848 + $0x10] sm:$0xff]
      %v852 = vld [vmem:[%s848 + $0x18] sm:$0xff]
      %v853 = vpack.c.bf16 %v850, %v849
      %v854 = vpack.c.bf16 %v852, %v851
      %v855 = vpack.c.bf16 %v837, %v834
      %v856 = vpack.c.bf16 %v845, %v842
      %vm857 = vcmask 261120
      %v859 = vsel %vm857, %v853, 0
      %v862 = vsel %vm857, %v854, 0
      %864 = vmatprep.subr.bf16.mxu0 0
      %865 = vmatpush1.bf16.msra.mxu0 %v855
      %866 = vmatprep.subr.bf16.mxu0 0
      %867 = vmatpush1.bf16.msra.mxu0 %v856
      %868 = vmatprep.subr.bf16.mxu0 0
      %869 = vmatpush1.bf16.msra.mxu0 0
      %870 = vmatprep.subr.bf16.mxu0 0
      %871 = vmatpush1.bf16.msra.mxu0 0
      %872 = vmatprep.subr.bf16.mxu0 0
      %873 = vmatpush1.bf16.msra.mxu0 0
      %874 = vmatprep.subr.bf16.mxu0 0
      %875 = vmatpush1.bf16.msra.mxu0 0
      %876 = vmatprep.subr.bf16.mxu0 0
      %877 = vmatpush1.bf16.msra.mxu0 0
      %878 = vmatprep.subr.bf16.mxu0 0
      %879 = vmatpush1.bf16.msra.mxu0 0
      %880 = vmatprep.subr.bf16.mxu0 0
      %881 = vmatpush1.bf16.msra.mxu0 0
      %882 = vmatprep.subr.bf16.mxu0 0
      %883 = vmatpush1.bf16.msra.mxu0 0
      %884 = vmatprep.subr.bf16.mxu0 0
      %885 = vmatpush1.bf16.msra.mxu0 0
      %886 = vmatprep.subr.bf16.mxu0 0
      %887 = vmatpush1.bf16.msra.mxu0 0
      %888 = vmatprep.subr.bf16.mxu0 0
      %889 = vmatpush1.bf16.msra.mxu0 0
      %890 = vmatprep.subr.bf16.mxu0 0
      %891 = vmatpush1.bf16.msra.mxu0 0
      %892 = vmatprep.subr.bf16.mxu0 0
      %893 = vmatpush1.bf16.msra.mxu0 0
      %894 = vmatprep.subr.bf16.mxu0 0
      %895 = vmatpush1.bf16.msra.mxu0 0
      %896 = vmatprep.mubr.bf16.mxu0 0
      %897 = vmatmul.mubr.bf16.gmra.mrb[0].mxu0 %v859
      %v898 = vpop.f32.mrb[0].mxu0
      %v899 = vadd.f32 0.0, %v898
      %v900 = vpop.f32.mrb[0].mxu0
      %v901 = vpop.f32.mrb[0].mxu0
      %v902 = vadd.f32 0.0, %v901
      %v903 = vpop.f32.mrb[0].mxu0
      %904 = vmatprep.mubr.bf16.mxu0 0
      %905 = vmatmul.mubr.bf16.gmra.mrb[0].mxu0 %v862
      %v906 = vpop.f32.mrb[0].mxu0
      %v907 = vadd.f32 0.0, %v906
      %v908 = vpop.f32.mrb[0].mxu0
      %v909 = vpop.f32.mrb[0].mxu0
      %v910 = vadd.f32 0.0, %v909
      %v911 = vpop.f32.mrb[0].mxu0
      %912 = vdwg.mxu0
      %v914 = vsel %vm857, %v782, 0
      %v917 = vsel %vm857, %v783, 0
      %919 = vmatprep.subr.bf16.mxu0 0
      %920 = vmatpush1.bf16.msra.mxu0 %v784
      %921 = vmatprep.subr.bf16.mxu0 0
      %922 = vmatpush1.bf16.msra.mxu0 %v785
      %923 = vmatprep.subr.bf16.mxu0 0
      %924 = vmatpush1.bf16.msra.mxu0 0
      %925 = vmatprep.subr.bf16.mxu0 0
      %926 = vmatpush1.bf16.msra.mxu0 0
      %927 = vmatprep.subr.bf16.mxu0 0
      %928 = vmatpush1.bf16.msra.mxu0 0
      %929 = vmatprep.subr.bf16.mxu0 0
      %930 = vmatpush1.bf16.msra.mxu0 0
      %931 = vmatprep.subr.bf16.mxu0 0
      %932 = vmatpush1.bf16.msra.mxu0 0
      %933 = vmatprep.subr.bf16.mxu0 0
      %934 = vmatpush1.bf16.msra.mxu0 0
      %935 = vmatprep.subr.bf16.mxu0 0
      %936 = vmatpush1.bf16.msra.mxu0 0
      %937 = vmatprep.subr.bf16.mxu0 0
      %938 = vmatpush1.bf16.msra.mxu0 0
      %939 = vmatprep.subr.bf16.mxu0 0
      %940 = vmatpush1.bf16.msra.mxu0 0
      %941 = vmatprep.subr.bf16.mxu0 0
      %942 = vmatpush1.bf16.msra.mxu0 0
      %943 = vmatprep.subr.bf16.mxu0 0
      %944 = vmatpush1.bf16.msra.mxu0 0
      %945 = vmatprep.subr.bf16.mxu0 0
      %946 = vmatpush1.bf16.msra.mxu0 0
      %947 = vmatprep.subr.bf16.mxu0 0
      %948 = vmatpush1.bf16.msra.mxu0 0
      %949 = vmatprep.subr.bf16.mxu0 0
      %950 = vmatpush1.bf16.msra.mxu0 0
      %951 = vmatprep.mubr.bf16.mxu0 0
      %952 = vmatmul.mubr.bf16.gmra.mrb[0].mxu0 %v914
      %v953 = vpop.f32.mrb[0].mxu0
      %v954 = vadd.f32 %v899, %v953
      %v955 = vpop.f32.mrb[0].mxu0
      %v956 = vpop.f32.mrb[0].mxu0
      %v957 = vadd.f32 %v902, %v956
      %v958 = vpop.f32.mrb[0].mxu0
      %959 = vmatprep.mubr.bf16.mxu0 0
      %960 = vmatmul.mubr.bf16.gmra.mrb[0].mxu0 %v917
      %v961 = vpop.f32.mrb[0].mxu0
      %v962 = vadd.f32 %v907, %v961
      %v963 = vpop.f32.mrb[0].mxu0
      %v964 = vpop.f32.mrb[0].mxu0
      %v965 = vadd.f32 %v910, %v964
      %v966 = vpop.f32.mrb[0].mxu0
      %967 = vdwg.mxu0
      %s968 = scalar_lea.vmem %s8, 128
      %v969 = vld [vmem:[%s968] sm:$0xff]
      %v970 = vld [vmem:[%s968 + $0x8] sm:$0xff]
      %v971 = vld [vmem:[%s968 + $0x10] sm:$0xff]
      %v972 = vld [vmem:[%s968 + $0x18] sm:$0xff]
      %v973 = vld [vmem:[%s968 + $0x20] sm:$0xff]
      %v974 = vld [vmem:[%s968 + $0x28] sm:$0xff]
      %v975 = vld [vmem:[%s968 + $0x30] sm:$0xff]
      %v976 = vld [vmem:[%s968 + $0x38] sm:$0xff]
      %v977 = vpack.c.bf16 %v970, %v969
      %v978 = vpack.c.bf16 %v972, %v971
      %v979 = vpack.c.bf16 %v974, %v973
      %v980 = vpack.c.bf16 %v976, %v975
      %981 = vmatprep.subr.bf16.mxu0 0
      %982 = vmatpush1.bf16.msra.mxu0 %v977
      %983 = vmatprep.subr.bf16.mxu0 0
      %984 = vmatpush1.bf16.msra.mxu0 %v978
      %985 = vmatprep.subr.bf16.mxu0 0
      %986 = vmatpush1.bf16.msra.mxu0 %v979
      %987 = vmatprep.subr.bf16.mxu0 0
      %988 = vmatpush1.bf16.msra.mxu0 %v980
      %989 = vmatprep.subr.bf16.mxu0 0
      %990 = vmatpush1.bf16.msra.mxu0 0
      %991 = vmatprep.subr.bf16.mxu0 0
      %992 = vmatpush1.bf16.msra.mxu0 0
      %993 = vmatprep.subr.bf16.mxu0 0
      %994 = vmatpush1.bf16.msra.mxu0 0
      %995 = vmatprep.subr.bf16.mxu0 0
      %996 = vmatpush1.bf16.msra.mxu0 0
      %997 = vmatprep.subr.bf16.mxu0 0
      %998 = vmatpush1.bf16.msra.mxu0 0
      %999 = vmatprep.subr.bf16.mxu0 0
      %1000 = vmatpush1.bf16.msra.mxu0 0
      %1001 = vmatprep.subr.bf16.mxu0 0
      %1002 = vmatpush1.bf16.msra.mxu0 0
      %1003 = vmatprep.subr.bf16.mxu0 0
      %1004 = vmatpush1.bf16.msra.mxu0 0
      %1005 = vmatprep.subr.bf16.mxu0 0
      %1006 = vmatpush1.bf16.msra.mxu0 0
      %1007 = vmatprep.subr.bf16.mxu0 0
      %1008 = vmatpush1.bf16.msra.mxu0 0
      %1009 = vmatprep.subr.bf16.mxu0 0
      %1010 = vmatpush1.bf16.msra.mxu0 0
      %1011 = vmatprep.subr.bf16.mxu0 0
      %1012 = vmatpush1.bf16.msra.mxu0 0
      %1013 = vmatprep.mubr.bf16.mxu0 0
      %1014 = vmatmul.mubr.bf16.gmra.mrb[0].mxu0 %v724
      %v1015 = vpop.f32.mrb[0].mxu0
      %v1016 = vadd.f32 0.0, %v1015
      %v1017 = vpop.f32.mrb[0].mxu0
      %v1018 = vpop.f32.mrb[0].mxu0
      %v1019 = vadd.f32 0.0, %v1018
      %v1020 = vpop.f32.mrb[0].mxu0
      %1021 = vmatprep.mubr.bf16.mxu0 0
      %1022 = vmatmul.mubr.bf16.gmra.mrb[0].mxu0 %v727
      %v1023 = vpop.f32.mrb[0].mxu0
      %v1024 = vadd.f32 0.0, %v1023
      %v1025 = vpop.f32.mrb[0].mxu0
      %v1026 = vpop.f32.mrb[0].mxu0
      %v1027 = vadd.f32 0.0, %v1026
      %v1028 = vpop.f32.mrb[0].mxu0
      %1029 = vdwg.mxu0
      %s1030 = scalar_lea.vmem %s7, 64
      %v1031 = vld [vmem:[%s1030] sm:$0xff]
      %v1032 = vld [vmem:[%s1030 + $0x8] sm:$0xff]
      %v1033 = vld [vmem:[%s1030 + $0x10] sm:$0xff]
      %v1034 = vld [vmem:[%s1030 + $0x18] sm:$0xff]
      %v1035 = vpack.c.bf16 %v1032, %v1031
      %v1036 = vpack.c.bf16 %v1034, %v1033
      %v1037 = vpack.c.bf16 %v1019, %v1016
      %v1038 = vpack.c.bf16 %v1027, %v1024
      %v1040 = vsel %vm857, %v1035, 0
      %v1043 = vsel %vm857, %v1036, 0
      %1045 = vmatprep.subr.bf16.mxu0 0
      %1046 = vmatpush1.bf16.msra.mxu0 %v1037
      %1047 = vmatprep.subr.bf16.mxu0 0
      %1048 = vmatpush1.bf16.msra.mxu0 %v1038
      %1049 = vmatprep.subr.bf16.mxu0 0
      %1050 = vmatpush1.bf16.msra.mxu0 0
      %1051 = vmatprep.subr.bf16.mxu0 0
      %1052 = vmatpush1.bf16.msra.mxu0 0
      %1053 = vmatprep.subr.bf16.mxu0 0
      %1054 = vmatpush1.bf16.msra.mxu0 0
      %1055 = vmatprep.subr.bf16.mxu0 0
      %1056 = vmatpush1.bf16.msra.mxu0 0
      %1057 = vmatprep.subr.bf16.mxu0 0
      %1058 = vmatpush1.bf16.msra.mxu0 0
      %1059 = vmatprep.subr.bf16.mxu0 0
      %1060 = vmatpush1.bf16.msra.mxu0 0
      %1061 = vmatprep.subr.bf16.mxu0 0
      %1062 = vmatpush1.bf16.msra.mxu0 0
      %1063 = vmatprep.subr.bf16.mxu0 0
      %1064 = vmatpush1.bf16.msra.mxu0 0
      %1065 = vmatprep.subr.bf16.mxu0 0
      %1066 = vmatpush1.bf16.msra.mxu0 0
      %1067 = vmatprep.subr.bf16.mxu0 0
      %1068 = vmatpush1.bf16.msra.mxu0 0
      %1069 = vmatprep.subr.bf16.mxu0 0
      %1070 = vmatpush1.bf16.msra.mxu0 0
      %1071 = vmatprep.subr.bf16.mxu0 0
      %1072 = vmatpush1.bf16.msra.mxu0 0
      %1073 = vmatprep.subr.bf16.mxu0 0
      %1074 = vmatpush1.bf16.msra.mxu0 0
      %1075 = vmatprep.subr.bf16.mxu0 0
      %1076 = vmatpush1.bf16.msra.mxu0 0
      %1077 = vmatprep.mubr.bf16.mxu0 0
      %1078 = vmatmul.mubr.bf16.gmra.mrb[0].mxu0 %v1040
      %v1079 = vpop.f32.mrb[0].mxu0
      %v1080 = vadd.f32 0.0, %v1079
      %v1081 = vpop.f32.mrb[0].mxu0
      %v1082 = vpop.f32.mrb[0].mxu0
      %v1083 = vadd.f32 0.0, %v1082
      %v1084 = vpop.f32.mrb[0].mxu0
      %1085 = vmatprep.mubr.bf16.mxu0 0
      %1086 = vmatmul.mubr.bf16.gmra.mrb[0].mxu0 %v1043
      %v1087 = vpop.f32.mrb[0].mxu0
      %v1088 = vadd.f32 0.0, %v1087
      %v1089 = vpop.f32.mrb[0].mxu0
      %v1090 = vpop.f32.mrb[0].mxu0
      %v1091 = vadd.f32 0.0, %v1090
      %v1092 = vpop.f32.mrb[0].mxu0
      %1093 = vdwg.mxu0
      %v1094 = vadd.f32 %v954, %v1080
      %v1095 = vadd.f32 %v957, %v1083
      %v1096 = vadd.f32 %v962, %v1088
      %v1097 = vadd.f32 %v965, %v1091
      %s1098 = scalar_lea.vmem %s8, 192
      %v1099 = vld [vmem:[%s1098] sm:$0xff]
      %v1100 = vld [vmem:[%s1098 + $0x8] sm:$0xff]
      %v1101 = vld [vmem:[%s1098 + $0x10] sm:$0xff]
      %v1102 = vld [vmem:[%s1098 + $0x18] sm:$0xff]
      %v1103 = vld [vmem:[%s1098 + $0x20] sm:$0xff]
      %v1104 = vld [vmem:[%s1098 + $0x28] sm:$0xff]
      %v1105 = vld [vmem:[%s1098 + $0x30] sm:$0xff]
      %v1106 = vld [vmem:[%s1098 + $0x38] sm:$0xff]
      %v1107 = vpack.c.bf16 %v1100, %v1099
      %v1108 = vpack.c.bf16 %v1102, %v1101
      %v1109 = vpack.c.bf16 %v1104, %v1103
      %v1110 = vpack.c.bf16 %v1106, %v1105
      %1111 = vmatprep.subr.bf16.mxu0 0
      %1112 = vmatpush1.bf16.msra.mxu0 %v1107
      %1113 = vmatprep.subr.bf16.mxu0 0
      %1114 = vmatpush1.bf16.msra.mxu0 %v1108
      %1115 = vmatprep.subr.bf16.mxu0 0
      %1116 = vmatpush1.bf16.msra.mxu0 %v1109
      %1117 = vmatprep.subr.bf16.mxu0 0
      %1118 = vmatpush1.bf16.msra.mxu0 %v1110
      %1119 = vmatprep.subr.bf16.mxu0 0
      %1120 = vmatpush1.bf16.msra.mxu0 0
      %1121 = vmatprep.subr.bf16.mxu0 0
      %1122 = vmatpush1.bf16.msra.mxu0 0
      %1123 = vmatprep.subr.bf16.mxu0 0
      %1124 = vmatpush1.bf16.msra.mxu0 0
      %1125 = vmatprep.subr.bf16.mxu0 0
      %1126 = vmatpush1.bf16.msra.mxu0 0
      %1127 = vmatprep.subr.bf16.mxu0 0
      %1128 = vmatpush1.bf16.msra.mxu0 0
      %1129 = vmatprep.subr.bf16.mxu0 0
      %1130 = vmatpush1.bf16.msra.mxu0 0
      %1131 = vmatprep.subr.bf16.mxu0 0
      %1132 = vmatpush1.bf16.msra.mxu0 0
      %1133 = vmatprep.subr.bf16.mxu0 0
      %1134 = vmatpush1.bf16.msra.mxu0 0
      %1135 = vmatprep.subr.bf16.mxu0 0
      %1136 = vmatpush1.bf16.msra.mxu0 0
      %1137 = vmatprep.subr.bf16.mxu0 0
      %1138 = vmatpush1.bf16.msra.mxu0 0
      %1139 = vmatprep.subr.bf16.mxu0 0
      %1140 = vmatpush1.bf16.msra.mxu0 0
      %1141 = vmatprep.subr.bf16.mxu0 0
      %1142 = vmatpush1.bf16.msra.mxu0 0
      %1143 = vmatprep.mubr.bf16.mxu0 0
      %1144 = vmatmul.mubr.bf16.gmra.mrb[0].mxu0 %v724
      %v1145 = vpop.f32.mrb[0].mxu0
      %v1146 = vadd.f32 0.0, %v1145
      %v1147 = vpop.f32.mrb[0].mxu0
      %v1148 = vpop.f32.mrb[0].mxu0
      %v1149 = vadd.f32 0.0, %v1148
      %v1150 = vpop.f32.mrb[0].mxu0
      %1151 = vmatprep.mubr.bf16.mxu0 0
      %1152 = vmatmul.mubr.bf16.gmra.mrb[0].mxu0 %v727
      %v1153 = vpop.f32.mrb[0].mxu0
      %v1154 = vadd.f32 0.0, %v1153
      %v1155 = vpop.f32.mrb[0].mxu0
      %v1156 = vpop.f32.mrb[0].mxu0
      %v1157 = vadd.f32 0.0, %v1156
      %v1158 = vpop.f32.mrb[0].mxu0
      %1159 = vdwg.mxu0
      %s1160 = scalar_lea.vmem %s7, 96
      %v1161 = vld [vmem:[%s1160] sm:$0xff]
      %v1162 = vld [vmem:[%s1160 + $0x8] sm:$0xff]
      %v1163 = vld [vmem:[%s1160 + $0x10] sm:$0xff]
      %v1164 = vld [vmem:[%s1160 + $0x18] sm:$0xff]
      %v1165 = vpack.c.bf16 %v1162, %v1161
      %v1166 = vpack.c.bf16 %v1164, %v1163
      %v1167 = vpack.c.bf16 %v1149, %v1146
      %v1168 = vpack.c.bf16 %v1157, %v1154
      %v1170 = vsel %vm857, %v1165, 0
      %v1173 = vsel %vm857, %v1166, 0
      %1175 = vmatprep.subr.bf16.mxu0 0
      %1176 = vmatpush1.bf16.msra.mxu0 %v1167
      %1177 = vmatprep.subr.bf16.mxu0 0
      %1178 = vmatpush1.bf16.msra.mxu0 %v1168
      %1179 = vmatprep.subr.bf16.mxu0 0
      %1180 = vmatpush1.bf16.msra.mxu0 0
      %1181 = vmatprep.subr.bf16.mxu0 0
      %1182 = vmatpush1.bf16.msra.mxu0 0
      %1183 = vmatprep.subr.bf16.mxu0 0
      %1184 = vmatpush1.bf16.msra.mxu0 0
      %1185 = vmatprep.subr.bf16.mxu0 0
      %1186 = vmatpush1.bf16.msra.mxu0 0
      %1187 = vmatprep.subr.bf16.mxu0 0
      %1188 = vmatpush1.bf16.msra.mxu0 0
      %1189 = vmatprep.subr.bf16.mxu0 0
      %1190 = vmatpush1.bf16.msra.mxu0 0
      %1191 = vmatprep.subr.bf16.mxu0 0
      %1192 = vmatpush1.bf16.msra.mxu0 0
      %1193 = vmatprep.subr.bf16.mxu0 0
      %1194 = vmatpush1.bf16.msra.mxu0 0
      %1195 = vmatprep.subr.bf16.mxu0 0
      %1196 = vmatpush1.bf16.msra.mxu0 0
      %1197 = vmatprep.subr.bf16.mxu0 0
      %1198 = vmatpush1.bf16.msra.mxu0 0
      %1199 = vmatprep.subr.bf16.mxu0 0
      %1200 = vmatpush1.bf16.msra.mxu0 0
      %1201 = vmatprep.subr.bf16.mxu0 0
      %1202 = vmatpush1.bf16.msra.mxu0 0
      %1203 = vmatprep.subr.bf16.mxu0 0
      %1204 = vmatpush1.bf16.msra.mxu0 0
      %1205 = vmatprep.subr.bf16.mxu0 0
      %1206 = vmatpush1.bf16.msra.mxu0 0
      %1207 = vmatprep.mubr.bf16.mxu0 0
      %1208 = vmatmul.mubr.bf16.gmra.mrb[0].mxu0 %v1170
      %v1209 = vpop.f32.mrb[0].mxu0
      %v1210 = vadd.f32 0.0, %v1209
      %v1211 = vpop.f32.mrb[0].mxu0
      %v1212 = vpop.f32.mrb[0].mxu0
      %v1213 = vadd.f32 0.0, %v1212
      %v1214 = vpop.f32.mrb[0].mxu0
      %1215 = vmatprep.mubr.bf16.mxu0 0
      %1216 = vmatmul.mubr.bf16.gmra.mrb[0].mxu0 %v1173
      %v1217 = vpop.f32.mrb[0].mxu0
      %v1218 = vadd.f32 0.0, %v1217
      %v1219 = vpop.f32.mrb[0].mxu0
      %v1220 = vpop.f32.mrb[0].mxu0
      %v1221 = vadd.f32 0.0, %v1220
      %v1222 = vpop.f32.mrb[0].mxu0
      %1223 = vdwg.mxu0
      %v1224 = vadd.f32 %v1094, %v1210
      %v1225 = vadd.f32 %v1095, %v1213
      %v1226 = vadd.f32 %v1096, %v1218
      %v1227 = vadd.f32 %v1097, %v1221
      %s1228 = scalar_lea.vmem %s8, 256
      %v1229 = vld [vmem:[%s1228] sm:$0xff]
      %v1230 = vld [vmem:[%s1228 + $0x8] sm:$0xff]
      %v1231 = vld [vmem:[%s1228 + $0x10] sm:$0xff]
      %v1232 = vld [vmem:[%s1228 + $0x18] sm:$0xff]
      %v1233 = vld [vmem:[%s1228 + $0x20] sm:$0xff]
      %v1234 = vld [vmem:[%s1228 + $0x28] sm:$0xff]
      %v1235 = vld [vmem:[%s1228 + $0x30] sm:$0xff]
      %v1236 = vld [vmem:[%s1228 + $0x38] sm:$0xff]
      %v1237 = vpack.c.bf16 %v1230, %v1229
      %v1238 = vpack.c.bf16 %v1232, %v1231
      %v1239 = vpack.c.bf16 %v1234, %v1233
      %v1240 = vpack.c.bf16 %v1236, %v1235
      %1241 = vmatprep.subr.bf16.mxu0 0
      %1242 = vmatpush1.bf16.msra.mxu0 %v1237
      %1243 = vmatprep.subr.bf16.mxu0 0
      %1244 = vmatpush1.bf16.msra.mxu0 %v1238
      %1245 = vmatprep.subr.bf16.mxu0 0
      %1246 = vmatpush1.bf16.msra.mxu0 %v1239
      %1247 = vmatprep.subr.bf16.mxu0 0
      %1248 = vmatpush1.bf16.msra.mxu0 %v1240
      %1249 = vmatprep.subr.bf16.mxu0 0
      %1250 = vmatpush1.bf16.msra.mxu0 0
      %1251 = vmatprep.subr.bf16.mxu0 0
      %1252 = vmatpush1.bf16.msra.mxu0 0
      %1253 = vmatprep.subr.bf16.mxu0 0
      %1254 = vmatpush1.bf16.msra.mxu0 0
      %1255 = vmatprep.subr.bf16.mxu0 0
      %1256 = vmatpush1.bf16.msra.mxu0 0
      %1257 = vmatprep.subr.bf16.mxu0 0
      %1258 = vmatpush1.bf16.msra.mxu0 0
      %1259 = vmatprep.subr.bf16.mxu0 0
      %1260 = vmatpush1.bf16.msra.mxu0 0
      %1261 = vmatprep.subr.bf16.mxu0 0
      %1262 = vmatpush1.bf16.msra.mxu0 0
      %1263 = vmatprep.subr.bf16.mxu0 0
      %1264 = vmatpush1.bf16.msra.mxu0 0
      %1265 = vmatprep.subr.bf16.mxu0 0
      %1266 = vmatpush1.bf16.msra.mxu0 0
      %1267 = vmatprep.subr.bf16.mxu0 0
      %1268 = vmatpush1.bf16.msra.mxu0 0
      %1269 = vmatprep.subr.bf16.mxu0 0
      %1270 = vmatpush1.bf16.msra.mxu0 0
      %1271 = vmatprep.subr.bf16.mxu0 0
      %1272 = vmatpush1.bf16.msra.mxu0 0
      %1273 = vmatprep.mubr.bf16.mxu0 0
      %1274 = vmatmul.mubr.bf16.gmra.mrb[0].mxu0 %v724
      %v1275 = vpop.f32.mrb[0].mxu0
      %v1276 = vadd.f32 0.0, %v1275
      %v1277 = vpop.f32.mrb[0].mxu0
      %v1278 = vpop.f32.mrb[0].mxu0
      %v1279 = vadd.f32 0.0, %v1278
      %v1280 = vpop.f32.mrb[0].mxu0
      %1281 = vmatprep.mubr.bf16.mxu0 0
      %1282 = vmatmul.mubr.bf16.gmra.mrb[0].mxu0 %v727
      %v1283 = vpop.f32.mrb[0].mxu0
      %v1284 = vadd.f32 0.0, %v1283
      %v1285 = vpop.f32.mrb[0].mxu0
      %v1286 = vpop.f32.mrb[0].mxu0
      %v1287 = vadd.f32 0.0, %v1286
      %v1288 = vpop.f32.mrb[0].mxu0
      %1289 = vdwg.mxu0
      %s1290 = scalar_lea.vmem %s7, 128
      %v1291 = vld [vmem:[%s1290] sm:$0xff]
      %v1292 = vld [vmem:[%s1290 + $0x8] sm:$0xff]
      %v1293 = vld [vmem:[%s1290 + $0x10] sm:$0xff]
      %v1294 = vld [vmem:[%s1290 + $0x18] sm:$0xff]
      %v1295 = vpack.c.bf16 %v1292, %v1291
      %v1296 = vpack.c.bf16 %v1294, %v1293
      %v1297 = vpack.c.bf16 %v1279, %v1276
      %v1298 = vpack.c.bf16 %v1287, %v1284
      %v1300 = vsel %vm857, %v1295, 0
      %v1303 = vsel %vm857, %v1296, 0
      %1305 = vmatprep.subr.bf16.mxu0 0
      %1306 = vmatpush1.bf16.msra.mxu0 %v1297
      %1307 = vmatprep.subr.bf16.mxu0 0
      %1308 = vmatpush1.bf16.msra.mxu0 %v1298
      %1309 = vmatprep.subr.bf16.mxu0 0
      %1310 = vmatpush1.bf16.msra.mxu0 0
      %1311 = vmatprep.subr.bf16.mxu0 0
      %1312 = vmatpush1.bf16.msra.mxu0 0
      %1313 = vmatprep.subr.bf16.mxu0 0
      %1314 = vmatpush1.bf16.msra.mxu0 0
      %1315 = vmatprep.subr.bf16.mxu0 0
      %1316 = vmatpush1.bf16.msra.mxu0 0
      %1317 = vmatprep.subr.bf16.mxu0 0
      %1318 = vmatpush1.bf16.msra.mxu0 0
      %1319 = vmatprep.subr.bf16.mxu0 0
      %1320 = vmatpush1.bf16.msra.mxu0 0
      %1321 = vmatprep.subr.bf16.mxu0 0
      %1322 = vmatpush1.bf16.msra.mxu0 0
      %1323 = vmatprep.subr.bf16.mxu0 0
      %1324 = vmatpush1.bf16.msra.mxu0 0
      %1325 = vmatprep.subr.bf16.mxu0 0
      %1326 = vmatpush1.bf16.msra.mxu0 0
      %1327 = vmatprep.subr.bf16.mxu0 0
      %1328 = vmatpush1.bf16.msra.mxu0 0
      %1329 = vmatprep.subr.bf16.mxu0 0
      %1330 = vmatpush1.bf16.msra.mxu0 0
      %1331 = vmatprep.subr.bf16.mxu0 0
      %1332 = vmatpush1.bf16.msra.mxu0 0
      %1333 = vmatprep.subr.bf16.mxu0 0
      %1334 = vmatpush1.bf16.msra.mxu0 0
      %1335 = vmatprep.subr.bf16.mxu0 0
      %1336 = vmatpush1.bf16.msra.mxu0 0
      %1337 = vmatprep.mubr.bf16.mxu0 0
      %1338 = vmatmul.mubr.bf16.gmra.mrb[0].mxu0 %v1300
      %v1339 = vpop.f32.mrb[0].mxu0
      %v1340 = vadd.f32 0.0, %v1339
      %v1341 = vpop.f32.mrb[0].mxu0
      %v1342 = vpop.f32.mrb[0].mxu0
      %v1343 = vadd.f32 0.0, %v1342
      %v1344 = vpop.f32.mrb[0].mxu0
      %1345 = vmatprep.mubr.bf16.mxu0 0
      %1346 = vmatmul.mubr.bf16.gmra.mrb[0].mxu0 %v1303
      %v1347 = vpop.f32.mrb[0].mxu0
      %v1348 = vadd.f32 0.0, %v1347
      %v1349 = vpop.f32.mrb[0].mxu0
      %v1350 = vpop.f32.mrb[0].mxu0
      %v1351 = vadd.f32 0.0, %v1350
      %v1352 = vpop.f32.mrb[0].mxu0
      %1353 = vdwg.mxu0
      %v1354 = vadd.f32 %v1224, %v1340
      %v1355 = vadd.f32 %v1225, %v1343
      %v1356 = vadd.f32 %v1226, %v1348
      %v1357 = vadd.f32 %v1227, %v1351
      %s1358 = scalar_lea.vmem %s8, 320
      %v1359 = vld [vmem:[%s1358] sm:$0xff]
      %v1360 = vld [vmem:[%s1358 + $0x8] sm:$0xff]
      %v1361 = vld [vmem:[%s1358 + $0x10] sm:$0xff]
      %v1362 = vld [vmem:[%s1358 + $0x18] sm:$0xff]
      %v1363 = vld [vmem:[%s1358 + $0x20] sm:$0xff]
      %v1364 = vld [vmem:[%s1358 + $0x28] sm:$0xff]
      %v1365 = vld [vmem:[%s1358 + $0x30] sm:$0xff]
      %v1366 = vld [vmem:[%s1358 + $0x38] sm:$0xff]
      %v1367 = vpack.c.bf16 %v1360, %v1359
      %v1368 = vpack.c.bf16 %v1362, %v1361
      %v1369 = vpack.c.bf16 %v1364, %v1363
      %v1370 = vpack.c.bf16 %v1366, %v1365
      %1371 = vmatprep.subr.bf16.mxu0 0
      %1372 = vmatpush1.bf16.msra.mxu0 %v1367
      %1373 = vmatprep.subr.bf16.mxu0 0
      %1374 = vmatpush1.bf16.msra.mxu0 %v1368
      %1375 = vmatprep.subr.bf16.mxu0 0
      %1376 = vmatpush1.bf16.msra.mxu0 %v1369
      %1377 = vmatprep.subr.bf16.mxu0 0
      %1378 = vmatpush1.bf16.msra.mxu0 %v1370
      %1379 = vmatprep.subr.bf16.mxu0 0
      %1380 = vmatpush1.bf16.msra.mxu0 0
      %1381 = vmatprep.subr.bf16.mxu0 0
      %1382 = vmatpush1.bf16.msra.mxu0 0
      %1383 = vmatprep.subr.bf16.mxu0 0
      %1384 = vmatpush1.bf16.msra.mxu0 0
      %1385 = vmatprep.subr.bf16.mxu0 0
      %1386 = vmatpush1.bf16.msra.mxu0 0
      %1387 = vmatprep.subr.bf16.mxu0 0
      %1388 = vmatpush1.bf16.msra.mxu0 0
      %1389 = vmatprep.subr.bf16.mxu0 0
      %1390 = vmatpush1.bf16.msra.mxu0 0
      %1391 = vmatprep.subr.bf16.mxu0 0
      %1392 = vmatpush1.bf16.msra.mxu0 0
      %1393 = vmatprep.subr.bf16.mxu0 0
      %1394 = vmatpush1.bf16.msra.mxu0 0
      %1395 = vmatprep.subr.bf16.mxu0 0
      %1396 = vmatpush1.bf16.msra.mxu0 0
      %1397 = vmatprep.subr.bf16.mxu0 0
      %1398 = vmatpush1.bf16.msra.mxu0 0
      %1399 = vmatprep.subr.bf16.mxu0 0
      %1400 = vmatpush1.bf16.msra.mxu0 0
      %1401 = vmatprep.subr.bf16.mxu0 0
      %1402 = vmatpush1.bf16.msra.mxu0 0
      %1403 = vmatprep.mubr.bf16.mxu0 0
      %1404 = vmatmul.mubr.bf16.gmra.mrb[0].mxu0 %v724
      %v1405 = vpop.f32.mrb[0].mxu0
      %v1406 = vadd.f32 0.0, %v1405
      %v1407 = vpop.f32.mrb[0].mxu0
      %v1408 = vpop.f32.mrb[0].mxu0
      %v1409 = vadd.f32 0.0, %v1408
      %v1410 = vpop.f32.mrb[0].mxu0
      %1411 = vmatprep.mubr.bf16.mxu0 0
      %1412 = vmatmul.mubr.bf16.gmra.mrb[0].mxu0 %v727
      %v1413 = vpop.f32.mrb[0].mxu0
      %v1414 = vadd.f32 0.0, %v1413
      %v1415 = vpop.f32.mrb[0].mxu0
      %v1416 = vpop.f32.mrb[0].mxu0
      %v1417 = vadd.f32 0.0, %v1416
      %v1418 = vpop.f32.mrb[0].mxu0
      %1419 = vdwg.mxu0
      %s1420 = scalar_lea.vmem %s7, 160
      %v1421 = vld [vmem:[%s1420] sm:$0xff]
      %v1422 = vld [vmem:[%s1420 + $0x8] sm:$0xff]
      %v1423 = vld [vmem:[%s1420 + $0x10] sm:$0xff]
      %v1424 = vld [vmem:[%s1420 + $0x18] sm:$0xff]
      %v1425 = vpack.c.bf16 %v1422, %v1421
      %v1426 = vpack.c.bf16 %v1424, %v1423
      %v1427 = vpack.c.bf16 %v1409, %v1406
      %v1428 = vpack.c.bf16 %v1417, %v1414
      %v1430 = vsel %vm857, %v1425, 0
      %v1433 = vsel %vm857, %v1426, 0
      %1435 = vmatprep.subr.bf16.mxu0 0
      %1436 = vmatpush1.bf16.msra.mxu0 %v1427
      %1437 = vmatprep.subr.bf16.mxu0 0
      %1438 = vmatpush1.bf16.msra.mxu0 %v1428
      %1439 = vmatprep.subr.bf16.mxu0 0
      %1440 = vmatpush1.bf16.msra.mxu0 0
      %1441 = vmatprep.subr.bf16.mxu0 0
      %1442 = vmatpush1.bf16.msra.mxu0 0
      %1443 = vmatprep.subr.bf16.mxu0 0
      %1444 = vmatpush1.bf16.msra.mxu0 0
      %1445 = vmatprep.subr.bf16.mxu0 0
      %1446 = vmatpush1.bf16.msra.mxu0 0
      %1447 = vmatprep.subr.bf16.mxu0 0
      %1448 = vmatpush1.bf16.msra.mxu0 0
      %1449 = vmatprep.subr.bf16.mxu0 0
      %1450 = vmatpush1.bf16.msra.mxu0 0
      %1451 = vmatprep.subr.bf16.mxu0 0
      %1452 = vmatpush1.bf16.msra.mxu0 0
      %1453 = vmatprep.subr.bf16.mxu0 0
      %1454 = vmatpush1.bf16.msra.mxu0 0
      %1455 = vmatprep.subr.bf16.mxu0 0
      %1456 = vmatpush1.bf16.msra.mxu0 0
      %1457 = vmatprep.subr.bf16.mxu0 0
      %1458 = vmatpush1.bf16.msra.mxu0 0
      %1459 = vmatprep.subr.bf16.mxu0 0
      %1460 = vmatpush1.bf16.msra.mxu0 0
      %1461 = vmatprep.subr.bf16.mxu0 0
      %1462 = vmatpush1.bf16.msra.mxu0 0
      %1463 = vmatprep.subr.bf16.mxu0 0
      %1464 = vmatpush1.bf16.msra.mxu0 0
      %1465 = vmatprep.subr.bf16.mxu0 0
      %1466 = vmatpush1.bf16.msra.mxu0 0
      %1467 = vmatprep.mubr.bf16.mxu0 0
      %1468 = vmatmul.mubr.bf16.gmra.mrb[0].mxu0 %v1430
      %v1469 = vpop.f32.mrb[0].mxu0
      %v1470 = vadd.f32 0.0, %v1469
      %v1471 = vpop.f32.mrb[0].mxu0
      %v1472 = vpop.f32.mrb[0].mxu0
      %v1473 = vadd.f32 0.0, %v1472
      %v1474 = vpop.f32.mrb[0].mxu0
      %1475 = vmatprep.mubr.bf16.mxu0 0
      %1476 = vmatmul.mubr.bf16.gmra.mrb[0].mxu0 %v1433
      %v1477 = vpop.f32.mrb[0].mxu0
      %v1478 = vadd.f32 0.0, %v1477
      %v1479 = vpop.f32.mrb[0].mxu0
      %v1480 = vpop.f32.mrb[0].mxu0
      %v1481 = vadd.f32 0.0, %v1480
      %v1482 = vpop.f32.mrb[0].mxu0
      %1483 = vdwg.mxu0
      %v1484 = vadd.f32 %v1354, %v1470
      %v1485 = vadd.f32 %v1355, %v1473
      %v1486 = vadd.f32 %v1356, %v1478
      %v1487 = vadd.f32 %v1357, %v1481
      %s1488 = scalar_lea.vmem %s8, 384
      %v1489 = vld [vmem:[%s1488] sm:$0xff]
      %v1490 = vld [vmem:[%s1488 + $0x8] sm:$0xff]
      %v1491 = vld [vmem:[%s1488 + $0x10] sm:$0xff]
      %v1492 = vld [vmem:[%s1488 + $0x18] sm:$0xff]
      %v1493 = vld [vmem:[%s1488 + $0x20] sm:$0xff]
      %v1494 = vld [vmem:[%s1488 + $0x28] sm:$0xff]
      %v1495 = vld [vmem:[%s1488 + $0x30] sm:$0xff]
      %v1496 = vld [vmem:[%s1488 + $0x38] sm:$0xff]
      %v1497 = vpack.c.bf16 %v1490, %v1489
      %v1498 = vpack.c.bf16 %v1492, %v1491
      %v1499 = vpack.c.bf16 %v1494, %v1493
      %v1500 = vpack.c.bf16 %v1496, %v1495
      %1501 = vmatprep.subr.bf16.mxu0 0
      %1502 = vmatpush1.bf16.msra.mxu0 %v1497
      %1503 = vmatprep.subr.bf16.mxu0 0
      %1504 = vmatpush1.bf16.msra.mxu0 %v1498
      %1505 = vmatprep.subr.bf16.mxu0 0
      %1506 = vmatpush1.bf16.msra.mxu0 %v1499
      %1507 = vmatprep.subr.bf16.mxu0 0
      %1508 = vmatpush1.bf16.msra.mxu0 %v1500
      %1509 = vmatprep.subr.bf16.mxu0 0
      %1510 = vmatpush1.bf16.msra.mxu0 0
      %1511 = vmatprep.subr.bf16.mxu0 0
      %1512 = vmatpush1.bf16.msra.mxu0 0
      %1513 = vmatprep.subr.bf16.mxu0 0
      %1514 = vmatpush1.bf16.msra.mxu0 0
      %1515 = vmatprep.subr.bf16.mxu0 0
      %1516 = vmatpush1.bf16.msra.mxu0 0
      %1517 = vmatprep.subr.bf16.mxu0 0
      %1518 = vmatpush1.bf16.msra.mxu0 0
      %1519 = vmatprep.subr.bf16.mxu0 0
      %1520 = vmatpush1.bf16.msra.mxu0 0
      %1521 = vmatprep.subr.bf16.mxu0 0
      %1522 = vmatpush1.bf16.msra.mxu0 0
      %1523 = vmatprep.subr.bf16.mxu0 0
      %1524 = vmatpush1.bf16.msra.mxu0 0
      %1525 = vmatprep.subr.bf16.mxu0 0
      %1526 = vmatpush1.bf16.msra.mxu0 0
      %1527 = vmatprep.subr.bf16.mxu0 0
      %1528 = vmatpush1.bf16.msra.mxu0 0
      %1529 = vmatprep.subr.bf16.mxu0 0
      %1530 = vmatpush1.bf16.msra.mxu0 0
      %1531 = vmatprep.subr.bf16.mxu0 0
      %1532 = vmatpush1.bf16.msra.mxu0 0
      %1533 = vmatprep.mubr.bf16.mxu0 0
      %1534 = vmatmul.mubr.bf16.gmra.mrb[0].mxu0 %v724
      %v1535 = vpop.f32.mrb[0].mxu0
      %v1536 = vadd.f32 0.0, %v1535
      %v1537 = vpop.f32.mrb[0].mxu0
      %v1538 = vpop.f32.mrb[0].mxu0
      %v1539 = vadd.f32 0.0, %v1538
      %v1540 = vpop.f32.mrb[0].mxu0
      %1541 = vmatprep.mubr.bf16.mxu0 0
      %1542 = vmatmul.mubr.bf16.gmra.mrb[0].mxu0 %v727
      %v1543 = vpop.f32.mrb[0].mxu0
      %v1544 = vadd.f32 0.0, %v1543
      %v1545 = vpop.f32.mrb[0].mxu0
      %v1546 = vpop.f32.mrb[0].mxu0
      %v1547 = vadd.f32 0.0, %v1546
      %v1548 = vpop.f32.mrb[0].mxu0
      %1549 = vdwg.mxu0
      %s1550 = scalar_lea.vmem %s7, 192
      %v1551 = vld [vmem:[%s1550] sm:$0xff]
      %v1552 = vld [vmem:[%s1550 + $0x8] sm:$0xff]
      %v1553 = vld [vmem:[%s1550 + $0x10] sm:$0xff]
      %v1554 = vld [vmem:[%s1550 + $0x18] sm:$0xff]
      %v1555 = vpack.c.bf16 %v1552, %v1551
      %v1556 = vpack.c.bf16 %v1554, %v1553
      %v1557 = vpack.c.bf16 %v1539, %v1536
      %v1558 = vpack.c.bf16 %v1547, %v1544
      %v1560 = vsel %vm857, %v1555, 0
      %v1563 = vsel %vm857, %v1556, 0
      %1565 = vmatprep.subr.bf16.mxu0 0
      %1566 = vmatpush1.bf16.msra.mxu0 %v1557
      %1567 = vmatprep.subr.bf16.mxu0 0
      %1568 = vmatpush1.bf16.msra.mxu0 %v1558
      %1569 = vmatprep.subr.bf16.mxu0 0
      %1570 = vmatpush1.bf16.msra.mxu0 0
      %1571 = vmatprep.subr.bf16.mxu0 0
      %1572 = vmatpush1.bf16.msra.mxu0 0
      %1573 = vmatprep.subr.bf16.mxu0 0
      %1574 = vmatpush1.bf16.msra.mxu0 0
      %1575 = vmatprep.subr.bf16.mxu0 0
      %1576 = vmatpush1.bf16.msra.mxu0 0
      %1577 = vmatprep.subr.bf16.mxu0 0
      %1578 = vmatpush1.bf16.msra.mxu0 0
      %1579 = vmatprep.subr.bf16.mxu0 0
      %1580 = vmatpush1.bf16.msra.mxu0 0
      %1581 = vmatprep.subr.bf16.mxu0 0
      %1582 = vmatpush1.bf16.msra.mxu0 0
      %1583 = vmatprep.subr.bf16.mxu0 0
      %1584 = vmatpush1.bf16.msra.mxu0 0
      %1585 = vmatprep.subr.bf16.mxu0 0
      %1586 = vmatpush1.bf16.msra.mxu0 0
      %1587 = vmatprep.subr.bf16.mxu0 0
      %1588 = vmatpush1.bf16.msra.mxu0 0
      %1589 = vmatprep.subr.bf16.mxu0 0
      %1590 = vmatpush1.bf16.msra.mxu0 0
      %1591 = vmatprep.subr.bf16.mxu0 0
      %1592 = vmatpush1.bf16.msra.mxu0 0
      %1593 = vmatprep.subr.bf16.mxu0 0
      %1594 = vmatpush1.bf16.msra.mxu0 0
      %1595 = vmatprep.subr.bf16.mxu0 0
      %1596 = vmatpush1.bf16.msra.mxu0 0
      %1597 = vmatprep.mubr.bf16.mxu0 0
      %1598 = vmatmul.mubr.bf16.gmra.mrb[0].mxu0 %v1560
      %v1599 = vpop.f32.mrb[0].mxu0
      %v1600 = vadd.f32 0.0, %v1599
      %v1601 = vpop.f32.mrb[0].mxu0
      %v1602 = vpop.f32.mrb[0].mxu0
      %v1603 = vadd.f32 0.0, %v1602
      %v1604 = vpop.f32.mrb[0].mxu0
      %1605 = vmatprep.mubr.bf16.mxu0 0
      %1606 = vmatmul.mubr.bf16.gmra.mrb[0].mxu0 %v1563
      %v1607 = vpop.f32.mrb[0].mxu0
      %v1608 = vadd.f32 0.0, %v1607
      %v1609 = vpop.f32.mrb[0].mxu0
      %v1610 = vpop.f32.mrb[0].mxu0
      %v1611 = vadd.f32 0.0, %v1610
      %v1612 = vpop.f32.mrb[0].mxu0
      %1613 = vdwg.mxu0
      %v1614 = vadd.f32 %v1484, %v1600
      %v1615 = vadd.f32 %v1485, %v1603
      %v1616 = vadd.f32 %v1486, %v1608
      %v1617 = vadd.f32 %v1487, %v1611
      %s1618 = scalar_lea.vmem %s8, 448
      %v1619 = vld [vmem:[%s1618] sm:$0xff]
      %v1620 = vld [vmem:[%s1618 + $0x8] sm:$0xff]
      %v1621 = vld [vmem:[%s1618 + $0x10] sm:$0xff]
      %v1622 = vld [vmem:[%s1618 + $0x18] sm:$0xff]
      %v1623 = vld [vmem:[%s1618 + $0x20] sm:$0xff]
      %v1624 = vld [vmem:[%s1618 + $0x28] sm:$0xff]
      %v1625 = vld [vmem:[%s1618 + $0x30] sm:$0xff]
      %v1626 = vld [vmem:[%s1618 + $0x38] sm:$0xff]
      %v1627 = vpack.c.bf16 %v1620, %v1619
      %v1628 = vpack.c.bf16 %v1622, %v1621
      %v1629 = vpack.c.bf16 %v1624, %v1623
      %v1630 = vpack.c.bf16 %v1626, %v1625
      %1631 = vmatprep.subr.bf16.mxu0 0
      %1632 = vmatpush1.bf16.msra.mxu0 %v1627
      %1633 = vmatprep.subr.bf16.mxu0 0
      %1634 = vmatpush1.bf16.msra.mxu0 %v1628
      %1635 = vmatprep.subr.bf16.mxu0 0
      %1636 = vmatpush1.bf16.msra.mxu0 %v1629
      %1637 = vmatprep.subr.bf16.mxu0 0
      %1638 = vmatpush1.bf16.msra.mxu0 %v1630
      %1639 = vmatprep.subr.bf16.mxu0 0
      %1640 = vmatpush1.bf16.msra.mxu0 0
      %1641 = vmatprep.subr.bf16.mxu0 0
      %1642 = vmatpush1.bf16.msra.mxu0 0
      %1643 = vmatprep.subr.bf16.mxu0 0
      %1644 = vmatpush1.bf16.msra.mxu0 0
      %1645 = vmatprep.subr.bf16.mxu0 0
      %1646 = vmatpush1.bf16.msra.mxu0 0
      %1647 = vmatprep.subr.bf16.mxu0 0
      %1648 = vmatpush1.bf16.msra.mxu0 0
      %1649 = vmatprep.subr.bf16.mxu0 0
      %1650 = vmatpush1.bf16.msra.mxu0 0
      %1651 = vmatprep.subr.bf16.mxu0 0
      %1652 = vmatpush1.bf16.msra.mxu0 0
      %1653 = vmatprep.subr.bf16.mxu0 0
      %1654 = vmatpush1.bf16.msra.mxu0 0
      %1655 = vmatprep.subr.bf16.mxu0 0
      %1656 = vmatpush1.bf16.msra.mxu0 0
      %1657 = vmatprep.subr.bf16.mxu0 0
      %1658 = vmatpush1.bf16.msra.mxu0 0
      %1659 = vmatprep.subr.bf16.mxu0 0
      %1660 = vmatpush1.bf16.msra.mxu0 0
      %1661 = vmatprep.subr.bf16.mxu0 0
      %1662 = vmatpush1.bf16.msra.mxu0 0
      %1663 = vmatprep.mubr.bf16.mxu0 0
      %1664 = vmatmul.mubr.bf16.gmra.mrb[0].mxu0 %v724
      %v1665 = vpop.f32.mrb[0].mxu0
      %v1666 = vadd.f32 0.0, %v1665
      %v1667 = vpop.f32.mrb[0].mxu0
      %v1668 = vpop.f32.mrb[0].mxu0
      %v1669 = vadd.f32 0.0, %v1668
      %v1670 = vpop.f32.mrb[0].mxu0
      %1671 = vmatprep.mubr.bf16.mxu0 0
      %1672 = vmatmul.mubr.bf16.gmra.mrb[0].mxu0 %v727
      %v1673 = vpop.f32.mrb[0].mxu0
      %v1674 = vadd.f32 0.0, %v1673
      %v1675 = vpop.f32.mrb[0].mxu0
      %v1676 = vpop.f32.mrb[0].mxu0
      %v1677 = vadd.f32 0.0, %v1676
      %v1678 = vpop.f32.mrb[0].mxu0
      %1679 = vdwg.mxu0
      %s1680 = scalar_lea.vmem %s7, 224
      %v1681 = vld [vmem:[%s1680] sm:$0xff]
      %v1682 = vld [vmem:[%s1680 + $0x8] sm:$0xff]
      %v1683 = vld [vmem:[%s1680 + $0x10] sm:$0xff]
      %v1684 = vld [vmem:[%s1680 + $0x18] sm:$0xff]
      %v1685 = vpack.c.bf16 %v1682, %v1681
      %v1686 = vpack.c.bf16 %v1684, %v1683
      %v1687 = vpack.c.bf16 %v1669, %v1666
      %v1688 = vpack.c.bf16 %v1677, %v1674
      %v1690 = vsel %vm857, %v1685, 0
      %v1693 = vsel %vm857, %v1686, 0
      %1695 = vmatprep.subr.bf16.mxu0 0
      %1696 = vmatpush1.bf16.msra.mxu0 %v1687
      %1697 = vmatprep.subr.bf16.mxu0 0
      %1698 = vmatpush1.bf16.msra.mxu0 %v1688
      %1699 = vmatprep.subr.bf16.mxu0 0
      %1700 = vmatpush1.bf16.msra.mxu0 0
      %1701 = vmatprep.subr.bf16.mxu0 0
      %1702 = vmatpush1.bf16.msra.mxu0 0
      %1703 = vmatprep.subr.bf16.mxu0 0
      %1704 = vmatpush1.bf16.msra.mxu0 0
      %1705 = vmatprep.subr.bf16.mxu0 0
      %1706 = vmatpush1.bf16.msra.mxu0 0
      %1707 = vmatprep.subr.bf16.mxu0 0
      %1708 = vmatpush1.bf16.msra.mxu0 0
      %1709 = vmatprep.subr.bf16.mxu0 0
      %1710 = vmatpush1.bf16.msra.mxu0 0
      %1711 = vmatprep.subr.bf16.mxu0 0
      %1712 = vmatpush1.bf16.msra.mxu0 0
      %1713 = vmatprep.subr.bf16.mxu0 0
      %1714 = vmatpush1.bf16.msra.mxu0 0
      %1715 = vmatprep.subr.bf16.mxu0 0
      %1716 = vmatpush1.bf16.msra.mxu0 0
      %1717 = vmatprep.subr.bf16.mxu0 0
      %1718 = vmatpush1.bf16.msra.mxu0 0
      %1719 = vmatprep.subr.bf16.mxu0 0
      %1720 = vmatpush1.bf16.msra.mxu0 0
      %1721 = vmatprep.subr.bf16.mxu0 0
      %1722 = vmatpush1.bf16.msra.mxu0 0
      %1723 = vmatprep.subr.bf16.mxu0 0
      %1724 = vmatpush1.bf16.msra.mxu0 0
      %1725 = vmatprep.subr.bf16.mxu0 0
      %1726 = vmatpush1.bf16.msra.mxu0 0
      %1727 = vmatprep.mubr.bf16.mxu0 0
      %1728 = vmatmul.mubr.bf16.gmra.mrb[0].mxu0 %v1690
      %v1729 = vpop.f32.mrb[0].mxu0
      %v1730 = vadd.f32 0.0, %v1729
      %v1731 = vpop.f32.mrb[0].mxu0
      %v1732 = vpop.f32.mrb[0].mxu0
      %v1733 = vadd.f32 0.0, %v1732
      %v1734 = vpop.f32.mrb[0].mxu0
      %1735 = vmatprep.mubr.bf16.mxu0 0
      %1736 = vmatmul.mubr.bf16.gmra.mrb[0].mxu0 %v1693
      %v1737 = vpop.f32.mrb[0].mxu0
      %v1738 = vadd.f32 0.0, %v1737
      %v1739 = vpop.f32.mrb[0].mxu0
      %v1740 = vpop.f32.mrb[0].mxu0
      %v1741 = vadd.f32 0.0, %v1740
      %v1742 = vpop.f32.mrb[0].mxu0
      %1743 = vdwg.mxu0
      %v1744 = vadd.f32 %v1614, %v1730
      %v1745 = vadd.f32 %v1615, %v1733
      %v1746 = vadd.f32 %v1616, %v1738
      %v1747 = vadd.f32 %v1617, %v1741
      %s1748 = scalar_lea.vmem %s8, 512
      %v1749 = vld [vmem:[%s1748] sm:$0xff]
      %v1750 = vld [vmem:[%s1748 + $0x8] sm:$0xff]
      %v1751 = vld [vmem:[%s1748 + $0x10] sm:$0xff]
      %v1752 = vld [vmem:[%s1748 + $0x18] sm:$0xff]
      %v1753 = vld [vmem:[%s1748 + $0x20] sm:$0xff]
      %v1754 = vld [vmem:[%s1748 + $0x28] sm:$0xff]
      %v1755 = vld [vmem:[%s1748 + $0x30] sm:$0xff]
      %v1756 = vld [vmem:[%s1748 + $0x38] sm:$0xff]
      %v1757 = vpack.c.bf16 %v1750, %v1749
      %v1758 = vpack.c.bf16 %v1752, %v1751
      %v1759 = vpack.c.bf16 %v1754, %v1753
      %v1760 = vpack.c.bf16 %v1756, %v1755
      %1761 = vmatprep.subr.bf16.mxu0 0
      %1762 = vmatpush1.bf16.msra.mxu0 %v1757
      %1763 = vmatprep.subr.bf16.mxu0 0
      %1764 = vmatpush1.bf16.msra.mxu0 %v1758
      %1765 = vmatprep.subr.bf16.mxu0 0
      %1766 = vmatpush1.bf16.msra.mxu0 %v1759
      %1767 = vmatprep.subr.bf16.mxu0 0
      %1768 = vmatpush1.bf16.msra.mxu0 %v1760
      %1769 = vmatprep.subr.bf16.mxu0 0
      %1770 = vmatpush1.bf16.msra.mxu0 0
      %1771 = vmatprep.subr.bf16.mxu0 0
      %1772 = vmatpush1.bf16.msra.mxu0 0
      %1773 = vmatprep.subr.bf16.mxu0 0
      %1774 = vmatpush1.bf16.msra.mxu0 0
      %1775 = vmatprep.subr.bf16.mxu0 0
      %1776 = vmatpush1.bf16.msra.mxu0 0
      %1777 = vmatprep.subr.bf16.mxu0 0
      %1778 = vmatpush1.bf16.msra.mxu0 0
      %1779 = vmatprep.subr.bf16.mxu0 0
      %1780 = vmatpush1.bf16.msra.mxu0 0
      %1781 = vmatprep.subr.bf16.mxu0 0
      %1782 = vmatpush1.bf16.msra.mxu0 0
      %1783 = vmatprep.subr.bf16.mxu0 0
      %1784 = vmatpush1.bf16.msra.mxu0 0
      %1785 = vmatprep.subr.bf16.mxu0 0
      %1786 = vmatpush1.bf16.msra.mxu0 0
      %1787 = vmatprep.subr.bf16.mxu0 0
      %1788 = vmatpush1.bf16.msra.mxu0 0
      %1789 = vmatprep.subr.bf16.mxu0 0
      %1790 = vmatpush1.bf16.msra.mxu0 0
      %1791 = vmatprep.subr.bf16.mxu0 0
      %1792 = vmatpush1.bf16.msra.mxu0 0
      %1793 = vmatprep.mubr.bf16.mxu0 0
      %1794 = vmatmul.mubr.bf16.gmra.mrb[0].mxu0 %v724
      %v1795 = vpop.f32.mrb[0].mxu0
      %v1796 = vadd.f32 0.0, %v1795
      %v1797 = vpop.f32.mrb[0].mxu0
      %v1798 = vpop.f32.mrb[0].mxu0
      %v1799 = vadd.f32 0.0, %v1798
      %v1800 = vpop.f32.mrb[0].mxu0
      %1801 = vmatprep.mubr.bf16.mxu0 0
      %1802 = vmatmul.mubr.bf16.gmra.mrb[0].mxu0 %v727
      %v1803 = vpop.f32.mrb[0].mxu0
      %v1804 = vadd.f32 0.0, %v1803
      %v1805 = vpop.f32.mrb[0].mxu0
      %v1806 = vpop.f32.mrb[0].mxu0
      %v1807 = vadd.f32 0.0, %v1806
      %v1808 = vpop.f32.mrb[0].mxu0
      %1809 = vdwg.mxu0
      %s1810 = scalar_lea.vmem %s7, 256
      %v1811 = vld [vmem:[%s1810] sm:$0xff]
      %v1812 = vld [vmem:[%s1810 + $0x8] sm:$0xff]
      %v1813 = vld [vmem:[%s1810 + $0x10] sm:$0xff]
      %v1814 = vld [vmem:[%s1810 + $0x18] sm:$0xff]
      %v1815 = vpack.c.bf16 %v1812, %v1811
      %v1816 = vpack.c.bf16 %v1814, %v1813
      %v1817 = vpack.c.bf16 %v1799, %v1796
      %v1818 = vpack.c.bf16 %v1807, %v1804
      %v1820 = vsel %vm857, %v1815, 0
      %v1823 = vsel %vm857, %v1816, 0
      %1825 = vmatprep.subr.bf16.mxu0 0
      %1826 = vmatpush1.bf16.msra.mxu0 %v1817
      %1827 = vmatprep.subr.bf16.mxu0 0
      %1828 = vmatpush1.bf16.msra.mxu0 %v1818
      %1829 = vmatprep.subr.bf16.mxu0 0
      %1830 = vmatpush1.bf16.msra.mxu0 0
      %1831 = vmatprep.subr.bf16.mxu0 0
      %1832 = vmatpush1.bf16.msra.mxu0 0
      %1833 = vmatprep.subr.bf16.mxu0 0
      %1834 = vmatpush1.bf16.msra.mxu0 0
      %1835 = vmatprep.subr.bf16.mxu0 0
      %1836 = vmatpush1.bf16.msra.mxu0 0
      %1837 = vmatprep.subr.bf16.mxu0 0
      %1838 = vmatpush1.bf16.msra.mxu0 0
      %1839 = vmatprep.subr.bf16.mxu0 0
      %1840 = vmatpush1.bf16.msra.mxu0 0
      %1841 = vmatprep.subr.bf16.mxu0 0
      %1842 = vmatpush1.bf16.msra.mxu0 0
      %1843 = vmatprep.subr.bf16.mxu0 0
      %1844 = vmatpush1.bf16.msra.mxu0 0
      %1845 = vmatprep.subr.bf16.mxu0 0
      %1846 = vmatpush1.bf16.msra.mxu0 0
      %1847 = vmatprep.subr.bf16.mxu0 0
      %1848 = vmatpush1.bf16.msra.mxu0 0
      %1849 = vmatprep.subr.bf16.mxu0 0
      %1850 = vmatpush1.bf16.msra.mxu0 0
      %1851 = vmatprep.subr.bf16.mxu0 0
      %1852 = vmatpush1.bf16.msra.mxu0 0
      %1853 = vmatprep.subr.bf16.mxu0 0
      %1854 = vmatpush1.bf16.msra.mxu0 0
      %1855 = vmatprep.subr.bf16.mxu0 0
      %1856 = vmatpush1.bf16.msra.mxu0 0
      %1857 = vmatprep.mubr.bf16.mxu0 0
      %1858 = vmatmul.mubr.bf16.gmra.mrb[0].mxu0 %v1820
      %v1859 = vpop.f32.mrb[0].mxu0
      %v1860 = vadd.f32 0.0, %v1859
      %v1861 = vpop.f32.mrb[0].mxu0
      %v1862 = vpop.f32.mrb[0].mxu0
      %v1863 = vadd.f32 0.0, %v1862
      %v1864 = vpop.f32.mrb[0].mxu0
      %1865 = vmatprep.mubr.bf16.mxu0 0
      %1866 = vmatmul.mubr.bf16.gmra.mrb[0].mxu0 %v1823
      %v1867 = vpop.f32.mrb[0].mxu0
      %v1868 = vadd.f32 0.0, %v1867
      %v1869 = vpop.f32.mrb[0].mxu0
      %v1870 = vpop.f32.mrb[0].mxu0
      %v1871 = vadd.f32 0.0, %v1870
      %v1872 = vpop.f32.mrb[0].mxu0
      %1873 = vdwg.mxu0
      %v1874 = vadd.f32 %v1744, %v1860
      %v1875 = vadd.f32 %v1745, %v1863
      %v1876 = vadd.f32 %v1746, %v1868
      %v1877 = vadd.f32 %v1747, %v1871
      %v1886 = vcombine.low %v492, %v494
      %v1887 = vcombine.high %v492, %v494
      %v1888 = vcombine.low %v496, %v498
      %v1889 = vcombine.high %v496, %v498
      %v1890 = vcombine.low %v502, %v504
      %v1891 = vcombine.high %v502, %v504
      %v1892 = vcombine.low %v506, %v508
      %v1893 = vcombine.high %v506, %v508
      %v1910 = vcombine.low %v512, %v514
      %v1911 = vcombine.high %v512, %v514
      %v1912 = vcombine.low %v516, %v518
      %v1913 = vcombine.high %v516, %v518
      %v1914 = vcombine.low %v522, %v524
      %v1915 = vcombine.high %v522, %v524
      %v1916 = vcombine.low %v526, %v528
      %v1917 = vcombine.high %v526, %v528
      %v1926 = vcombine.high %v1886, %v1886
      %v1927 = vcombine.high %v1887, %v1887
      %v1928 = vcombine.high %v1888, %v1888
      %v1929 = vcombine.high %v1889, %v1889
      %v1930 = vcombine.high %v1890, %v1890
      %v1931 = vcombine.high %v1891, %v1891
      %v1932 = vcombine.high %v1892, %v1892
      %v1933 = vcombine.high %v1893, %v1893
      %v1942 = vpack.c.bf16 %v1886, %v1886
      %v1943 = vpack.c.bf16 %v1926, %v1926
      %v1944 = vpack.c.bf16 %v1887, %v1887
      %v1945 = vpack.c.bf16 %v1927, %v1927
      %v1946 = vpack.c.bf16 %v1888, %v1888
      %v1947 = vpack.c.bf16 %v1928, %v1928
      %v1948 = vpack.c.bf16 %v1889, %v1889
      %v1949 = vpack.c.bf16 %v1929, %v1929
      %v1950 = vpack.c.bf16 %v1890, %v1890
      %v1951 = vpack.c.bf16 %v1930, %v1930
      %v1952 = vpack.c.bf16 %v1891, %v1891
      %v1953 = vpack.c.bf16 %v1931, %v1931
      %v1954 = vpack.c.bf16 %v1892, %v1892
      %v1955 = vpack.c.bf16 %v1932, %v1932
      %v1956 = vpack.c.bf16 %v1893, %v1893
      %v1957 = vpack.c.bf16 %v1933, %v1933
      %v1958 = vcombine.high %v1910, %v1910
      %v1959 = vcombine.high %v1911, %v1911
      %v1960 = vcombine.high %v1912, %v1912
      %v1961 = vcombine.high %v1913, %v1913
      %v1962 = vcombine.high %v1914, %v1914
      %v1963 = vcombine.high %v1915, %v1915
      %v1964 = vcombine.high %v1916, %v1916
      %v1965 = vcombine.high %v1917, %v1917
      %v1974 = vpack.c.bf16 %v1910, %v1910
      %v1975 = vpack.c.bf16 %v1958, %v1958
      %v1976 = vpack.c.bf16 %v1911, %v1911
      %v1977 = vpack.c.bf16 %v1959, %v1959
      %v1978 = vpack.c.bf16 %v1912, %v1912
      %v1979 = vpack.c.bf16 %v1960, %v1960
      %v1980 = vpack.c.bf16 %v1913, %v1913
      %v1981 = vpack.c.bf16 %v1961, %v1961
      %v1982 = vpack.c.bf16 %v1914, %v1914
      %v1983 = vpack.c.bf16 %v1962, %v1962
      %v1984 = vpack.c.bf16 %v1915, %v1915
      %v1985 = vpack.c.bf16 %v1963, %v1963
      %v1986 = vpack.c.bf16 %v1916, %v1916
      %v1987 = vpack.c.bf16 %v1964, %v1964
      %v1988 = vpack.c.bf16 %v1917, %v1917
      %v1989 = vpack.c.bf16 %v1965, %v1965
      %1990 = vmatprep.subr.bf16.mxu0 %v1975
      %1991 = vmatpush1.bf16.xpose.msra.mxu0 %v1974
      %1992 = vmatprep.subr.bf16.mxu0 0
      %1993 = vmatpush1.bf16.xpose.msra.mxu0 0
      %1994 = vmatprep.subr.bf16.mxu0 0
      %1995 = vmatpush1.bf16.xpose.msra.mxu0 0
      %1996 = vmatprep.subr.bf16.mxu0 0
      %1997 = vmatpush1.bf16.xpose.msra.mxu0 0
      %1998 = vmatprep.subr.bf16.mxu0 0
      %1999 = vmatpush1.bf16.xpose.msra.mxu0 0
      %2000 = vmatprep.subr.bf16.mxu0 0
      %2001 = vmatpush1.bf16.xpose.msra.mxu0 0
      %2002 = vmatprep.subr.bf16.mxu0 0
      %2003 = vmatpush1.bf16.xpose.msra.mxu0 0
      %2004 = vmatprep.subr.bf16.mxu0 0
      %2005 = vmatpush1.bf16.xpose.msra.mxu0 0
      %2006 = vmatprep.subr.bf16.mxu0 0
      %2007 = vmatpush1.bf16.xpose.msra.mxu0 0
      %2008 = vmatprep.subr.bf16.mxu0 0
      %2009 = vmatpush1.bf16.xpose.msra.mxu0 0
      %2010 = vmatprep.subr.bf16.mxu0 0
      %2011 = vmatpush1.bf16.xpose.msra.mxu0 0
      %2012 = vmatprep.subr.bf16.mxu0 0
      %2013 = vmatpush1.bf16.xpose.msra.mxu0 0
      %2014 = vmatprep.subr.bf16.mxu0 0
      %2015 = vmatpush1.bf16.xpose.msra.mxu0 0
      %2016 = vmatprep.subr.bf16.mxu0 0
      %2017 = vmatpush1.bf16.xpose.msra.mxu0 0
      %2018 = vmatprep.subr.bf16.mxu0 0
      %2019 = vmatpush1.bf16.xpose.msra.mxu0 0
      %2020 = vmatprep.subr.bf16.mxu0 0
      %2021 = vmatpush1.bf16.xpose.msra.mxu0 0
      %2022 = vmatprep.mubr.bf16.mxu0 %v1943
      %2023 = vmatmul.mubr.bf16.gmra.mrb[0].mxu0 %v1942
      %v2024 = vpop.f32.mrb[0].mxu0
      %v2025 = vadd.f32 0.0, %v2024
      %v2026 = vpop.f32.mrb[0].mxu0
      %v2027 = vpop.f32.mrb[0].mxu0
      %v2028 = vpop.f32.mrb[0].mxu0
      %2029 = vdwg.mxu0
      %2030 = vmatprep.subr.bf16.mxu0 %v1977
      %2031 = vmatpush1.bf16.xpose.msra.mxu0 %v1976
      %2032 = vmatprep.subr.bf16.mxu0 0
      %2033 = vmatpush1.bf16.xpose.msra.mxu0 0
      %2034 = vmatprep.subr.bf16.mxu0 0
      %2035 = vmatpush1.bf16.xpose.msra.mxu0 0
      %2036 = vmatprep.subr.bf16.mxu0 0
      %2037 = vmatpush1.bf16.xpose.msra.mxu0 0
      %2038 = vmatprep.subr.bf16.mxu0 0
      %2039 = vmatpush1.bf16.xpose.msra.mxu0 0
      %2040 = vmatprep.subr.bf16.mxu0 0
      %2041 = vmatpush1.bf16.xpose.msra.mxu0 0
      %2042 = vmatprep.subr.bf16.mxu0 0
      %2043 = vmatpush1.bf16.xpose.msra.mxu0 0
      %2044 = vmatprep.subr.bf16.mxu0 0
      %2045 = vmatpush1.bf16.xpose.msra.mxu0 0
      %2046 = vmatprep.subr.bf16.mxu0 0
      %2047 = vmatpush1.bf16.xpose.msra.mxu0 0
      %2048 = vmatprep.subr.bf16.mxu0 0
      %2049 = vmatpush1.bf16.xpose.msra.mxu0 0
      %2050 = vmatprep.subr.bf16.mxu0 0
      %2051 = vmatpush1.bf16.xpose.msra.mxu0 0
      %2052 = vmatprep.subr.bf16.mxu0 0
      %2053 = vmatpush1.bf16.xpose.msra.mxu0 0
      %2054 = vmatprep.subr.bf16.mxu0 0
      %2055 = vmatpush1.bf16.xpose.msra.mxu0 0
      %2056 = vmatprep.subr.bf16.mxu0 0
      %2057 = vmatpush1.bf16.xpose.msra.mxu0 0
      %2058 = vmatprep.subr.bf16.mxu0 0
      %2059 = vmatpush1.bf16.xpose.msra.mxu0 0
      %2060 = vmatprep.subr.bf16.mxu0 0
      %2061 = vmatpush1.bf16.xpose.msra.mxu0 0
      %2062 = vmatprep.mubr.bf16.mxu0 %v1945
      %2063 = vmatmul.mubr.bf16.gmra.mrb[0].mxu0 %v1944
      %v2064 = vpop.f32.mrb[0].mxu0
      %v2065 = vadd.f32 0.0, %v2064
      %v2066 = vpop.f32.mrb[0].mxu0
      %v2067 = vpop.f32.mrb[0].mxu0
      %v2068 = vpop.f32.mrb[0].mxu0
      %2069 = vdwg.mxu0
      %2070 = vmatprep.subr.bf16.mxu0 %v1979
      %2071 = vmatpush1.bf16.xpose.msra.mxu0 %v1978
      %2072 = vmatprep.subr.bf16.mxu0 0
      %2073 = vmatpush1.bf16.xpose.msra.mxu0 0
      %2074 = vmatprep.subr.bf16.mxu0 0
      %2075 = vmatpush1.bf16.xpose.msra.mxu0 0
      %2076 = vmatprep.subr.bf16.mxu0 0
      %2077 = vmatpush1.bf16.xpose.msra.mxu0 0
      %2078 = vmatprep.subr.bf16.mxu0 0
      %2079 = vmatpush1.bf16.xpose.msra.mxu0 0
      %2080 = vmatprep.subr.bf16.mxu0 0
      %2081 = vmatpush1.bf16.xpose.msra.mxu0 0
      %2082 = vmatprep.subr.bf16.mxu0 0
      %2083 = vmatpush1.bf16.xpose.msra.mxu0 0
      %2084 = vmatprep.subr.bf16.mxu0 0
      %2085 = vmatpush1.bf16.xpose.msra.mxu0 0
      %2086 = vmatprep.subr.bf16.mxu0 0
      %2087 = vmatpush1.bf16.xpose.msra.mxu0 0
      %2088 = vmatprep.subr.bf16.mxu0 0
      %2089 = vmatpush1.bf16.xpose.msra.mxu0 0
      %2090 = vmatprep.subr.bf16.mxu0 0
      %2091 = vmatpush1.bf16.xpose.msra.mxu0 0
      %2092 = vmatprep.subr.bf16.mxu0 0
      %2093 = vmatpush1.bf16.xpose.msra.mxu0 0
      %2094 = vmatprep.subr.bf16.mxu0 0
      %2095 = vmatpush1.bf16.xpose.msra.mxu0 0
      %2096 = vmatprep.subr.bf16.mxu0 0
      %2097 = vmatpush1.bf16.xpose.msra.mxu0 0
      %2098 = vmatprep.subr.bf16.mxu0 0
      %2099 = vmatpush1.bf16.xpose.msra.mxu0 0
      %2100 = vmatprep.subr.bf16.mxu0 0
      %2101 = vmatpush1.bf16.xpose.msra.mxu0 0
      %2102 = vmatprep.mubr.bf16.mxu0 %v1947
      %2103 = vmatmul.mubr.bf16.gmra.mrb[0].mxu0 %v1946
      %v2104 = vpop.f32.mrb[0].mxu0
      %v2105 = vadd.f32 0.0, %v2104
      %v2106 = vpop.f32.mrb[0].mxu0
      %v2107 = vpop.f32.mrb[0].mxu0
      %v2108 = vpop.f32.mrb[0].mxu0
      %2109 = vdwg.mxu0
      %2110 = vmatprep.subr.bf16.mxu0 %v1981
      %2111 = vmatpush1.bf16.xpose.msra.mxu0 %v1980
      %2112 = vmatprep.subr.bf16.mxu0 0
      %2113 = vmatpush1.bf16.xpose.msra.mxu0 0
      %2114 = vmatprep.subr.bf16.mxu0 0
      %2115 = vmatpush1.bf16.xpose.msra.mxu0 0
      %2116 = vmatprep.subr.bf16.mxu0 0
      %2117 = vmatpush1.bf16.xpose.msra.mxu0 0
      %2118 = vmatprep.subr.bf16.mxu0 0
      %2119 = vmatpush1.bf16.xpose.msra.mxu0 0
      %2120 = vmatprep.subr.bf16.mxu0 0
      %2121 = vmatpush1.bf16.xpose.msra.mxu0 0
      %2122 = vmatprep.subr.bf16.mxu0 0
      %2123 = vmatpush1.bf16.xpose.msra.mxu0 0
      %2124 = vmatprep.subr.bf16.mxu0 0
      %2125 = vmatpush1.bf16.xpose.msra.mxu0 0
      %2126 = vmatprep.subr.bf16.mxu0 0
      %2127 = vmatpush1.bf16.xpose.msra.mxu0 0
      %2128 = vmatprep.subr.bf16.mxu0 0
      %2129 = vmatpush1.bf16.xpose.msra.mxu0 0
      %2130 = vmatprep.subr.bf16.mxu0 0
      %2131 = vmatpush1.bf16.xpose.msra.mxu0 0
      %2132 = vmatprep.subr.bf16.mxu0 0
      %2133 = vmatpush1.bf16.xpose.msra.mxu0 0
      %2134 = vmatprep.subr.bf16.mxu0 0
      %2135 = vmatpush1.bf16.xpose.msra.mxu0 0
      %2136 = vmatprep.subr.bf16.mxu0 0
      %2137 = vmatpush1.bf16.xpose.msra.mxu0 0
      %2138 = vmatprep.subr.bf16.mxu0 0
      %2139 = vmatpush1.bf16.xpose.msra.mxu0 0
      %2140 = vmatprep.subr.bf16.mxu0 0
      %2141 = vmatpush1.bf16.xpose.msra.mxu0 0
      %2142 = vmatprep.mubr.bf16.mxu0 %v1949
      %2143 = vmatmul.mubr.bf16.gmra.mrb[0].mxu0 %v1948
      %v2144 = vpop.f32.mrb[0].mxu0
      %v2145 = vadd.f32 0.0, %v2144
      %v2146 = vpop.f32.mrb[0].mxu0
      %v2147 = vpop.f32.mrb[0].mxu0
      %v2148 = vpop.f32.mrb[0].mxu0
      %2149 = vdwg.mxu0
      %2150 = vmatprep.subr.bf16.mxu0 %v1983
      %2151 = vmatpush1.bf16.xpose.msra.mxu0 %v1982
      %2152 = vmatprep.subr.bf16.mxu0 0
      %2153 = vmatpush1.bf16.xpose.msra.mxu0 0
      %2154 = vmatprep.subr.bf16.mxu0 0
      %2155 = vmatpush1.bf16.xpose.msra.mxu0 0
      %2156 = vmatprep.subr.bf16.mxu0 0
      %2157 = vmatpush1.bf16.xpose.msra.mxu0 0
      %2158 = vmatprep.subr.bf16.mxu0 0
      %2159 = vmatpush1.bf16.xpose.msra.mxu0 0
      %2160 = vmatprep.subr.bf16.mxu0 0
      %2161 = vmatpush1.bf16.xpose.msra.mxu0 0
      %2162 = vmatprep.subr.bf16.mxu0 0
      %2163 = vmatpush1.bf16.xpose.msra.mxu0 0
      %2164 = vmatprep.subr.bf16.mxu0 0
      %2165 = vmatpush1.bf16.xpose.msra.mxu0 0
      %2166 = vmatprep.subr.bf16.mxu0 0
      %2167 = vmatpush1.bf16.xpose.msra.mxu0 0
      %2168 = vmatprep.subr.bf16.mxu0 0
      %2169 = vmatpush1.bf16.xpose.msra.mxu0 0
      %2170 = vmatprep.subr.bf16.mxu0 0
      %2171 = vmatpush1.bf16.xpose.msra.mxu0 0
      %2172 = vmatprep.subr.bf16.mxu0 0
      %2173 = vmatpush1.bf16.xpose.msra.mxu0 0
      %2174 = vmatprep.subr.bf16.mxu0 0
      %2175 = vmatpush1.bf16.xpose.msra.mxu0 0
      %2176 = vmatprep.subr.bf16.mxu0 0
      %2177 = vmatpush1.bf16.xpose.msra.mxu0 0
      %2178 = vmatprep.subr.bf16.mxu0 0
      %2179 = vmatpush1.bf16.xpose.msra.mxu0 0
      %2180 = vmatprep.subr.bf16.mxu0 0
      %2181 = vmatpush1.bf16.xpose.msra.mxu0 0
      %2182 = vmatprep.mubr.bf16.mxu0 %v1951
      %2183 = vmatmul.mubr.bf16.gmra.mrb[0].mxu0 %v1950
      %v2184 = vpop.f32.mrb[0].mxu0
      %v2185 = vadd.f32 0.0, %v2184
      %v2186 = vpop.f32.mrb[0].mxu0
      %v2187 = vpop.f32.mrb[0].mxu0
      %v2188 = vpop.f32.mrb[0].mxu0
      %2189 = vdwg.mxu0
      %2190 = vmatprep.subr.bf16.mxu0 %v1985
      %2191 = vmatpush1.bf16.xpose.msra.mxu0 %v1984
      %2192 = vmatprep.subr.bf16.mxu0 0
      %2193 = vmatpush1.bf16.xpose.msra.mxu0 0
      %2194 = vmatprep.subr.bf16.mxu0 0
      %2195 = vmatpush1.bf16.xpose.msra.mxu0 0
      %2196 = vmatprep.subr.bf16.mxu0 0
      %2197 = vmatpush1.bf16.xpose.msra.mxu0 0
      %2198 = vmatprep.subr.bf16.mxu0 0
      %2199 = vmatpush1.bf16.xpose.msra.mxu0 0
      %2200 = vmatprep.subr.bf16.mxu0 0
      %2201 = vmatpush1.bf16.xpose.msra.mxu0 0
      %2202 = vmatprep.subr.bf16.mxu0 0
      %2203 = vmatpush1.bf16.xpose.msra.mxu0 0
      %2204 = vmatprep.subr.bf16.mxu0 0
      %2205 = vmatpush1.bf16.xpose.msra.mxu0 0
      %2206 = vmatprep.subr.bf16.mxu0 0
      %2207 = vmatpush1.bf16.xpose.msra.mxu0 0
      %2208 = vmatprep.subr.bf16.mxu0 0
      %2209 = vmatpush1.bf16.xpose.msra.mxu0 0
      %2210 = vmatprep.subr.bf16.mxu0 0
      %2211 = vmatpush1.bf16.xpose.msra.mxu0 0
      %2212 = vmatprep.subr.bf16.mxu0 0
      %2213 = vmatpush1.bf16.xpose.msra.mxu0 0
      %2214 = vmatprep.subr.bf16.mxu0 0
      %2215 = vmatpush1.bf16.xpose.msra.mxu0 0
      %2216 = vmatprep.subr.bf16.mxu0 0
      %2217 = vmatpush1.bf16.xpose.msra.mxu0 0
      %2218 = vmatprep.subr.bf16.mxu0 0
      %2219 = vmatpush1.bf16.xpose.msra.mxu0 0
      %2220 = vmatprep.subr.bf16.mxu0 0
      %2221 = vmatpush1.bf16.xpose.msra.mxu0 0
      %2222 = vmatprep.mubr.bf16.mxu0 %v1953
      %2223 = vmatmul.mubr.bf16.gmra.mrb[0].mxu0 %v1952
      %v2224 = vpop.f32.mrb[0].mxu0
      %v2225 = vadd.f32 0.0, %v2224
      %v2226 = vpop.f32.mrb[0].mxu0
      %v2227 = vpop.f32.mrb[0].mxu0
      %v2228 = vpop.f32.mrb[0].mxu0
      %2229 = vdwg.mxu0
      %2230 = vmatprep.subr.bf16.mxu0 %v1987
      %2231 = vmatpush1.bf16.xpose.msra.mxu0 %v1986
      %2232 = vmatprep.subr.bf16.mxu0 0
      %2233 = vmatpush1.bf16.xpose.msra.mxu0 0
      %2234 = vmatprep.subr.bf16.mxu0 0
      %2235 = vmatpush1.bf16.xpose.msra.mxu0 0
      %2236 = vmatprep.subr.bf16.mxu0 0
      %2237 = vmatpush1.bf16.xpose.msra.mxu0 0
      %2238 = vmatprep.subr.bf16.mxu0 0
      %2239 = vmatpush1.bf16.xpose.msra.mxu0 0
      %2240 = vmatprep.subr.bf16.mxu0 0
      %2241 = vmatpush1.bf16.xpose.msra.mxu0 0
      %2242 = vmatprep.subr.bf16.mxu0 0
      %2243 = vmatpush1.bf16.xpose.msra.mxu0 0
      %2244 = vmatprep.subr.bf16.mxu0 0
      %2245 = vmatpush1.bf16.xpose.msra.mxu0 0
      %2246 = vmatprep.subr.bf16.mxu0 0
      %2247 = vmatpush1.bf16.xpose.msra.mxu0 0
      %2248 = vmatprep.subr.bf16.mxu0 0
      %2249 = vmatpush1.bf16.xpose.msra.mxu0 0
      %2250 = vmatprep.subr.bf16.mxu0 0
      %2251 = vmatpush1.bf16.xpose.msra.mxu0 0
      %2252 = vmatprep.subr.bf16.mxu0 0
      %2253 = vmatpush1.bf16.xpose.msra.mxu0 0
      %2254 = vmatprep.subr.bf16.mxu0 0
      %2255 = vmatpush1.bf16.xpose.msra.mxu0 0
      %2256 = vmatprep.subr.bf16.mxu0 0
      %2257 = vmatpush1.bf16.xpose.msra.mxu0 0
      %2258 = vmatprep.subr.bf16.mxu0 0
      %2259 = vmatpush1.bf16.xpose.msra.mxu0 0
      %2260 = vmatprep.subr.bf16.mxu0 0
      %2261 = vmatpush1.bf16.xpose.msra.mxu0 0
      %2262 = vmatprep.mubr.bf16.mxu0 %v1955
      %2263 = vmatmul.mubr.bf16.gmra.mrb[0].mxu0 %v1954
      %v2264 = vpop.f32.mrb[0].mxu0
      %v2265 = vadd.f32 0.0, %v2264
      %v2266 = vpop.f32.mrb[0].mxu0
      %v2267 = vpop.f32.mrb[0].mxu0
      %v2268 = vpop.f32.mrb[0].mxu0
      %2269 = vdwg.mxu0
      %2270 = vmatprep.subr.bf16.mxu0 %v1989
      %2271 = vmatpush1.bf16.xpose.msra.mxu0 %v1988
      %2272 = vmatprep.subr.bf16.mxu0 0
      %2273 = vmatpush1.bf16.xpose.msra.mxu0 0
      %2274 = vmatprep.subr.bf16.mxu0 0
      %2275 = vmatpush1.bf16.xpose.msra.mxu0 0
      %2276 = vmatprep.subr.bf16.mxu0 0
      %2277 = vmatpush1.bf16.xpose.msra.mxu0 0
      %2278 = vmatprep.subr.bf16.mxu0 0
      %2279 = vmatpush1.bf16.xpose.msra.mxu0 0
      %2280 = vmatprep.subr.bf16.mxu0 0
      %2281 = vmatpush1.bf16.xpose.msra.mxu0 0
      %2282 = vmatprep.subr.bf16.mxu0 0
      %2283 = vmatpush1.bf16.xpose.msra.mxu0 0
      %2284 = vmatprep.subr.bf16.mxu0 0
      %2285 = vmatpush1.bf16.xpose.msra.mxu0 0
      %2286 = vmatprep.subr.bf16.mxu0 0
      %2287 = vmatpush1.bf16.xpose.msra.mxu0 0
      %2288 = vmatprep.subr.bf16.mxu0 0
      %2289 = vmatpush1.bf16.xpose.msra.mxu0 0
      %2290 = vmatprep.subr.bf16.mxu0 0
      %2291 = vmatpush1.bf16.xpose.msra.mxu0 0
      %2292 = vmatprep.subr.bf16.mxu0 0
      %2293 = vmatpush1.bf16.xpose.msra.mxu0 0
      %2294 = vmatprep.subr.bf16.mxu0 0
      %2295 = vmatpush1.bf16.xpose.msra.mxu0 0
      %2296 = vmatprep.subr.bf16.mxu0 0
      %2297 = vmatpush1.bf16.xpose.msra.mxu0 0
      %2298 = vmatprep.subr.bf16.mxu0 0
      %2299 = vmatpush1.bf16.xpose.msra.mxu0 0
      %2300 = vmatprep.subr.bf16.mxu0 0
      %2301 = vmatpush1.bf16.xpose.msra.mxu0 0
      %2302 = vmatprep.mubr.bf16.mxu0 %v1957
      %2303 = vmatmul.mubr.bf16.gmra.mrb[0].mxu0 %v1956
      %v2304 = vpop.f32.mrb[0].mxu0
      %v2305 = vadd.f32 0.0, %v2304
      %v2306 = vpop.f32.mrb[0].mxu0
      %v2307 = vpop.f32.mrb[0].mxu0
      %v2308 = vpop.f32.mrb[0].mxu0
      %2309 = vdwg.mxu0
      %v2310 = vld [vmem:[%s9] sm:$0x1]
      %v2311 = vld [vmem:[%s9 + $0x1] sm:$0x1]
      %v2312 = vld [vmem:[%s9 + $0x2] sm:$0x1]
      %v2313 = vld [vmem:[%s9 + $0x3] sm:$0x1]
      %v2314 = vld [vmem:[%s9 + $0x4] sm:$0x1]
      %v2315 = vld [vmem:[%s9 + $0x5] sm:$0x1]
      %v2316 = vld [vmem:[%s9 + $0x6] sm:$0x1]
      %v2317 = vld [vmem:[%s9 + $0x7] sm:$0x1]
      %v2326 = vlaneseq
      %v2327 = vshrl.u32 %v2326, 7
      %v2328 = vsub.s32 0, %v2327
      %v2329 = vrot.slane %v2310, %v2328
      %v2330 = vlaneseq
      %v2331 = vshrl.u32 %v2330, 7
      %v2332 = vsub.s32 0, %v2331
      %v2333 = vrot.slane %v2311, %v2332
      %v2334 = vlaneseq
      %v2335 = vshrl.u32 %v2334, 7
      %v2336 = vsub.s32 0, %v2335
      %v2337 = vrot.slane %v2312, %v2336
      %v2338 = vlaneseq
      %v2339 = vshrl.u32 %v2338, 7
      %v2340 = vsub.s32 0, %v2339
      %v2341 = vrot.slane %v2313, %v2340
      %v2342 = vlaneseq
      %v2343 = vshrl.u32 %v2342, 7
      %v2344 = vsub.s32 0, %v2343
      %v2345 = vrot.slane %v2314, %v2344
      %v2346 = vlaneseq
      %v2347 = vshrl.u32 %v2346, 7
      %v2348 = vsub.s32 0, %v2347
      %v2349 = vrot.slane %v2315, %v2348
      %v2350 = vlaneseq
      %v2351 = vshrl.u32 %v2350, 7
      %v2352 = vsub.s32 0, %v2351
      %v2353 = vrot.slane %v2316, %v2352
      %v2354 = vlaneseq
      %v2355 = vshrl.u32 %v2354, 7
      %v2356 = vsub.s32 0, %v2355
      %v2357 = vrot.slane %v2317, %v2356
      %2358 = vset.pattern.permute.xlu0 0
      %2359 = vperm.xlu0 %2358, %v2329
      %v2360 = vpop.permute.xlu0 %2359
      %2362 = vset.pattern.permute.xlu0 0
      %2363 = vperm.xlu0 %2362, %v2333
      %v2364 = vpop.permute.xlu0 %2363
      %2366 = vset.pattern.permute.xlu0 0
      %2367 = vperm.xlu0 %2366, %v2337
      %v2368 = vpop.permute.xlu0 %2367
      %2370 = vset.pattern.permute.xlu0 0
      %2371 = vperm.xlu0 %2370, %v2341
      %v2372 = vpop.permute.xlu0 %2371
      %2374 = vset.pattern.permute.xlu0 0
      %2375 = vperm.xlu0 %2374, %v2345
      %v2376 = vpop.permute.xlu0 %2375
      %2378 = vset.pattern.permute.xlu0 0
      %2379 = vperm.xlu0 %2378, %v2349
      %v2380 = vpop.permute.xlu0 %2379
      %2382 = vset.pattern.permute.xlu0 0
      %2383 = vperm.xlu0 %2382, %v2353
      %v2384 = vpop.permute.xlu0 %2383
      %2386 = vset.pattern.permute.xlu0 0
      %2387 = vperm.xlu0 %2386, %v2357
      %v2388 = vpop.permute.xlu0 %2387
      %v2390 = vmul.f32 %v2025, %v2360
      %v2391 = vmul.f32 %v2065, %v2364
      %v2392 = vmul.f32 %v2105, %v2368
      %v2393 = vmul.f32 %v2145, %v2372
      %v2394 = vmul.f32 %v2185, %v2376
      %v2395 = vmul.f32 %v2225, %v2380
      %v2396 = vmul.f32 %v2265, %v2384
      %v2397 = vmul.f32 %v2305, %v2388
      %vm2398 = vcmask 27648
      %v2399 = vsel %vm2398, %v2390, -inf
      %2400 = vmax.xlane.f32.xlu0 %v2399
      %v2401 = vpop.xlane.xlu0 %2400
      %v2402 = vsel %vm2398, %v2391, -inf
      %2403 = vmax.xlane.f32.xlu0 %v2402
      %v2404 = vpop.xlane.xlu0 %2403
      %v2405 = vsel %vm2398, %v2392, -inf
      %2406 = vmax.xlane.f32.xlu0 %v2405
      %v2407 = vpop.xlane.xlu0 %2406
      %v2408 = vsel %vm2398, %v2393, -inf
      %2409 = vmax.xlane.f32.xlu0 %v2408
      %v2410 = vpop.xlane.xlu0 %2409
      %v2411 = vsel %vm2398, %v2394, -inf
      %2412 = vmax.xlane.f32.xlu0 %v2411
      %v2413 = vpop.xlane.xlu0 %2412
      %v2414 = vsel %vm2398, %v2395, -inf
      %2415 = vmax.xlane.f32.xlu0 %v2414
      %v2416 = vpop.xlane.xlu0 %2415
      %v2417 = vsel %vm2398, %v2396, -inf
      %2418 = vmax.xlane.f32.xlu0 %v2417
      %v2419 = vpop.xlane.xlu0 %2418
      %v2420 = vsel %vm2398, %v2397, -inf
      %2421 = vmax.xlane.f32.xlu0 %v2420
      %v2422 = vpop.xlane.xlu0 %2421
      %v2423 = vsub.f32 %v2390, %v2401
      %v2424 = vsub.f32 %v2391, %v2404
      %v2425 = vsub.f32 %v2392, %v2407
      %v2426 = vsub.f32 %v2393, %v2410
      %v2427 = vsub.f32 %v2394, %v2413
      %v2428 = vsub.f32 %v2395, %v2416
      %v2429 = vsub.f32 %v2396, %v2419
      %v2430 = vsub.f32 %v2397, %v2422
      %v2431 = vmul.f32 %v2423, 1.442695
      %v2432 = vpow.pop %v2431
      %v2433 = vmul.f32 %v2424, 1.442695
      %v2434 = vpow.pop %v2433
      %v2435 = vmul.f32 %v2425, 1.442695
      %v2436 = vpow.pop %v2435
      %v2437 = vmul.f32 %v2426, 1.442695
      %v2438 = vpow.pop %v2437
      %v2439 = vmul.f32 %v2427, 1.442695
      %v2440 = vpow.pop %v2439
      %v2441 = vmul.f32 %v2428, 1.442695
      %v2442 = vpow.pop %v2441
      %v2443 = vmul.f32 %v2429, 1.442695
      %v2444 = vpow.pop %v2443
      %v2445 = vmul.f32 %v2430, 1.442695
      %v2446 = vpow.pop %v2445
      %v2447 = vsel %vm2398, %v2432, 0.0
      %2448 = vadd.xlane.f32.xlu0 %v2447
      %v2449 = vpop.xlane.xlu0 %2448
      %v2450 = vsel %vm2398, %v2434, 0.0
      %2451 = vadd.xlane.f32.xlu0 %v2450
      %v2452 = vpop.xlane.xlu0 %2451
      %v2453 = vsel %vm2398, %v2436, 0.0
      %2454 = vadd.xlane.f32.xlu0 %v2453
      %v2455 = vpop.xlane.xlu0 %2454
      %v2456 = vsel %vm2398, %v2438, 0.0
      %2457 = vadd.xlane.f32.xlu0 %v2456
      %v2458 = vpop.xlane.xlu0 %2457
      %v2459 = vsel %vm2398, %v2440, 0.0
      %2460 = vadd.xlane.f32.xlu0 %v2459
      %v2461 = vpop.xlane.xlu0 %2460
      %v2462 = vsel %vm2398, %v2442, 0.0
      %2463 = vadd.xlane.f32.xlu0 %v2462
      %v2464 = vpop.xlane.xlu0 %2463
      %v2465 = vsel %vm2398, %v2444, 0.0
      %2466 = vadd.xlane.f32.xlu0 %v2465
      %v2467 = vpop.xlane.xlu0 %2466
      %v2468 = vsel %vm2398, %v2446, 0.0
      %2469 = vadd.xlane.f32.xlu0 %v2468
      %v2470 = vpop.xlane.xlu0 %2469
      %v2471 = vrcp.pop %v2449
      %v2472 = vrcp.pop %v2452
      %v2473 = vrcp.pop %v2455
      %v2474 = vrcp.pop %v2458
      %v2475 = vrcp.pop %v2461
      %v2476 = vrcp.pop %v2464
      %v2477 = vrcp.pop %v2467
      %v2478 = vrcp.pop %v2470
      %v2479 = vmul.f32 %v2432, %v2471
      %v2480 = vmul.f32 %v2434, %v2472
      %v2481 = vmul.f32 %v2436, %v2473
      %v2482 = vmul.f32 %v2438, %v2474
      %v2483 = vmul.f32 %v2440, %v2475
      %v2484 = vmul.f32 %v2442, %v2476
      %v2485 = vmul.f32 %v2444, %v2477
      %v2486 = vmul.f32 %v2446, %v2478
      %v2491 = vcombine.high %v695, %v695
      %v2492 = vcombine.high %v698, %v698
      %v2493 = vcombine.high %v703, %v703
      %v2494 = vcombine.high %v706, %v706
      %v2499 = vpack.c.bf16 %v2479, %v2479
      %v2500 = vpack.c.bf16 %v2480, %v2480
      %v2501 = vpack.c.bf16 %v2481, %v2481
      %v2502 = vpack.c.bf16 %v2482, %v2482
      %v2503 = vpack.c.bf16 %v2483, %v2483
      %v2504 = vpack.c.bf16 %v2484, %v2484
      %v2505 = vpack.c.bf16 %v2485, %v2485
      %v2506 = vpack.c.bf16 %v2486, %v2486
      %v2507 = vpack.c.bf16 %v695, %v695
      %v2508 = vpack.c.bf16 %v2491, %v2491
      %v2509 = vpack.c.bf16 %v698, %v698
      %v2510 = vpack.c.bf16 %v2492, %v2492
      %v2511 = vpack.c.bf16 %v703, %v703
      %v2512 = vpack.c.bf16 %v2493, %v2493
      %v2513 = vpack.c.bf16 %v706, %v706
      %v2514 = vpack.c.bf16 %v2494, %v2494
      %vm2515 = vcmask 31744
      %v2517 = vsel %vm2515, %v2499, 0
      %vm2519 = vcmask 1041408
      %v2521 = vsel %vm2519, %v2507, 0
      %2523 = vmatprep.subr.bf16.mxu0 0
      %2524 = vmatpush1.bf16.msra.mxu0 %v2521
      %2525 = vmatprep.subr.bf16.mxu0 0
      %2526 = vmatpush1.bf16.msra.mxu0 0
      %2527 = vmatprep.subr.bf16.mxu0 0
      %2528 = vmatpush1.bf16.msra.mxu0 0
      %2529 = vmatprep.subr.bf16.mxu0 0
      %2530 = vmatpush1.bf16.msra.mxu0 0
      %2531 = vmatprep.subr.bf16.mxu0 0
      %2532 = vmatpush1.bf16.msra.mxu0 0
      %2533 = vmatprep.subr.bf16.mxu0 0
      %2534 = vmatpush1.bf16.msra.mxu0 0
      %2535 = vmatprep.subr.bf16.mxu0 0
      %2536 = vmatpush1.bf16.msra.mxu0 0
      %2537 = vmatprep.subr.bf16.mxu0 0
      %2538 = vmatpush1.bf16.msra.mxu0 0
      %2539 = vmatprep.subr.bf16.mxu0 0
      %2540 = vmatpush1.bf16.msra.mxu0 0
      %2541 = vmatprep.subr.bf16.mxu0 0
      %2542 = vmatpush1.bf16.msra.mxu0 0
      %2543 = vmatprep.subr.bf16.mxu0 0
      %2544 = vmatpush1.bf16.msra.mxu0 0
      %2545 = vmatprep.subr.bf16.mxu0 0
      %2546 = vmatpush1.bf16.msra.mxu0 0
      %2547 = vmatprep.subr.bf16.mxu0 0
      %2548 = vmatpush1.bf16.msra.mxu0 0
      %2549 = vmatprep.subr.bf16.mxu0 0
      %2550 = vmatpush1.bf16.msra.mxu0 0
      %2551 = vmatprep.subr.bf16.mxu0 0
      %2552 = vmatpush1.bf16.msra.mxu0 0
      %2553 = vmatprep.subr.bf16.mxu0 0
      %2554 = vmatpush1.bf16.msra.mxu0 0
      %2555 = vmatprep.mubr.bf16.mxu0 0
      %2556 = vmatmul.mubr.bf16.gmra.mrb[0].mxu0 %v2517
      %v2557 = vpop.f32.mrb[0].mxu0
      %v2558 = vadd.f32 0.0, %v2557
      %v2559 = vpop.f32.mrb[0].mxu0
      %v2560 = vpop.f32.mrb[0].mxu0
      %v2561 = vpop.f32.mrb[0].mxu0
      %2562 = vdwg.mxu0
      %v2564 = vsel %vm2515, %v2500, 0
      %v2567 = vsel %vm2519, %v2508, 0
      %2569 = vmatprep.subr.bf16.mxu0 0
      %2570 = vmatpush1.bf16.msra.mxu0 %v2567
      %2571 = vmatprep.subr.bf16.mxu0 0
      %2572 = vmatpush1.bf16.msra.mxu0 0
      %2573 = vmatprep.subr.bf16.mxu0 0
      %2574 = vmatpush1.bf16.msra.mxu0 0
      %2575 = vmatprep.subr.bf16.mxu0 0
      %2576 = vmatpush1.bf16.msra.mxu0 0
      %2577 = vmatprep.subr.bf16.mxu0 0
      %2578 = vmatpush1.bf16.msra.mxu0 0
      %2579 = vmatprep.subr.bf16.mxu0 0
      %2580 = vmatpush1.bf16.msra.mxu0 0
      %2581 = vmatprep.subr.bf16.mxu0 0
      %2582 = vmatpush1.bf16.msra.mxu0 0
      %2583 = vmatprep.subr.bf16.mxu0 0
      %2584 = vmatpush1.bf16.msra.mxu0 0
      %2585 = vmatprep.subr.bf16.mxu0 0
      %2586 = vmatpush1.bf16.msra.mxu0 0
      %2587 = vmatprep.subr.bf16.mxu0 0
      %2588 = vmatpush1.bf16.msra.mxu0 0
      %2589 = vmatprep.subr.bf16.mxu0 0
      %2590 = vmatpush1.bf16.msra.mxu0 0
      %2591 = vmatprep.subr.bf16.mxu0 0
      %2592 = vmatpush1.bf16.msra.mxu0 0
      %2593 = vmatprep.subr.bf16.mxu0 0
      %2594 = vmatpush1.bf16.msra.mxu0 0
      %2595 = vmatprep.subr.bf16.mxu0 0
      %2596 = vmatpush1.bf16.msra.mxu0 0
      %2597 = vmatprep.subr.bf16.mxu0 0
      %2598 = vmatpush1.bf16.msra.mxu0 0
      %2599 = vmatprep.subr.bf16.mxu0 0
      %2600 = vmatpush1.bf16.msra.mxu0 0
      %2601 = vmatprep.mubr.bf16.mxu0 0
      %2602 = vmatmul.mubr.bf16.gmra.mrb[0].mxu0 %v2564
      %v2603 = vpop.f32.mrb[0].mxu0
      %v2604 = vadd.f32 0.0, %v2603
      %v2605 = vpop.f32.mrb[0].mxu0
      %v2606 = vpop.f32.mrb[0].mxu0
      %v2607 = vpop.f32.mrb[0].mxu0
      %2608 = vdwg.mxu0
      %v2610 = vsel %vm2515, %v2501, 0
      %v2613 = vsel %vm2519, %v2509, 0
      %2615 = vmatprep.subr.bf16.mxu0 0
      %2616 = vmatpush1.bf16.msra.mxu0 %v2613
      %2617 = vmatprep.subr.bf16.mxu0 0
      %2618 = vmatpush1.bf16.msra.mxu0 0
      %2619 = vmatprep.subr.bf16.mxu0 0
      %2620 = vmatpush1.bf16.msra.mxu0 0
      %2621 = vmatprep.subr.bf16.mxu0 0
      %2622 = vmatpush1.bf16.msra.mxu0 0
      %2623 = vmatprep.subr.bf16.mxu0 0
      %2624 = vmatpush1.bf16.msra.mxu0 0
      %2625 = vmatprep.subr.bf16.mxu0 0
      %2626 = vmatpush1.bf16.msra.mxu0 0
      %2627 = vmatprep.subr.bf16.mxu0 0
      %2628 = vmatpush1.bf16.msra.mxu0 0
      %2629 = vmatprep.subr.bf16.mxu0 0
      %2630 = vmatpush1.bf16.msra.mxu0 0
      %2631 = vmatprep.subr.bf16.mxu0 0
      %2632 = vmatpush1.bf16.msra.mxu0 0
      %2633 = vmatprep.subr.bf16.mxu0 0
      %2634 = vmatpush1.bf16.msra.mxu0 0
      %2635 = vmatprep.subr.bf16.mxu0 0
      %2636 = vmatpush1.bf16.msra.mxu0 0
      %2637 = vmatprep.subr.bf16.mxu0 0
      %2638 = vmatpush1.bf16.msra.mxu0 0
      %2639 = vmatprep.subr.bf16.mxu0 0
      %2640 = vmatpush1.bf16.msra.mxu0 0
      %2641 = vmatprep.subr.bf16.mxu0 0
      %2642 = vmatpush1.bf16.msra.mxu0 0
      %2643 = vmatprep.subr.bf16.mxu0 0
      %2644 = vmatpush1.bf16.msra.mxu0 0
      %2645 = vmatprep.subr.bf16.mxu0 0
      %2646 = vmatpush1.bf16.msra.mxu0 0
      %2647 = vmatprep.mubr.bf16.mxu0 0
      %2648 = vmatmul.mubr.bf16.gmra.mrb[0].mxu0 %v2610
      %v2649 = vpop.f32.mrb[0].mxu0
      %v2650 = vadd.f32 0.0, %v2649
      %v2651 = vpop.f32.mrb[0].mxu0
      %v2652 = vpop.f32.mrb[0].mxu0
      %v2653 = vpop.f32.mrb[0].mxu0
      %2654 = vdwg.mxu0
      %v2656 = vsel %vm2515, %v2502, 0
      %v2659 = vsel %vm2519, %v2510, 0
      %2661 = vmatprep.subr.bf16.mxu0 0
      %2662 = vmatpush1.bf16.msra.mxu0 %v2659
      %2663 = vmatprep.subr.bf16.mxu0 0
      %2664 = vmatpush1.bf16.msra.mxu0 0
      %2665 = vmatprep.subr.bf16.mxu0 0
      %2666 = vmatpush1.bf16.msra.mxu0 0
      %2667 = vmatprep.subr.bf16.mxu0 0
      %2668 = vmatpush1.bf16.msra.mxu0 0
      %2669 = vmatprep.subr.bf16.mxu0 0
      %2670 = vmatpush1.bf16.msra.mxu0 0
      %2671 = vmatprep.subr.bf16.mxu0 0
      %2672 = vmatpush1.bf16.msra.mxu0 0
      %2673 = vmatprep.subr.bf16.mxu0 0
      %2674 = vmatpush1.bf16.msra.mxu0 0
      %2675 = vmatprep.subr.bf16.mxu0 0
      %2676 = vmatpush1.bf16.msra.mxu0 0
      %2677 = vmatprep.subr.bf16.mxu0 0
      %2678 = vmatpush1.bf16.msra.mxu0 0
      %2679 = vmatprep.subr.bf16.mxu0 0
      %2680 = vmatpush1.bf16.msra.mxu0 0
      %2681 = vmatprep.subr.bf16.mxu0 0
      %2682 = vmatpush1.bf16.msra.mxu0 0
      %2683 = vmatprep.subr.bf16.mxu0 0
      %2684 = vmatpush1.bf16.msra.mxu0 0
      %2685 = vmatprep.subr.bf16.mxu0 0
      %2686 = vmatpush1.bf16.msra.mxu0 0
      %2687 = vmatprep.subr.bf16.mxu0 0
      %2688 = vmatpush1.bf16.msra.mxu0 0
      %2689 = vmatprep.subr.bf16.mxu0 0
      %2690 = vmatpush1.bf16.msra.mxu0 0
      %2691 = vmatprep.subr.bf16.mxu0 0
      %2692 = vmatpush1.bf16.msra.mxu0 0
      %2693 = vmatprep.mubr.bf16.mxu0 0
      %2694 = vmatmul.mubr.bf16.gmra.mrb[0].mxu0 %v2656
      %v2695 = vpop.f32.mrb[0].mxu0
      %v2696 = vadd.f32 0.0, %v2695
      %v2697 = vpop.f32.mrb[0].mxu0
      %v2698 = vpop.f32.mrb[0].mxu0
      %v2699 = vpop.f32.mrb[0].mxu0
      %2700 = vdwg.mxu0
      %v2702 = vsel %vm2515, %v2503, 0
      %v2705 = vsel %vm2519, %v2511, 0
      %2707 = vmatprep.subr.bf16.mxu0 0
      %2708 = vmatpush1.bf16.msra.mxu0 %v2705
      %2709 = vmatprep.subr.bf16.mxu0 0
      %2710 = vmatpush1.bf16.msra.mxu0 0
      %2711 = vmatprep.subr.bf16.mxu0 0
      %2712 = vmatpush1.bf16.msra.mxu0 0
      %2713 = vmatprep.subr.bf16.mxu0 0
      %2714 = vmatpush1.bf16.msra.mxu0 0
      %2715 = vmatprep.subr.bf16.mxu0 0
      %2716 = vmatpush1.bf16.msra.mxu0 0
      %2717 = vmatprep.subr.bf16.mxu0 0
      %2718 = vmatpush1.bf16.msra.mxu0 0
      %2719 = vmatprep.subr.bf16.mxu0 0
      %2720 = vmatpush1.bf16.msra.mxu0 0
      %2721 = vmatprep.subr.bf16.mxu0 0
      %2722 = vmatpush1.bf16.msra.mxu0 0
      %2723 = vmatprep.subr.bf16.mxu0 0
      %2724 = vmatpush1.bf16.msra.mxu0 0
      %2725 = vmatprep.subr.bf16.mxu0 0
      %2726 = vmatpush1.bf16.msra.mxu0 0
      %2727 = vmatprep.subr.bf16.mxu0 0
      %2728 = vmatpush1.bf16.msra.mxu0 0
      %2729 = vmatprep.subr.bf16.mxu0 0
      %2730 = vmatpush1.bf16.msra.mxu0 0
      %2731 = vmatprep.subr.bf16.mxu0 0
      %2732 = vmatpush1.bf16.msra.mxu0 0
      %2733 = vmatprep.subr.bf16.mxu0 0
      %2734 = vmatpush1.bf16.msra.mxu0 0
      %2735 = vmatprep.subr.bf16.mxu0 0
      %2736 = vmatpush1.bf16.msra.mxu0 0
      %2737 = vmatprep.subr.bf16.mxu0 0
      %2738 = vmatpush1.bf16.msra.mxu0 0
      %2739 = vmatprep.mubr.bf16.mxu0 0
      %2740 = vmatmul.mubr.bf16.gmra.mrb[0].mxu0 %v2702
      %v2741 = vpop.f32.mrb[0].mxu0
      %v2742 = vadd.f32 0.0, %v2741
      %v2743 = vpop.f32.mrb[0].mxu0
      %v2744 = vpop.f32.mrb[0].mxu0
      %v2745 = vpop.f32.mrb[0].mxu0
      %2746 = vdwg.mxu0
      %v2748 = vsel %vm2515, %v2504, 0
      %v2751 = vsel %vm2519, %v2512, 0
      %2753 = vmatprep.subr.bf16.mxu0 0
      %2754 = vmatpush1.bf16.msra.mxu0 %v2751
      %2755 = vmatprep.subr.bf16.mxu0 0
      %2756 = vmatpush1.bf16.msra.mxu0 0
      %2757 = vmatprep.subr.bf16.mxu0 0
      %2758 = vmatpush1.bf16.msra.mxu0 0
      %2759 = vmatprep.subr.bf16.mxu0 0
      %2760 = vmatpush1.bf16.msra.mxu0 0
      %2761 = vmatprep.subr.bf16.mxu0 0
      %2762 = vmatpush1.bf16.msra.mxu0 0
      %2763 = vmatprep.subr.bf16.mxu0 0
      %2764 = vmatpush1.bf16.msra.mxu0 0
      %2765 = vmatprep.subr.bf16.mxu0 0
      %2766 = vmatpush1.bf16.msra.mxu0 0
      %2767 = vmatprep.subr.bf16.mxu0 0
      %2768 = vmatpush1.bf16.msra.mxu0 0
      %2769 = vmatprep.subr.bf16.mxu0 0
      %2770 = vmatpush1.bf16.msra.mxu0 0
      %2771 = vmatprep.subr.bf16.mxu0 0
      %2772 = vmatpush1.bf16.msra.mxu0 0
      %2773 = vmatprep.subr.bf16.mxu0 0
      %2774 = vmatpush1.bf16.msra.mxu0 0
      %2775 = vmatprep.subr.bf16.mxu0 0
      %2776 = vmatpush1.bf16.msra.mxu0 0
      %2777 = vmatprep.subr.bf16.mxu0 0
      %2778 = vmatpush1.bf16.msra.mxu0 0
      %2779 = vmatprep.subr.bf16.mxu0 0
      %2780 = vmatpush1.bf16.msra.mxu0 0
      %2781 = vmatprep.subr.bf16.mxu0 0
      %2782 = vmatpush1.bf16.msra.mxu0 0
      %2783 = vmatprep.subr.bf16.mxu0 0
      %2784 = vmatpush1.bf16.msra.mxu0 0
      %2785 = vmatprep.mubr.bf16.mxu0 0
      %2786 = vmatmul.mubr.bf16.gmra.mrb[0].mxu0 %v2748
      %v2787 = vpop.f32.mrb[0].mxu0
      %v2788 = vadd.f32 0.0, %v2787
      %v2789 = vpop.f32.mrb[0].mxu0
      %v2790 = vpop.f32.mrb[0].mxu0
      %v2791 = vpop.f32.mrb[0].mxu0
      %2792 = vdwg.mxu0
      %v2794 = vsel %vm2515, %v2505, 0
      %v2797 = vsel %vm2519, %v2513, 0
      %2799 = vmatprep.subr.bf16.mxu0 0
      %2800 = vmatpush1.bf16.msra.mxu0 %v2797
      %2801 = vmatprep.subr.bf16.mxu0 0
      %2802 = vmatpush1.bf16.msra.mxu0 0
      %2803 = vmatprep.subr.bf16.mxu0 0
      %2804 = vmatpush1.bf16.msra.mxu0 0
      %2805 = vmatprep.subr.bf16.mxu0 0
      %2806 = vmatpush1.bf16.msra.mxu0 0
      %2807 = vmatprep.subr.bf16.mxu0 0
      %2808 = vmatpush1.bf16.msra.mxu0 0
      %2809 = vmatprep.subr.bf16.mxu0 0
      %2810 = vmatpush1.bf16.msra.mxu0 0
      %2811 = vmatprep.subr.bf16.mxu0 0
      %2812 = vmatpush1.bf16.msra.mxu0 0
      %2813 = vmatprep.subr.bf16.mxu0 0
      %2814 = vmatpush1.bf16.msra.mxu0 0
      %2815 = vmatprep.subr.bf16.mxu0 0
      %2816 = vmatpush1.bf16.msra.mxu0 0
      %2817 = vmatprep.subr.bf16.mxu0 0
      %2818 = vmatpush1.bf16.msra.mxu0 0
      %2819 = vmatprep.subr.bf16.mxu0 0
      %2820 = vmatpush1.bf16.msra.mxu0 0
      %2821 = vmatprep.subr.bf16.mxu0 0
      %2822 = vmatpush1.bf16.msra.mxu0 0
      %2823 = vmatprep.subr.bf16.mxu0 0
      %2824 = vmatpush1.bf16.msra.mxu0 0
      %2825 = vmatprep.subr.bf16.mxu0 0
      %2826 = vmatpush1.bf16.msra.mxu0 0
      %2827 = vmatprep.subr.bf16.mxu0 0
      %2828 = vmatpush1.bf16.msra.mxu0 0
      %2829 = vmatprep.subr.bf16.mxu0 0
      %2830 = vmatpush1.bf16.msra.mxu0 0
      %2831 = vmatprep.mubr.bf16.mxu0 0
      %2832 = vmatmul.mubr.bf16.gmra.mrb[0].mxu0 %v2794
      %v2833 = vpop.f32.mrb[0].mxu0
      %v2834 = vadd.f32 0.0, %v2833
      %v2835 = vpop.f32.mrb[0].mxu0
      %v2836 = vpop.f32.mrb[0].mxu0
      %v2837 = vpop.f32.mrb[0].mxu0
      %2838 = vdwg.mxu0
      %v2840 = vsel %vm2515, %v2506, 0
      %v2843 = vsel %vm2519, %v2514, 0
      %2845 = vmatprep.subr.bf16.mxu0 0
      %2846 = vmatpush1.bf16.msra.mxu0 %v2843
      %2847 = vmatprep.subr.bf16.mxu0 0
      %2848 = vmatpush1.bf16.msra.mxu0 0
      %2849 = vmatprep.subr.bf16.mxu0 0
      %2850 = vmatpush1.bf16.msra.mxu0 0
      %2851 = vmatprep.subr.bf16.mxu0 0
      %2852 = vmatpush1.bf16.msra.mxu0 0
      %2853 = vmatprep.subr.bf16.mxu0 0
      %2854 = vmatpush1.bf16.msra.mxu0 0
      %2855 = vmatprep.subr.bf16.mxu0 0
      %2856 = vmatpush1.bf16.msra.mxu0 0
      %2857 = vmatprep.subr.bf16.mxu0 0
      %2858 = vmatpush1.bf16.msra.mxu0 0
      %2859 = vmatprep.subr.bf16.mxu0 0
      %2860 = vmatpush1.bf16.msra.mxu0 0
      %2861 = vmatprep.subr.bf16.mxu0 0
      %2862 = vmatpush1.bf16.msra.mxu0 0
      %2863 = vmatprep.subr.bf16.mxu0 0
      %2864 = vmatpush1.bf16.msra.mxu0 0
      %2865 = vmatprep.subr.bf16.mxu0 0
      %2866 = vmatpush1.bf16.msra.mxu0 0
      %2867 = vmatprep.subr.bf16.mxu0 0
      %2868 = vmatpush1.bf16.msra.mxu0 0
      %2869 = vmatprep.subr.bf16.mxu0 0
      %2870 = vmatpush1.bf16.msra.mxu0 0
      %2871 = vmatprep.subr.bf16.mxu0 0
      %2872 = vmatpush1.bf16.msra.mxu0 0
      %2873 = vmatprep.subr.bf16.mxu0 0
      %2874 = vmatpush1.bf16.msra.mxu0 0
      %2875 = vmatprep.subr.bf16.mxu0 0
      %2876 = vmatpush1.bf16.msra.mxu0 0
      %2877 = vmatprep.mubr.bf16.mxu0 0
      %2878 = vmatmul.mubr.bf16.gmra.mrb[0].mxu0 %v2840
      %v2879 = vpop.f32.mrb[0].mxu0
      %v2880 = vadd.f32 0.0, %v2879
      %v2881 = vpop.f32.mrb[0].mxu0
      %v2882 = vpop.f32.mrb[0].mxu0
      %v2883 = vpop.f32.mrb[0].mxu0
      %2884 = vdwg.mxu0
      %v2889 = vcombine.high %v1874, %v1874
      %v2890 = vcombine.high %v1875, %v1875
      %v2891 = vcombine.high %v1876, %v1876
      %v2892 = vcombine.high %v1877, %v1877
      %v2897 = vadd.f32 %v2558, %v1874
      %v2898 = vadd.f32 %v2604, %v2889
      %v2899 = vadd.f32 %v2650, %v1875
      %v2900 = vadd.f32 %v2696, %v2890
      %v2901 = vadd.f32 %v2742, %v1876
      %v2902 = vadd.f32 %v2788, %v2891
      %v2903 = vadd.f32 %v2834, %v1877
      %v2904 = vadd.f32 %v2880, %v2892
      %v2905 = vld [vmem:[%s10] sm:$0xff]
      %v2906 = vld [vmem:[%s10 + $0x8] sm:$0xff]
      %v2907 = vld [vmem:[%s10 + $0x10] sm:$0xff]
      %v2908 = vld [vmem:[%s10 + $0x18] sm:$0xff]
      %v2909 = vpack.c.bf16 %v2906, %v2905
      %v2910 = vpack.c.bf16 %v2908, %v2907
      %v2919 = vcombine.low %v2897, %v2898
      %v2920 = vcombine.low %v2899, %v2900
      %v2921 = vcombine.low %v2901, %v2902
      %v2922 = vcombine.low %v2903, %v2904
      %v2927 = vpack.c.bf16 %v2920, %v2919
      %v2928 = vpack.c.bf16 %v2922, %v2921
      %v2930 = vsel %vm857, %v2909, 0
      %v2933 = vsel %vm857, %v2910, 0
      %2935 = vmatprep.subr.bf16.mxu0 0
      %2936 = vmatpush1.bf16.msra.mxu0 %v2927
      %2937 = vmatprep.subr.bf16.mxu0 0
      %2938 = vmatpush1.bf16.msra.mxu0 %v2928
      %2939 = vmatprep.subr.bf16.mxu0 0
      %2940 = vmatpush1.bf16.msra.mxu0 0
      %2941 = vmatprep.subr.bf16.mxu0 0
      %2942 = vmatpush1.bf16.msra.mxu0 0
      %2943 = vmatprep.subr.bf16.mxu0 0
      %2944 = vmatpush1.bf16.msra.mxu0 0
      %2945 = vmatprep.subr.bf16.mxu0 0
      %2946 = vmatpush1.bf16.msra.mxu0 0
      %2947 = vmatprep.subr.bf16.mxu0 0
      %2948 = vmatpush1.bf16.msra.mxu0 0
      %2949 = vmatprep.subr.bf16.mxu0 0
      %2950 = vmatpush1.bf16.msra.mxu0 0
      %2951 = vmatprep.subr.bf16.mxu0 0
      %2952 = vmatpush1.bf16.msra.mxu0 0
      %2953 = vmatprep.subr.bf16.mxu0 0
      %2954 = vmatpush1.bf16.msra.mxu0 0
      %2955 = vmatprep.subr.bf16.mxu0 0
      %2956 = vmatpush1.bf16.msra.mxu0 0
      %2957 = vmatprep.subr.bf16.mxu0 0
      %2958 = vmatpush1.bf16.msra.mxu0 0
      %2959 = vmatprep.subr.bf16.mxu0 0
      %2960 = vmatpush1.bf16.msra.mxu0 0
      %2961 = vmatprep.subr.bf16.mxu0 0
      %2962 = vmatpush1.bf16.msra.mxu0 0
      %2963 = vmatprep.subr.bf16.mxu0 0
      %2964 = vmatpush1.bf16.msra.mxu0 0
      %2965 = vmatprep.subr.bf16.mxu0 0
      %2966 = vmatpush1.bf16.msra.mxu0 0
      %2967 = vmatprep.mubr.bf16.mxu0 0
      %2968 = vmatmul.mubr.bf16.gmra.mrb[0].mxu0 %v2930
      %v2969 = vpop.f32.mrb[0].mxu0
      %v2970 = vadd.f32 0.0, %v2969
      %v2971 = vpop.f32.mrb[0].mxu0
      %v2972 = vpop.f32.mrb[0].mxu0
      %v2973 = vadd.f32 0.0, %v2972
      %v2974 = vpop.f32.mrb[0].mxu0
      %2975 = vmatprep.mubr.bf16.mxu0 0
      %2976 = vmatmul.mubr.bf16.gmra.mrb[0].mxu0 %v2933
      %v2977 = vpop.f32.mrb[0].mxu0
      %v2978 = vadd.f32 0.0, %v2977
      %v2979 = vpop.f32.mrb[0].mxu0
      %v2980 = vpop.f32.mrb[0].mxu0
      %v2981 = vadd.f32 0.0, %v2980
      %v2982 = vpop.f32.mrb[0].mxu0
      %2983 = vdwg.mxu0
      %2984 = vst.msk [vmem:[%s406] sm:$0xff] %vm589, %v2970
      %2985 = vst.msk [vmem:[%s406 + $0x8] sm:$0xff] %vm589, %v2973
      %2986 = vst.msk [vmem:[%s406 + $0x10] sm:$0xff] %vm589, %v2978
      %2987 = vst.msk [vmem:[%s406 + $0x18] sm:$0xff] %vm589, %v2981
      %p2988 = scmp.lt.s32.totalorder %s22, 1
      %s2989 = scalar_select %p2988, %s22, 1
      %s2990 = smul.addr %s2989, 4
      %s2991 = smul.addr %s2990, 8
      %s2992 = scalar_lea.vmem %s11, %s2991
      // Predicated region
      $region65: #{downsample_forward.1} parent=63 // pred_check
        %p2993 = pneg %p281
      $region66: #{downsample_forward.1} parent=63 // pred_check_branch
        %2995 = sbr.rel (%p2993) target = $region68
      $region67: #{downsample_forward.1} parent=63 // pred_region
        _
      $region68: #{downsample_forward.1} parent=63 // pred_fallthru
        _
    $region64: #{downsample_forward.1} parent=5 // pred_fallthru
      _
    %p2996 = scmp.le.s32.totalorder 2, %s17
    // Predicated region
    $region69: #{downsample_forward.1} parent=5 // pred_check
      %p2997 = pneg %p2996
    $region70: #{downsample_forward.1} parent=5 // pred_check_branch
      %2999 = sbr.rel (%p2997) target = $region72
    $region71: #{downsample_forward.1} parent=5 // pred_region
      %s3000 = ssub.s32 %s17, 2
      // Predicated region
      $region73: #{downsample_forward.1} parent=71 // pred_check
        %p3001 = pneg %p287
      $region74: #{downsample_forward.1} parent=71 // pred_check_branch
        %3003 = sbr.rel (%p3001) target = $region76
      $region75: #{downsample_forward.1} parent=71 // pred_region
        %p3004 = scmp.lt.s32.totalorder %s23, 1
        %s3005 = scalar_select %p3004, %s23, 1
        %s3006 = smul.addr %s3005, 4
        %s3007 = smul.addr %s3006, 8
        %s3008 = scalar_lea.vmem %s11, %s3007
      $region76: #{downsample_forward.1} parent=71 // pred_fallthru
        _
    $region72: #{downsample_forward.1} parent=5 // pred_fallthru
      _
  $region6: #{downsample_forward.1} parent=0 // loop_footer
    %s21 = sadd.s32 1, %s17
  $region7: #{downsample_forward.1} parent=0 // loop_footer_branch
    %16 = sbr.rel target = $region3
  $region8: #{downsample_forward.1} parent=0 // loop_exit
    _

</llo_original>
